<compile_context>
chip_gen: v6e
topology: v6e:2x2x1
jax: 0.10.0
libtpu: 0.0.40
codegen_flags: <defaults>
</compile_context>

<pallas_src>
import math
import functools

import jax
import jax.numpy as jnp
from jax.experimental import pallas as pl
from jax.experimental.pallas import tpu as pltpu


def decoder_layer_kernel(
        x_ref, enc_ref,
        # self-attention (head-major W_q/W_k/W_v/W_o, head-major biases)
        wq1_ref, bq1_ref, wk1_ref, bk1_ref, wv1_ref, bv1_ref, wo1_ref, bo1_ref,
        g1_ref, be1_ref,
        # cross-attention
        wq2_ref, bq2_ref, wk2_ref, bk2_ref, wv2_ref, bv2_ref, wo2_ref, bo2_ref,
        g2_ref, be2_ref,
        # feed-forward
        wf1_ref, bf1_ref, wf2_ref, bf2_ref,
        g3_ref, be3_ref,
        o_ref,
        *, h, scale, eps, mxu_dtype):
    f32 = jnp.float32

    x = x_ref[...].astype(f32)      # (Sq,  d_model)  -- one batch element
    enc = enc_ref[...].astype(f32)  # (Skv, d_model)

    def linear(rows, w_ref, b_ref):
        return (jnp.dot(rows.astype(mxu_dtype), w_ref[...].astype(mxu_dtype),
                        preferred_element_type=f32) + b_ref[...])

    def layer_norm(rows, g_ref, b_ref):
        mu = jnp.mean(rows, axis=-1, keepdims=True)
        xc = rows - mu
        var = jnp.mean(xc * xc, axis=-1, keepdims=True)
        return xc * jax.lax.rsqrt(var + eps) * g_ref[...] + b_ref[...]

    def softmax_lastdim(s):
        s = s - jnp.max(s, axis=-1, keepdims=True)
        p = jnp.exp(s)
        l = jnp.sum(p, axis=-1, keepdims=True)
        r = pl.reciprocal(l, approx=True)   # EUP slot
        r = r * (2.0 - l * r)               # one Newton step -> near-exact
        return p * r

    def proj_heads(rows_h, w_ref, b_ref):
        # rows_h: (h, S, d_model) broadcast activations (mxu_dtype)
        # w_ref : (h, d_model, dd) head-major weights
        # -> (h, S, dd) f32.  Plain batched dot_general; no lane slicing,
        # no stack, no result transpose.
        return (jnp.einsum('hsm,hmd->hsd', rows_h, w_ref[...].astype(mxu_dtype),
                           preferred_element_type=f32) + b_ref[...])

    def mha(q_rows, kv_rows,
            wq_ref, bq_ref, wk_ref, bk_ref, wv_ref, bv_ref, wo_ref, bo_ref):
        q_h = jnp.broadcast_to(q_rows.astype(mxu_dtype)[None],
                               (h,) + q_rows.shape)      # (h, Sq,  d_model)
        kv_h = jnp.broadcast_to(kv_rows.astype(mxu_dtype)[None],
                                (h,) + kv_rows.shape)    # (h, Skv, d_model)
        Qh = proj_heads(q_h, wq_ref, bq_ref)             # (h, Sq,  d_k)
        Kh = proj_heads(kv_h, wk_ref, bk_ref)            # (h, Skv, d_k)
        Vh = proj_heads(kv_h, wv_ref, bv_ref)            # (h, Skv, d_v)

        # All heads in one batched dot_general; K consumed in native layout.
        s = jnp.einsum('hqd,hkd->hqk', Qh.astype(mxu_dtype),
                       Kh.astype(mxu_dtype),
                       preferred_element_type=f32) * scale
        # TODO(synk): optional lookahead/padding mask (masked_fill(mask==0,
        # -1e9)) is not wired up; this matches the module for mask=None.
        p = softmax_lastdim(s)
        ctx = jnp.einsum('hqk,hkd->hqd', p.astype(mxu_dtype),
                         Vh.astype(mxu_dtype),
                         preferred_element_type=f32)     # (h, Sq, d_v)
        # Output projection without concatenating heads:
        #   sum_h ctx[h] @ W_o[h]  ==  concat(heads) @ W_o
        # The sum is over the untiled leading axis: h-1 cheap VPU tile adds.
        ob = jnp.einsum('hqd,hdm->hqm', ctx.astype(mxu_dtype),
                        wo_ref[...].astype(mxu_dtype),
                        preferred_element_type=f32)      # (h, Sq, d_model)
        return jnp.sum(ob, axis=0) + bo_ref[...]         # (Sq, d_model)

    # TODO(synk): nn.Dropout layers are identity in eval mode (implemented as
    # such); training-mode dropout would need the Pallas PRNG.

    # --- sub-layer 1: self-attention + add & norm ----------------------------
    attn1 = mha(x, x,
                wq1_ref, bq1_ref, wk1_ref, bk1_ref, wv1_ref, bv1_ref,
                wo1_ref, bo1_ref)
    y1 = layer_norm(x + attn1, g1_ref, be1_ref)

    # --- sub-layer 2: cross-attention over encoder output + add & norm -------
    attn2 = mha(y1, enc,
                wq2_ref, bq2_ref, wk2_ref, bk2_ref, wv2_ref, bv2_ref,
                wo2_ref, bo2_ref)
    y2 = layer_norm(y1 + attn2, g2_ref, be2_ref)

    # --- sub-layer 3: position-wise feed-forward + add & norm ----------------
    ffh = jnp.maximum(linear(y2, wf1_ref, bf1_ref), 0.0)
    ff = linear(ffh, wf2_ref, bf2_ref)
    o_ref[...] = layer_norm(y2 + ff, g3_ref, be3_ref).astype(o_ref.dtype)


def decoder_layer(x, enc_out, params, *, h, d_k, d_v, eps=1e-5,
                  mxu_dtype=jnp.bfloat16):
    """x: (B, S_dec, d_model), enc_out: (B, S_enc, d_model)."""
    B, Sq, d_model = x.shape
    _, Skv, _ = enc_out.shape
    mha1, ln1, mha2, ln2, ffn, ln3 = params
    wq1, bq1, wk1, bk1, wv1, bv1, wo1, bo1 = mha1
    g1, be1 = ln1
    wq2, bq2, wk2, bk2, wv2, bv2, wo2, bo2 = mha2
    g2, be2 = ln2
    wf1, bf1, wf2, bf2 = ffn
    g3, be3 = ln3

    def head_major_proj(w, b, dd):
        # (d_model, h*dd) -> (h, d_model, dd);   (1, h*dd) -> (h, 1, dd)
        return (w.reshape(d_model, h, dd).transpose(1, 0, 2),
                b.reshape(h, 1, dd))

    wq1h, bq1h = head_major_proj(wq1, bq1, d_k)
    wk1h, bk1h = head_major_proj(wk1, bk1, d_k)
    wv1h, bv1h = head_major_proj(wv1, bv1, d_v)
    wo1h = wo1.reshape(h, d_v, d_model)
    wq2h, bq2h = head_major_proj(wq2, bq2, d_k)
    wk2h, bk2h = head_major_proj(wk2, bk2, d_k)
    wv2h, bv2h = head_major_proj(wv2, bv2, d_v)
    wo2h = wo2.reshape(h, d_v, d_model)

    weights = (wq1h, bq1h, wk1h, bk1h, wv1h, bv1h, wo1h, bo1, g1, be1,
               wq2h, bq2h, wk2h, bk2h, wv2h, bv2h, wo2h, bo2, g2, be2,
               wf1, bf1, wf2, bf2, g3, be3)

    # Activation / output blocks: one batch element per grid step (double-
    # buffered pipelining; "parallel" lets v7x split batches across its 2 TCs).
    x_spec = pl.BlockSpec((None, Sq, d_model), lambda b: (b, 0, 0))
    enc_spec = pl.BlockSpec((None, Skv, d_model), lambda b: (b, 0, 0))
    out_spec = pl.BlockSpec((None, Sq, d_model), lambda b: (b, 0, 0))

    def resident_spec(a):
        # Full-array block whose block index never changes: DMA'd into VMEM
        # once and kept resident across all grid steps.
        nd = a.ndim
        return pl.BlockSpec(a.shape, lambda b, _nd=nd: (0,) * _nd)

    in_specs = [x_spec, enc_spec] + [resident_spec(w) for w in weights]

    # VMEM budget: resident weights + a generous multiple of the double-
    # buffered activation tiles, clamped so it also fits v7x's 64 MiB VMEM.
    itemsize = x.dtype.itemsize
    weight_bytes = sum(int(w.size) * w.dtype.itemsize for w in weights)
    act_tile_bytes = (Sq + Skv + Sq) * d_model * itemsize
    budget = weight_bytes + 16 * act_tile_bytes + (8 << 20)
    vmem_limit = int(min(max(budget, 32 << 20), 48 << 20))

    kernel = functools.partial(
        decoder_layer_kernel, h=h, scale=1.0 / math.sqrt(d_k), eps=eps,
        mxu_dtype=mxu_dtype)

    return pl.pallas_call(
        kernel,
        grid=(B,),
        out_shape=jax.ShapeDtypeStruct((B, Sq, d_model), x.dtype),
        in_specs=in_specs,
        out_specs=out_spec,
        compiler_params=pltpu.CompilerParams(
            dimension_semantics=("parallel",),
            vmem_limit_bytes=vmem_limit),
    )(x, enc_out, *weights)


def reference_decoder_layer(x, enc_out, params, *, h, d_k, d_v, eps=1e-5,
                            matmul_dtype=jnp.float32):
    """Pure-JAX replica of the PyTorch forward (mask=None, eval-mode dropout).

    matmul_dtype lets the reference mimic the kernel's bf16 MXU inputs for a
    tight numerical comparison; accumulation is always f32."""
    mha1, ln1, mha2, ln2, ffn, ln3 = params
    f32 = jnp.float32

    def mm(a, b):
        return jnp.dot(a.astype(matmul_dtype), b.astype(matmul_dtype),
                       preferred_element_type=f32)

    def mha(q, k, v, p):
        wq, bq, wk, bk, wv, bv, wo, bo = p
        B, Sq, _ = q.shape
        Skv = k.shape[1]
        Q = (mm(q, wq) + bq).reshape(B, Sq, h, d_k).transpose(0, 2, 1, 3)
        K = (mm(k, wk) + bk).reshape(B, Skv, h, d_k).transpose(0, 2, 1, 3)
        V = (mm(v, wv) + bv).reshape(B, Skv, h, d_v).transpose(0, 2, 1, 3)
        scores = jnp.einsum("bhqd,bhkd->bhqk", Q.astype(matmul_dtype),
                            K.astype(matmul_dtype),
                            preferred_element_type=f32) / math.sqrt(d_k)
        attn = jax.nn.softmax(scores, axis=-1)
        out = jnp.einsum("bhqk,bhkd->bhqd", attn.astype(matmul_dtype),
                         V.astype(matmul_dtype), preferred_element_type=f32)
        out = out.transpose(0, 2, 1, 3).reshape(B, Sq, h * d_v)
        return mm(out, wo) + bo

    def layer_norm(z, p):
        g, b = p
        mu = jnp.mean(z, axis=-1, keepdims=True)
        var = jnp.mean((z - mu) ** 2, axis=-1, keepdims=True)
        return (z - mu) / jnp.sqrt(var + eps) * g + b

    attn1 = mha(x, x, x, mha1)
    y1 = layer_norm(x + attn1, ln1)
    attn2 = mha(y1, enc_out, enc_out, mha2)
    y2 = layer_norm(y1 + attn2, ln2)
    wf1, bf1, wf2, bf2 = ffn
    ff = mm(jnp.maximum(mm(y2, wf1) + bf1, 0.0), wf2) + bf2
    return layer_norm(y2 + ff, ln3)


if __name__ == "__main__":
    # Small deterministic problem: h=4 heads, d_k=d_v=8, d_model=32, d_ff=64.
    h, d_k, d_v, d_model, d_ff = 4, 8, 8, 32, 64
    B, S_dec, S_enc = 2, 8, 8

    key = jax.random.PRNGKey(0)
    keys = iter(jax.random.split(key, 32))

    def init_linear(fan_in, fan_out):
        # Mimics nn.Linear's uniform(-1/sqrt(in), 1/sqrt(in)) init.
        bound = 1.0 / math.sqrt(fan_in)
        w = jax.random.uniform(next(keys), (fan_in, fan_out), jnp.float32,
                               -bound, bound)
        b = jax.random.uniform(next(keys), (1, fan_out), jnp.float32,
                               -bound, bound)
        return w, b

    def init_mha():
        wq, bq = init_linear(d_model, h * d_k)
        wk, bk = init_linear(d_model, h * d_k)
        wv, bv = init_linear(d_model, h * d_v)
        wo, bo = init_linear(h * d_v, d_model)
        return (wq, bq, wk, bk, wv, bv, wo, bo)

    def init_ln():
        # Random affine params (instead of LayerNorm's 1/0 defaults) so the
        # verification exercises the affine path too.
        g = 1.0 + 0.1 * jax.random.normal(next(keys), (1, d_model), jnp.float32)
        b = 0.1 * jax.random.normal(next(keys), (1, d_model), jnp.float32)
        return (g, b)

    params = (init_mha(), init_ln(),
              init_mha(), init_ln(),
              init_linear(d_model, d_ff) + init_linear(d_ff, d_model),
              init_ln())

    x = jax.random.normal(next(keys), (B, S_dec, d_model), jnp.float32)
    enc = jax.random.normal(next(keys), (B, S_enc, d_model), jnp.float32)

    out = decoder_layer(x, enc, params, h=h, d_k=d_k, d_v=d_v,
                        mxu_dtype=jnp.bfloat16)
    out = jax.block_until_ready(out)
    assert out.shape == (B, S_dec, d_model)

    # Tight check vs. a reference that also feeds bf16 into the matmuls.
    ref_bf16 = reference_decoder_layer(x, enc, params, h=h, d_k=d_k, d_v=d_v,
                                       matmul_dtype=jnp.bfloat16)
    err_bf16 = float(jnp.max(jnp.abs(out - ref_bf16)))
    assert err_bf16 < 5e-3, f"mismatch vs bf16-matmul reference: {err_bf16}"

    # Looser semantic check vs. the full-f32 PyTorch-equivalent reference
    # (tolerance covers bf16 MXU inputs).
    ref_f32 = reference_decoder_layer(x, enc, params, h=h, d_k=d_k, d_v=d_v,
                                      matmul_dtype=jnp.float32)
    err_f32 = float(jnp.max(jnp.abs(out - ref_f32)))
    assert err_f32 < 5e-2, f"mismatch vs f32 reference: {err_f32}"

    print("KERNEL_OK")
</pallas_src>

<mosaic_0001>
module attributes {stable_mosaic.version = 11 : i64} {
  func.func @decoder_layer_kernel(%arg0: i32, %arg1: memref<1x8x32xf32, #tpu.memory_space<vmem>>, %arg2: memref<1x8x32xf32, #tpu.memory_space<vmem>>, %arg3: memref<4x32x8xf32, #tpu.memory_space<vmem>>, %arg4: memref<4x1x8xf32, #tpu.memory_space<vmem>>, %arg5: memref<4x32x8xf32, #tpu.memory_space<vmem>>, %arg6: memref<4x1x8xf32, #tpu.memory_space<vmem>>, %arg7: memref<4x32x8xf32, #tpu.memory_space<vmem>>, %arg8: memref<4x1x8xf32, #tpu.memory_space<vmem>>, %arg9: memref<4x8x32xf32, #tpu.memory_space<vmem>>, %arg10: memref<1x32xf32, #tpu.memory_space<vmem>>, %arg11: memref<1x32xf32, #tpu.memory_space<vmem>>, %arg12: memref<1x32xf32, #tpu.memory_space<vmem>>, %arg13: memref<4x32x8xf32, #tpu.memory_space<vmem>>, %arg14: memref<4x1x8xf32, #tpu.memory_space<vmem>>, %arg15: memref<4x32x8xf32, #tpu.memory_space<vmem>>, %arg16: memref<4x1x8xf32, #tpu.memory_space<vmem>>, %arg17: memref<4x32x8xf32, #tpu.memory_space<vmem>>, %arg18: memref<4x1x8xf32, #tpu.memory_space<vmem>>, %arg19: memref<4x8x32xf32, #tpu.memory_space<vmem>>, %arg20: memref<1x32xf32, #tpu.memory_space<vmem>>, %arg21: memref<1x32xf32, #tpu.memory_space<vmem>>, %arg22: memref<1x32xf32, #tpu.memory_space<vmem>>, %arg23: memref<32x64xf32, #tpu.memory_space<vmem>>, %arg24: memref<1x64xf32, #tpu.memory_space<vmem>>, %arg25: memref<64x32xf32, #tpu.memory_space<vmem>>, %arg26: memref<1x32xf32, #tpu.memory_space<vmem>>, %arg27: memref<1x32xf32, #tpu.memory_space<vmem>>, %arg28: memref<1x32xf32, #tpu.memory_space<vmem>>, %arg29: memref<1x8x32xf32, #tpu.memory_space<vmem>>) attributes {dimension_semantics = [#tpu.dimension_semantics<parallel>], iteration_bounds = array<i64: 2>, scalar_prefetch = 0 : i64, scratch_operands = 0 : i64, tpu.core_type = #tpu.core_type<tc>, window_params = [{transform_indices = @transform_0, window_bounds = array<i64: 1, 8, 32>}, {transform_indices = @transform_1, window_bounds = array<i64: 1, 8, 32>}, {pipeline_mode = #tpu.pipeline_mode<synchronous>, transform_indices = @transform_2, window_bounds = array<i64: 4, 32, 8>}, {pipeline_mode = #tpu.pipeline_mode<synchronous>, transform_indices = @transform_3, window_bounds = array<i64: 4, 1, 8>}, {pipeline_mode = #tpu.pipeline_mode<synchronous>, transform_indices = @transform_4, window_bounds = array<i64: 4, 32, 8>}, {pipeline_mode = #tpu.pipeline_mode<synchronous>, transform_indices = @transform_5, window_bounds = array<i64: 4, 1, 8>}, {pipeline_mode = #tpu.pipeline_mode<synchronous>, transform_indices = @transform_6, window_bounds = array<i64: 4, 32, 8>}, {pipeline_mode = #tpu.pipeline_mode<synchronous>, transform_indices = @transform_7, window_bounds = array<i64: 4, 1, 8>}, {pipeline_mode = #tpu.pipeline_mode<synchronous>, transform_indices = @transform_8, window_bounds = array<i64: 4, 8, 32>}, {pipeline_mode = #tpu.pipeline_mode<synchronous>, transform_indices = @transform_9, window_bounds = array<i64: 1, 32>}, {pipeline_mode = #tpu.pipeline_mode<synchronous>, transform_indices = @transform_10, window_bounds = array<i64: 1, 32>}, {pipeline_mode = #tpu.pipeline_mode<synchronous>, transform_indices = @transform_11, window_bounds = array<i64: 1, 32>}, {pipeline_mode = #tpu.pipeline_mode<synchronous>, transform_indices = @transform_12, window_bounds = array<i64: 4, 32, 8>}, {pipeline_mode = #tpu.pipeline_mode<synchronous>, transform_indices = @transform_13, window_bounds = array<i64: 4, 1, 8>}, {pipeline_mode = #tpu.pipeline_mode<synchronous>, transform_indices = @transform_14, window_bounds = array<i64: 4, 32, 8>}, {pipeline_mode = #tpu.pipeline_mode<synchronous>, transform_indices = @transform_15, window_bounds = array<i64: 4, 1, 8>}, {pipeline_mode = #tpu.pipeline_mode<synchronous>, transform_indices = @transform_16, window_bounds = array<i64: 4, 32, 8>}, {pipeline_mode = #tpu.pipeline_mode<synchronous>, transform_indices = @transform_17, window_bounds = array<i64: 4, 1, 8>}, {pipeline_mode = #tpu.pipeline_mode<synchronous>, transform_indices = @transform_18, window_bounds = array<i64: 4, 8, 32>}, {pipeline_mode = #tpu.pipeline_mode<synchronous>, transform_indices = @transform_19, window_bounds = array<i64: 1, 32>}, {pipeline_mode = #tpu.pipeline_mode<synchronous>, transform_indices = @transform_20, window_bounds = array<i64: 1, 32>}, {pipeline_mode = #tpu.pipeline_mode<synchronous>, transform_indices = @transform_21, window_bounds = array<i64: 1, 32>}, {pipeline_mode = #tpu.pipeline_mode<synchronous>, transform_indices = @transform_22, window_bounds = array<i64: 32, 64>}, {pipeline_mode = #tpu.pipeline_mode<synchronous>, transform_indices = @transform_23, window_bounds = array<i64: 1, 64>}, {pipeline_mode = #tpu.pipeline_mode<synchronous>, transform_indices = @transform_24, window_bounds = array<i64: 64, 32>}, {pipeline_mode = #tpu.pipeline_mode<synchronous>, transform_indices = @transform_25, window_bounds = array<i64: 1, 32>}, {pipeline_mode = #tpu.pipeline_mode<synchronous>, transform_indices = @transform_26, window_bounds = array<i64: 1, 32>}, {pipeline_mode = #tpu.pipeline_mode<synchronous>, transform_indices = @transform_27, window_bounds = array<i64: 1, 32>}, {transform_indices = @transform_28, window_bounds = array<i64: 1, 8, 32>}]} {
    %c0 = arith.constant 0 : index
    %c0_0 = arith.constant 0 : index
    %c0_1 = arith.constant 0 : index
    %0 = vector.load %arg1[%c0, %c0_0, %c0_1] : memref<1x8x32xf32, #tpu.memory_space<vmem>>, vector<1x8x32xf32>
    %1 = vector.shape_cast %0 : vector<1x8x32xf32> to vector<8x32xf32>
    %c0_2 = arith.constant 0 : index
    %c0_3 = arith.constant 0 : index
    %c0_4 = arith.constant 0 : index
    %2 = vector.load %arg2[%c0_2, %c0_3, %c0_4] : memref<1x8x32xf32, #tpu.memory_space<vmem>>, vector<1x8x32xf32>
    %3 = vector.shape_cast %2 : vector<1x8x32xf32> to vector<8x32xf32>
    %4 = arith.truncf %1 : vector<8x32xf32> to vector<8x32xbf16>
    %5 = vector.shape_cast %4 : vector<8x32xbf16> to vector<1x8x32xbf16>
    %6 = vector.shape_cast %5 : vector<1x8x32xbf16> to vector<1x8x32xbf16>
    %7 = vector.broadcast %6 : vector<1x8x32xbf16> to vector<4x8x32xbf16>
    %8 = arith.truncf %1 : vector<8x32xf32> to vector<8x32xbf16>
    %9 = vector.shape_cast %8 : vector<8x32xbf16> to vector<1x8x32xbf16>
    %10 = vector.shape_cast %9 : vector<1x8x32xbf16> to vector<1x8x32xbf16>
    %11 = vector.broadcast %10 : vector<1x8x32xbf16> to vector<4x8x32xbf16>
    %c0_5 = arith.constant 0 : index
    %c0_6 = arith.constant 0 : index
    %c0_7 = arith.constant 0 : index
    %12 = vector.load %arg3[%c0_5, %c0_6, %c0_7] : memref<4x32x8xf32, #tpu.memory_space<vmem>>, vector<4x32x8xf32>
    %13 = arith.truncf %12 : vector<4x32x8xf32> to vector<4x32x8xbf16>
    "tpu.trace_start"() <{level = 10 : i32, message = "hsm,hmd->hsd"}> : () -> ()
    %cst = arith.constant dense<0.000000e+00> : vector<4x8x8xf32>
    %14 = tpu.matmul %7, %13, %cst {dimension_numbers = #tpu.dot_dimension_numbers<[2], [1], [1], [2], [0, 0, 0, 1, 1, 2], [0], [0]>} : vector<4x8x32xbf16>, vector<4x32x8xbf16>, vector<4x8x8xf32> -> vector<4x8x8xf32>
    "tpu.trace_stop"() : () -> ()
    %c0_8 = arith.constant 0 : index
    %c0_9 = arith.constant 0 : index
    %c0_10 = arith.constant 0 : index
    %15 = vector.load %arg4[%c0_8, %c0_9, %c0_10] : memref<4x1x8xf32, #tpu.memory_space<vmem>>, vector<4x1x8xf32>
    %16 = vector.broadcast %15 : vector<4x1x8xf32> to vector<4x8x8xf32>
    %17 = arith.addf %14, %16 : vector<4x8x8xf32>
    %c0_11 = arith.constant 0 : index
    %c0_12 = arith.constant 0 : index
    %c0_13 = arith.constant 0 : index
    %18 = vector.load %arg5[%c0_11, %c0_12, %c0_13] : memref<4x32x8xf32, #tpu.memory_space<vmem>>, vector<4x32x8xf32>
    %19 = arith.truncf %18 : vector<4x32x8xf32> to vector<4x32x8xbf16>
    "tpu.trace_start"() <{level = 10 : i32, message = "hsm,hmd->hsd"}> : () -> ()
    %cst_14 = arith.constant dense<0.000000e+00> : vector<4x8x8xf32>
    %20 = tpu.matmul %11, %19, %cst_14 {dimension_numbers = #tpu.dot_dimension_numbers<[2], [1], [1], [2], [0, 0, 0, 1, 1, 2], [0], [0]>} : vector<4x8x32xbf16>, vector<4x32x8xbf16>, vector<4x8x8xf32> -> vector<4x8x8xf32>
    "tpu.trace_stop"() : () -> ()
    %c0_15 = arith.constant 0 : index
    %c0_16 = arith.constant 0 : index
    %c0_17 = arith.constant 0 : index
    %21 = vector.load %arg6[%c0_15, %c0_16, %c0_17] : memref<4x1x8xf32, #tpu.memory_space<vmem>>, vector<4x1x8xf32>
    %22 = vector.broadcast %21 : vector<4x1x8xf32> to vector<4x8x8xf32>
    %23 = arith.addf %20, %22 : vector<4x8x8xf32>
    %c0_18 = arith.constant 0 : index
    %c0_19 = arith.constant 0 : index
    %c0_20 = arith.constant 0 : index
    %24 = vector.load %arg7[%c0_18, %c0_19, %c0_20] : memref<4x32x8xf32, #tpu.memory_space<vmem>>, vector<4x32x8xf32>
    %25 = arith.truncf %24 : vector<4x32x8xf32> to vector<4x32x8xbf16>
    "tpu.trace_start"() <{level = 10 : i32, message = "hsm,hmd->hsd"}> : () -> ()
    %cst_21 = arith.constant dense<0.000000e+00> : vector<4x8x8xf32>
    %26 = tpu.matmul %11, %25, %cst_21 {dimension_numbers = #tpu.dot_dimension_numbers<[2], [1], [1], [2], [0, 0, 0, 1, 1, 2], [0], [0]>} : vector<4x8x32xbf16>, vector<4x32x8xbf16>, vector<4x8x8xf32> -> vector<4x8x8xf32>
    "tpu.trace_stop"() : () -> ()
    %c0_22 = arith.constant 0 : index
    %c0_23 = arith.constant 0 : index
    %c0_24 = arith.constant 0 : index
    %27 = vector.load %arg8[%c0_22, %c0_23, %c0_24] : memref<4x1x8xf32, #tpu.memory_space<vmem>>, vector<4x1x8xf32>
    %28 = vector.broadcast %27 : vector<4x1x8xf32> to vector<4x8x8xf32>
    %29 = arith.addf %26, %28 : vector<4x8x8xf32>
    %30 = arith.truncf %17 : vector<4x8x8xf32> to vector<4x8x8xbf16>
    %31 = arith.truncf %23 : vector<4x8x8xf32> to vector<4x8x8xbf16>
    "tpu.trace_start"() <{level = 10 : i32, message = "hqd,hkd->hqk"}> : () -> ()
    %cst_25 = arith.constant dense<0.000000e+00> : vector<4x8x8xf32>
    %32 = tpu.matmul %30, %31, %cst_25 {dimension_numbers = #tpu.dot_dimension_numbers<[2], [2], [1], [1], [0, 0, 0, 1, 1, 1], [0], [0]>} : vector<4x8x8xbf16>, vector<4x8x8xbf16>, vector<4x8x8xf32> -> vector<4x8x8xf32>
    "tpu.trace_stop"() : () -> ()
    %cst_26 = arith.constant 0.353553385 : f32
    %33 = vector.broadcast %cst_26 : f32 to vector<4x8x8xf32>
    %34 = arith.mulf %32, %33 : vector<4x8x8xf32>
    %cst_27 = arith.constant dense<0xFF800000> : vector<4x8xf32>
    %35 = vector.multi_reduction <maximumf>, %34, %cst_27 [2] : vector<4x8x8xf32> to vector<4x8xf32>
    %36 = vector.shape_cast %35 : vector<4x8xf32> to vector<4x8x1xf32>
    %37 = vector.broadcast %36 : vector<4x8x1xf32> to vector<4x8x8xf32>
    %38 = arith.subf %34, %37 : vector<4x8x8xf32>
    %39 = math.exp %38 : vector<4x8x8xf32>
    %cst_28 = arith.constant dense<0.000000e+00> : vector<4x8xf32>
    %40 = vector.multi_reduction <add>, %39, %cst_28 [2] : vector<4x8x8xf32> to vector<4x8xf32>
    %41 = vector.shape_cast %40 : vector<4x8xf32> to vector<4x8x1xf32>
    %42 = tpu.reciprocal %41 {approx = true} : vector<4x8x1xf32> -> vector<4x8x1xf32>
    %43 = arith.mulf %41, %42 : vector<4x8x1xf32>
    %cst_29 = arith.constant 2.000000e+00 : f32
    %44 = vector.broadcast %cst_29 : f32 to vector<4x8x1xf32>
    %45 = arith.subf %44, %43 : vector<4x8x1xf32>
    %46 = arith.mulf %42, %45 : vector<4x8x1xf32>
    %47 = vector.broadcast %46 : vector<4x8x1xf32> to vector<4x8x8xf32>
    %48 = arith.mulf %39, %47 : vector<4x8x8xf32>
    %49 = arith.truncf %48 : vector<4x8x8xf32> to vector<4x8x8xbf16>
    %50 = arith.truncf %29 : vector<4x8x8xf32> to vector<4x8x8xbf16>
    "tpu.trace_start"() <{level = 10 : i32, message = "hqk,hkd->hqd"}> : () -> ()
    %cst_30 = arith.constant dense<0.000000e+00> : vector<4x8x8xf32>
    %51 = tpu.matmul %49, %50, %cst_30 {dimension_numbers = #tpu.dot_dimension_numbers<[2], [1], [1], [2], [0, 0, 0, 1, 1, 2], [0], [0]>} : vector<4x8x8xbf16>, vector<4x8x8xbf16>, vector<4x8x8xf32> -> vector<4x8x8xf32>
    "tpu.trace_stop"() : () -> ()
    %52 = arith.truncf %51 : vector<4x8x8xf32> to vector<4x8x8xbf16>
    %c0_31 = arith.constant 0 : index
    %c0_32 = arith.constant 0 : index
    %c0_33 = arith.constant 0 : index
    %53 = vector.load %arg9[%c0_31, %c0_32, %c0_33] : memref<4x8x32xf32, #tpu.memory_space<vmem>>, vector<4x8x32xf32>
    %54 = arith.truncf %53 : vector<4x8x32xf32> to vector<4x8x32xbf16>
    "tpu.trace_start"() <{level = 10 : i32, message = "hqd,hdm->hqm"}> : () -> ()
    %cst_34 = arith.constant dense<0.000000e+00> : vector<4x8x32xf32>
    %55 = tpu.matmul %52, %54, %cst_34 {dimension_numbers = #tpu.dot_dimension_numbers<[2], [1], [1], [2], [0, 0, 0, 1, 1, 2], [0], [0]>} : vector<4x8x8xbf16>, vector<4x8x32xbf16>, vector<4x8x32xf32> -> vector<4x8x32xf32>
    "tpu.trace_stop"() : () -> ()
    %cst_35 = arith.constant dense<0.000000e+00> : vector<8x32xf32>
    %56 = vector.multi_reduction <add>, %55, %cst_35 [0] : vector<4x8x32xf32> to vector<8x32xf32>
    %c0_36 = arith.constant 0 : index
    %c0_37 = arith.constant 0 : index
    %57 = vector.load %arg10[%c0_36, %c0_37] : memref<1x32xf32, #tpu.memory_space<vmem>>, vector<1x32xf32>
    %58 = vector.broadcast %57 : vector<1x32xf32> to vector<8x32xf32>
    %59 = arith.addf %56, %58 : vector<8x32xf32>
    %60 = arith.addf %1, %59 : vector<8x32xf32>
    %cst_38 = arith.constant dense<0.000000e+00> : vector<8xf32>
    %61 = vector.multi_reduction <add>, %60, %cst_38 [1] : vector<8x32xf32> to vector<8xf32>
    %62 = vector.shape_cast %61 : vector<8xf32> to vector<8x1xf32>
    %cst_39 = arith.constant 3.200000e+01 : f32
    %63 = vector.broadcast %cst_39 : f32 to vector<8x1xf32>
    %64 = arith.divf %62, %63 : vector<8x1xf32>
    %65 = vector.broadcast %64 : vector<8x1xf32> to vector<8x32xf32>
    %66 = arith.subf %60, %65 : vector<8x32xf32>
    %67 = arith.mulf %66, %66 : vector<8x32xf32>
    %cst_40 = arith.constant dense<0.000000e+00> : vector<8xf32>
    %68 = vector.multi_reduction <add>, %67, %cst_40 [1] : vector<8x32xf32> to vector<8xf32>
    %69 = vector.shape_cast %68 : vector<8xf32> to vector<8x1xf32>
    %cst_41 = arith.constant 3.200000e+01 : f32
    %70 = vector.broadcast %cst_41 : f32 to vector<8x1xf32>
    %71 = arith.divf %69, %70 : vector<8x1xf32>
    %cst_42 = arith.constant 9.99999974E-6 : f32
    %72 = vector.broadcast %cst_42 : f32 to vector<8x1xf32>
    %73 = arith.addf %71, %72 : vector<8x1xf32>
    %74 = math.rsqrt %73 : vector<8x1xf32>
    %75 = vector.broadcast %74 : vector<8x1xf32> to vector<8x32xf32>
    %76 = arith.mulf %66, %75 : vector<8x32xf32>
    %c0_43 = arith.constant 0 : index
    %c0_44 = arith.constant 0 : index
    %77 = vector.load %arg11[%c0_43, %c0_44] : memref<1x32xf32, #tpu.memory_space<vmem>>, vector<1x32xf32>
    %78 = vector.broadcast %77 : vector<1x32xf32> to vector<8x32xf32>
    %79 = arith.mulf %76, %78 : vector<8x32xf32>
    %c0_45 = arith.constant 0 : index
    %c0_46 = arith.constant 0 : index
    %80 = vector.load %arg12[%c0_45, %c0_46] : memref<1x32xf32, #tpu.memory_space<vmem>>, vector<1x32xf32>
    %81 = vector.broadcast %80 : vector<1x32xf32> to vector<8x32xf32>
    %82 = arith.addf %79, %81 : vector<8x32xf32>
    %83 = arith.truncf %82 : vector<8x32xf32> to vector<8x32xbf16>
    %84 = vector.shape_cast %83 : vector<8x32xbf16> to vector<1x8x32xbf16>
    %85 = vector.shape_cast %84 : vector<1x8x32xbf16> to vector<1x8x32xbf16>
    %86 = vector.broadcast %85 : vector<1x8x32xbf16> to vector<4x8x32xbf16>
    %87 = arith.truncf %3 : vector<8x32xf32> to vector<8x32xbf16>
    %88 = vector.shape_cast %87 : vector<8x32xbf16> to vector<1x8x32xbf16>
    %89 = vector.shape_cast %88 : vector<1x8x32xbf16> to vector<1x8x32xbf16>
    %90 = vector.broadcast %89 : vector<1x8x32xbf16> to vector<4x8x32xbf16>
    %c0_47 = arith.constant 0 : index
    %c0_48 = arith.constant 0 : index
    %c0_49 = arith.constant 0 : index
    %91 = vector.load %arg13[%c0_47, %c0_48, %c0_49] : memref<4x32x8xf32, #tpu.memory_space<vmem>>, vector<4x32x8xf32>
    %92 = arith.truncf %91 : vector<4x32x8xf32> to vector<4x32x8xbf16>
    "tpu.trace_start"() <{level = 10 : i32, message = "hsm,hmd->hsd"}> : () -> ()
    %cst_50 = arith.constant dense<0.000000e+00> : vector<4x8x8xf32>
    %93 = tpu.matmul %86, %92, %cst_50 {dimension_numbers = #tpu.dot_dimension_numbers<[2], [1], [1], [2], [0, 0, 0, 1, 1, 2], [0], [0]>} : vector<4x8x32xbf16>, vector<4x32x8xbf16>, vector<4x8x8xf32> -> vector<4x8x8xf32>
    "tpu.trace_stop"() : () -> ()
    %c0_51 = arith.constant 0 : index
    %c0_52 = arith.constant 0 : index
    %c0_53 = arith.constant 0 : index
    %94 = vector.load %arg14[%c0_51, %c0_52, %c0_53] : memref<4x1x8xf32, #tpu.memory_space<vmem>>, vector<4x1x8xf32>
    %95 = vector.broadcast %94 : vector<4x1x8xf32> to vector<4x8x8xf32>
    %96 = arith.addf %93, %95 : vector<4x8x8xf32>
    %c0_54 = arith.constant 0 : index
    %c0_55 = arith.constant 0 : index
    %c0_56 = arith.constant 0 : index
    %97 = vector.load %arg15[%c0_54, %c0_55, %c0_56] : memref<4x32x8xf32, #tpu.memory_space<vmem>>, vector<4x32x8xf32>
    %98 = arith.truncf %97 : vector<4x32x8xf32> to vector<4x32x8xbf16>
    "tpu.trace_start"() <{level = 10 : i32, message = "hsm,hmd->hsd"}> : () -> ()
    %cst_57 = arith.constant dense<0.000000e+00> : vector<4x8x8xf32>
    %99 = tpu.matmul %90, %98, %cst_57 {dimension_numbers = #tpu.dot_dimension_numbers<[2], [1], [1], [2], [0, 0, 0, 1, 1, 2], [0], [0]>} : vector<4x8x32xbf16>, vector<4x32x8xbf16>, vector<4x8x8xf32> -> vector<4x8x8xf32>
    "tpu.trace_stop"() : () -> ()
    %c0_58 = arith.constant 0 : index
    %c0_59 = arith.constant 0 : index
    %c0_60 = arith.constant 0 : index
    %100 = vector.load %arg16[%c0_58, %c0_59, %c0_60] : memref<4x1x8xf32, #tpu.memory_space<vmem>>, vector<4x1x8xf32>
    %101 = vector.broadcast %100 : vector<4x1x8xf32> to vector<4x8x8xf32>
    %102 = arith.addf %99, %101 : vector<4x8x8xf32>
    %c0_61 = arith.constant 0 : index
    %c0_62 = arith.constant 0 : index
    %c0_63 = arith.constant 0 : index
    %103 = vector.load %arg17[%c0_61, %c0_62, %c0_63] : memref<4x32x8xf32, #tpu.memory_space<vmem>>, vector<4x32x8xf32>
    %104 = arith.truncf %103 : vector<4x32x8xf32> to vector<4x32x8xbf16>
    "tpu.trace_start"() <{level = 10 : i32, message = "hsm,hmd->hsd"}> : () -> ()
    %cst_64 = arith.constant dense<0.000000e+00> : vector<4x8x8xf32>
    %105 = tpu.matmul %90, %104, %cst_64 {dimension_numbers = #tpu.dot_dimension_numbers<[2], [1], [1], [2], [0, 0, 0, 1, 1, 2], [0], [0]>} : vector<4x8x32xbf16>, vector<4x32x8xbf16>, vector<4x8x8xf32> -> vector<4x8x8xf32>
    "tpu.trace_stop"() : () -> ()
    %c0_65 = arith.constant 0 : index
    %c0_66 = arith.constant 0 : index
    %c0_67 = arith.constant 0 : index
    %106 = vector.load %arg18[%c0_65, %c0_66, %c0_67] : memref<4x1x8xf32, #tpu.memory_space<vmem>>, vector<4x1x8xf32>
    %107 = vector.broadcast %106 : vector<4x1x8xf32> to vector<4x8x8xf32>
    %108 = arith.addf %105, %107 : vector<4x8x8xf32>
    %109 = arith.truncf %96 : vector<4x8x8xf32> to vector<4x8x8xbf16>
    %110 = arith.truncf %102 : vector<4x8x8xf32> to vector<4x8x8xbf16>
    "tpu.trace_start"() <{level = 10 : i32, message = "hqd,hkd->hqk"}> : () -> ()
    %cst_68 = arith.constant dense<0.000000e+00> : vector<4x8x8xf32>
    %111 = tpu.matmul %109, %110, %cst_68 {dimension_numbers = #tpu.dot_dimension_numbers<[2], [2], [1], [1], [0, 0, 0, 1, 1, 1], [0], [0]>} : vector<4x8x8xbf16>, vector<4x8x8xbf16>, vector<4x8x8xf32> -> vector<4x8x8xf32>
    "tpu.trace_stop"() : () -> ()
    %cst_69 = arith.constant 0.353553385 : f32
    %112 = vector.broadcast %cst_69 : f32 to vector<4x8x8xf32>
    %113 = arith.mulf %111, %112 : vector<4x8x8xf32>
    %cst_70 = arith.constant dense<0xFF800000> : vector<4x8xf32>
    %114 = vector.multi_reduction <maximumf>, %113, %cst_70 [2] : vector<4x8x8xf32> to vector<4x8xf32>
    %115 = vector.shape_cast %114 : vector<4x8xf32> to vector<4x8x1xf32>
    %116 = vector.broadcast %115 : vector<4x8x1xf32> to vector<4x8x8xf32>
    %117 = arith.subf %113, %116 : vector<4x8x8xf32>
    %118 = math.exp %117 : vector<4x8x8xf32>
    %cst_71 = arith.constant dense<0.000000e+00> : vector<4x8xf32>
    %119 = vector.multi_reduction <add>, %118, %cst_71 [2] : vector<4x8x8xf32> to vector<4x8xf32>
    %120 = vector.shape_cast %119 : vector<4x8xf32> to vector<4x8x1xf32>
    %121 = tpu.reciprocal %120 {approx = true} : vector<4x8x1xf32> -> vector<4x8x1xf32>
    %122 = arith.mulf %120, %121 : vector<4x8x1xf32>
    %cst_72 = arith.constant 2.000000e+00 : f32
    %123 = vector.broadcast %cst_72 : f32 to vector<4x8x1xf32>
    %124 = arith.subf %123, %122 : vector<4x8x1xf32>
    %125 = arith.mulf %121, %124 : vector<4x8x1xf32>
    %126 = vector.broadcast %125 : vector<4x8x1xf32> to vector<4x8x8xf32>
    %127 = arith.mulf %118, %126 : vector<4x8x8xf32>
    %128 = arith.truncf %127 : vector<4x8x8xf32> to vector<4x8x8xbf16>
    %129 = arith.truncf %108 : vector<4x8x8xf32> to vector<4x8x8xbf16>
    "tpu.trace_start"() <{level = 10 : i32, message = "hqk,hkd->hqd"}> : () -> ()
    %cst_73 = arith.constant dense<0.000000e+00> : vector<4x8x8xf32>
    %130 = tpu.matmul %128, %129, %cst_73 {dimension_numbers = #tpu.dot_dimension_numbers<[2], [1], [1], [2], [0, 0, 0, 1, 1, 2], [0], [0]>} : vector<4x8x8xbf16>, vector<4x8x8xbf16>, vector<4x8x8xf32> -> vector<4x8x8xf32>
    "tpu.trace_stop"() : () -> ()
    %131 = arith.truncf %130 : vector<4x8x8xf32> to vector<4x8x8xbf16>
    %c0_74 = arith.constant 0 : index
    %c0_75 = arith.constant 0 : index
    %c0_76 = arith.constant 0 : index
    %132 = vector.load %arg19[%c0_74, %c0_75, %c0_76] : memref<4x8x32xf32, #tpu.memory_space<vmem>>, vector<4x8x32xf32>
    %133 = arith.truncf %132 : vector<4x8x32xf32> to vector<4x8x32xbf16>
    "tpu.trace_start"() <{level = 10 : i32, message = "hqd,hdm->hqm"}> : () -> ()
    %cst_77 = arith.constant dense<0.000000e+00> : vector<4x8x32xf32>
    %134 = tpu.matmul %131, %133, %cst_77 {dimension_numbers = #tpu.dot_dimension_numbers<[2], [1], [1], [2], [0, 0, 0, 1, 1, 2], [0], [0]>} : vector<4x8x8xbf16>, vector<4x8x32xbf16>, vector<4x8x32xf32> -> vector<4x8x32xf32>
    "tpu.trace_stop"() : () -> ()
    %cst_78 = arith.constant dense<0.000000e+00> : vector<8x32xf32>
    %135 = vector.multi_reduction <add>, %134, %cst_78 [0] : vector<4x8x32xf32> to vector<8x32xf32>
    %c0_79 = arith.constant 0 : index
    %c0_80 = arith.constant 0 : index
    %136 = vector.load %arg20[%c0_79, %c0_80] : memref<1x32xf32, #tpu.memory_space<vmem>>, vector<1x32xf32>
    %137 = vector.broadcast %136 : vector<1x32xf32> to vector<8x32xf32>
    %138 = arith.addf %135, %137 : vector<8x32xf32>
    %139 = arith.addf %82, %138 : vector<8x32xf32>
    %cst_81 = arith.constant dense<0.000000e+00> : vector<8xf32>
    %140 = vector.multi_reduction <add>, %139, %cst_81 [1] : vector<8x32xf32> to vector<8xf32>
    %141 = vector.shape_cast %140 : vector<8xf32> to vector<8x1xf32>
    %cst_82 = arith.constant 3.200000e+01 : f32
    %142 = vector.broadcast %cst_82 : f32 to vector<8x1xf32>
    %143 = arith.divf %141, %142 : vector<8x1xf32>
    %144 = vector.broadcast %143 : vector<8x1xf32> to vector<8x32xf32>
    %145 = arith.subf %139, %144 : vector<8x32xf32>
    %146 = arith.mulf %145, %145 : vector<8x32xf32>
    %cst_83 = arith.constant dense<0.000000e+00> : vector<8xf32>
    %147 = vector.multi_reduction <add>, %146, %cst_83 [1] : vector<8x32xf32> to vector<8xf32>
    %148 = vector.shape_cast %147 : vector<8xf32> to vector<8x1xf32>
    %cst_84 = arith.constant 3.200000e+01 : f32
    %149 = vector.broadcast %cst_84 : f32 to vector<8x1xf32>
    %150 = arith.divf %148, %149 : vector<8x1xf32>
    %cst_85 = arith.constant 9.99999974E-6 : f32
    %151 = vector.broadcast %cst_85 : f32 to vector<8x1xf32>
    %152 = arith.addf %150, %151 : vector<8x1xf32>
    %153 = math.rsqrt %152 : vector<8x1xf32>
    %154 = vector.broadcast %153 : vector<8x1xf32> to vector<8x32xf32>
    %155 = arith.mulf %145, %154 : vector<8x32xf32>
    %c0_86 = arith.constant 0 : index
    %c0_87 = arith.constant 0 : index
    %156 = vector.load %arg21[%c0_86, %c0_87] : memref<1x32xf32, #tpu.memory_space<vmem>>, vector<1x32xf32>
    %157 = vector.broadcast %156 : vector<1x32xf32> to vector<8x32xf32>
    %158 = arith.mulf %155, %157 : vector<8x32xf32>
    %c0_88 = arith.constant 0 : index
    %c0_89 = arith.constant 0 : index
    %159 = vector.load %arg22[%c0_88, %c0_89] : memref<1x32xf32, #tpu.memory_space<vmem>>, vector<1x32xf32>
    %160 = vector.broadcast %159 : vector<1x32xf32> to vector<8x32xf32>
    %161 = arith.addf %158, %160 : vector<8x32xf32>
    %162 = arith.truncf %161 : vector<8x32xf32> to vector<8x32xbf16>
    %c0_90 = arith.constant 0 : index
    %c0_91 = arith.constant 0 : index
    %163 = vector.load %arg23[%c0_90, %c0_91] : memref<32x64xf32, #tpu.memory_space<vmem>>, vector<32x64xf32>
    %164 = arith.truncf %163 : vector<32x64xf32> to vector<32x64xbf16>
    %cst_92 = arith.constant dense<0.000000e+00> : vector<8x64xf32>
    %165 = tpu.matmul %162, %164, %cst_92 {dimension_numbers = #tpu.dot_dimension_numbers<[1], [0], [0], [1], [0, 0, 1, 1], [], []>} : vector<8x32xbf16>, vector<32x64xbf16>, vector<8x64xf32> -> vector<8x64xf32>
    %c0_93 = arith.constant 0 : index
    %c0_94 = arith.constant 0 : index
    %166 = vector.load %arg24[%c0_93, %c0_94] : memref<1x64xf32, #tpu.memory_space<vmem>>, vector<1x64xf32>
    %167 = vector.broadcast %166 : vector<1x64xf32> to vector<8x64xf32>
    %168 = arith.addf %165, %167 : vector<8x64xf32>
    %cst_95 = arith.constant 0.000000e+00 : f32
    %169 = vector.broadcast %cst_95 : f32 to vector<8x64xf32>
    %170 = arith.maximumf %168, %169 : vector<8x64xf32>
    %171 = arith.truncf %170 : vector<8x64xf32> to vector<8x64xbf16>
    %c0_96 = arith.constant 0 : index
    %c0_97 = arith.constant 0 : index
    %172 = vector.load %arg25[%c0_96, %c0_97] : memref<64x32xf32, #tpu.memory_space<vmem>>, vector<64x32xf32>
    %173 = arith.truncf %172 : vector<64x32xf32> to vector<64x32xbf16>
    %cst_98 = arith.constant dense<0.000000e+00> : vector<8x32xf32>
    %174 = tpu.matmul %171, %173, %cst_98 {dimension_numbers = #tpu.dot_dimension_numbers<[1], [0], [0], [1], [0, 0, 1, 1], [], []>} : vector<8x64xbf16>, vector<64x32xbf16>, vector<8x32xf32> -> vector<8x32xf32>
    %c0_99 = arith.constant 0 : index
    %c0_100 = arith.constant 0 : index
    %175 = vector.load %arg26[%c0_99, %c0_100] : memref<1x32xf32, #tpu.memory_space<vmem>>, vector<1x32xf32>
    %176 = vector.broadcast %175 : vector<1x32xf32> to vector<8x32xf32>
    %177 = arith.addf %174, %176 : vector<8x32xf32>
    %178 = arith.addf %161, %177 : vector<8x32xf32>
    %cst_101 = arith.constant dense<0.000000e+00> : vector<8xf32>
    %179 = vector.multi_reduction <add>, %178, %cst_101 [1] : vector<8x32xf32> to vector<8xf32>
    %180 = vector.shape_cast %179 : vector<8xf32> to vector<8x1xf32>
    %cst_102 = arith.constant 3.200000e+01 : f32
    %181 = vector.broadcast %cst_102 : f32 to vector<8x1xf32>
    %182 = arith.divf %180, %181 : vector<8x1xf32>
    %183 = vector.broadcast %182 : vector<8x1xf32> to vector<8x32xf32>
    %184 = arith.subf %178, %183 : vector<8x32xf32>
    %185 = arith.mulf %184, %184 : vector<8x32xf32>
    %cst_103 = arith.constant dense<0.000000e+00> : vector<8xf32>
    %186 = vector.multi_reduction <add>, %185, %cst_103 [1] : vector<8x32xf32> to vector<8xf32>
    %187 = vector.shape_cast %186 : vector<8xf32> to vector<8x1xf32>
    %cst_104 = arith.constant 3.200000e+01 : f32
    %188 = vector.broadcast %cst_104 : f32 to vector<8x1xf32>
    %189 = arith.divf %187, %188 : vector<8x1xf32>
    %cst_105 = arith.constant 9.99999974E-6 : f32
    %190 = vector.broadcast %cst_105 : f32 to vector<8x1xf32>
    %191 = arith.addf %189, %190 : vector<8x1xf32>
    %192 = math.rsqrt %191 : vector<8x1xf32>
    %193 = vector.broadcast %192 : vector<8x1xf32> to vector<8x32xf32>
    %194 = arith.mulf %184, %193 : vector<8x32xf32>
    %c0_106 = arith.constant 0 : index
    %c0_107 = arith.constant 0 : index
    %195 = vector.load %arg27[%c0_106, %c0_107] : memref<1x32xf32, #tpu.memory_space<vmem>>, vector<1x32xf32>
    %196 = vector.broadcast %195 : vector<1x32xf32> to vector<8x32xf32>
    %197 = arith.mulf %194, %196 : vector<8x32xf32>
    %c0_108 = arith.constant 0 : index
    %c0_109 = arith.constant 0 : index
    %198 = vector.load %arg28[%c0_108, %c0_109] : memref<1x32xf32, #tpu.memory_space<vmem>>, vector<1x32xf32>
    %199 = vector.broadcast %198 : vector<1x32xf32> to vector<8x32xf32>
    %200 = arith.addf %197, %199 : vector<8x32xf32>
    %c0_110 = arith.constant 0 : index
    %c0_111 = arith.constant 0 : index
    %c0_112 = arith.constant 0 : index
    %201 = vector.load %arg29[%c0_110, %c0_111, %c0_112] : memref<1x8x32xf32, #tpu.memory_space<vmem>>, vector<1x8x32xf32>
    %202 = vector.shape_cast %201 : vector<1x8x32xf32> to vector<8x32xf32>
    %203 = vector.shape_cast %200 : vector<8x32xf32> to vector<1x8x32xf32>
    tpu.vector_store %arg29[%c0_110, %c0_111, %c0_112], %203 {strides = array<i32>} : memref<1x8x32xf32, #tpu.memory_space<vmem>>, vector<1x8x32xf32>,
    return
  }
  func.func @transform_0(%arg0: i32) -> (i32, i32, i32) {
    %c0_i32 = arith.constant 0 : i32
    %c0_i32_0 = arith.constant 0 : i32
    %c0_i32_1 = arith.constant 0 : i32
    return %arg0, %c0_i32, %c0_i32_0 : i32, i32, i32
  }
  func.func @transform_1(%arg0: i32) -> (i32, i32, i32) {
    %c0_i32 = arith.constant 0 : i32
    %c0_i32_0 = arith.constant 0 : i32
    %c0_i32_1 = arith.constant 0 : i32
    return %arg0, %c0_i32, %c0_i32_0 : i32, i32, i32
  }
  func.func @transform_2(%arg0: i32) -> (i32, i32, i32) {
    %c0_i32 = arith.constant 0 : i32
    %c0_i32_0 = arith.constant 0 : i32
    %c0_i32_1 = arith.constant 0 : i32
    %c0_i32_2 = arith.constant 0 : i32
    return %c0_i32, %c0_i32_0, %c0_i32_1 : i32, i32, i32
  }
  func.func @transform_3(%arg0: i32) -> (i32, i32, i32) {
    %c0_i32 = arith.constant 0 : i32
    %c0_i32_0 = arith.constant 0 : i32
    %c0_i32_1 = arith.constant 0 : i32
    %c0_i32_2 = arith.constant 0 : i32
    return %c0_i32, %c0_i32_0, %c0_i32_1 : i32, i32, i32
  }
  func.func @transform_4(%arg0: i32) -> (i32, i32, i32) {
    %c0_i32 = arith.constant 0 : i32
    %c0_i32_0 = arith.constant 0 : i32
    %c0_i32_1 = arith.constant 0 : i32
    %c0_i32_2 = arith.constant 0 : i32
    return %c0_i32, %c0_i32_0, %c0_i32_1 : i32, i32, i32
  }
  func.func @transform_5(%arg0: i32) -> (i32, i32, i32) {
    %c0_i32 = arith.constant 0 : i32
    %c0_i32_0 = arith.constant 0 : i32
    %c0_i32_1 = arith.constant 0 : i32
    %c0_i32_2 = arith.constant 0 : i32
    return %c0_i32, %c0_i32_0, %c0_i32_1 : i32, i32, i32
  }
  func.func @transform_6(%arg0: i32) -> (i32, i32, i32) {
    %c0_i32 = arith.constant 0 : i32
    %c0_i32_0 = arith.constant 0 : i32
    %c0_i32_1 = arith.constant 0 : i32
    %c0_i32_2 = arith.constant 0 : i32
    return %c0_i32, %c0_i32_0, %c0_i32_1 : i32, i32, i32
  }
  func.func @transform_7(%arg0: i32) -> (i32, i32, i32) {
    %c0_i32 = arith.constant 0 : i32
    %c0_i32_0 = arith.constant 0 : i32
    %c0_i32_1 = arith.constant 0 : i32
    %c0_i32_2 = arith.constant 0 : i32
    return %c0_i32, %c0_i32_0, %c0_i32_1 : i32, i32, i32
  }
  func.func @transform_8(%arg0: i32) -> (i32, i32, i32) {
    %c0_i32 = arith.constant 0 : i32
    %c0_i32_0 = arith.constant 0 : i32
    %c0_i32_1 = arith.constant 0 : i32
    %c0_i32_2 = arith.constant 0 : i32
    return %c0_i32, %c0_i32_0, %c0_i32_1 : i32, i32, i32
  }
  func.func @transform_9(%arg0: i32) -> (i32, i32) {
    %c0_i32 = arith.constant 0 : i32
    %c0_i32_0 = arith.constant 0 : i32
    %c0_i32_1 = arith.constant 0 : i32
    return %c0_i32, %c0_i32_0 : i32, i32
  }
  func.func @transform_10(%arg0: i32) -> (i32, i32) {
    %c0_i32 = arith.constant 0 : i32
    %c0_i32_0 = arith.constant 0 : i32
    %c0_i32_1 = arith.constant 0 : i32
    return %c0_i32, %c0_i32_0 : i32, i32
  }
  func.func @transform_11(%arg0: i32) -> (i32, i32) {
    %c0_i32 = arith.constant 0 : i32
    %c0_i32_0 = arith.constant 0 : i32
    %c0_i32_1 = arith.constant 0 : i32
    return %c0_i32, %c0_i32_0 : i32, i32
  }
  func.func @transform_12(%arg0: i32) -> (i32, i32, i32) {
    %c0_i32 = arith.constant 0 : i32
    %c0_i32_0 = arith.constant 0 : i32
    %c0_i32_1 = arith.constant 0 : i32
    %c0_i32_2 = arith.constant 0 : i32
    return %c0_i32, %c0_i32_0, %c0_i32_1 : i32, i32, i32
  }
  func.func @transform_13(%arg0: i32) -> (i32, i32, i32) {
    %c0_i32 = arith.constant 0 : i32
    %c0_i32_0 = arith.constant 0 : i32
    %c0_i32_1 = arith.constant 0 : i32
    %c0_i32_2 = arith.constant 0 : i32
    return %c0_i32, %c0_i32_0, %c0_i32_1 : i32, i32, i32
  }
  func.func @transform_14(%arg0: i32) -> (i32, i32, i32) {
    %c0_i32 = arith.constant 0 : i32
    %c0_i32_0 = arith.constant 0 : i32
    %c0_i32_1 = arith.constant 0 : i32
    %c0_i32_2 = arith.constant 0 : i32
    return %c0_i32, %c0_i32_0, %c0_i32_1 : i32, i32, i32
  }
  func.func @transform_15(%arg0: i32) -> (i32, i32, i32) {
    %c0_i32 = arith.constant 0 : i32
    %c0_i32_0 = arith.constant 0 : i32
    %c0_i32_1 = arith.constant 0 : i32
    %c0_i32_2 = arith.constant 0 : i32
    return %c0_i32, %c0_i32_0, %c0_i32_1 : i32, i32, i32
  }
  func.func @transform_16(%arg0: i32) -> (i32, i32, i32) {
    %c0_i32 = arith.constant 0 : i32
    %c0_i32_0 = arith.constant 0 : i32
    %c0_i32_1 = arith.constant 0 : i32
    %c0_i32_2 = arith.constant 0 : i32
    return %c0_i32, %c0_i32_0, %c0_i32_1 : i32, i32, i32
  }
  func.func @transform_17(%arg0: i32) -> (i32, i32, i32) {
    %c0_i32 = arith.constant 0 : i32
    %c0_i32_0 = arith.constant 0 : i32
    %c0_i32_1 = arith.constant 0 : i32
    %c0_i32_2 = arith.constant 0 : i32
    return %c0_i32, %c0_i32_0, %c0_i32_1 : i32, i32, i32
  }
  func.func @transform_18(%arg0: i32) -> (i32, i32, i32) {
    %c0_i32 = arith.constant 0 : i32
    %c0_i32_0 = arith.constant 0 : i32
    %c0_i32_1 = arith.constant 0 : i32
    %c0_i32_2 = arith.constant 0 : i32
    return %c0_i32, %c0_i32_0, %c0_i32_1 : i32, i32, i32
  }
  func.func @transform_19(%arg0: i32) -> (i32, i32) {
    %c0_i32 = arith.constant 0 : i32
    %c0_i32_0 = arith.constant 0 : i32
    %c0_i32_1 = arith.constant 0 : i32
    return %c0_i32, %c0_i32_0 : i32, i32
  }
  func.func @transform_20(%arg0: i32) -> (i32, i32) {
    %c0_i32 = arith.constant 0 : i32
    %c0_i32_0 = arith.constant 0 : i32
    %c0_i32_1 = arith.constant 0 : i32
    return %c0_i32, %c0_i32_0 : i32, i32
  }
  func.func @transform_21(%arg0: i32) -> (i32, i32) {
    %c0_i32 = arith.constant 0 : i32
    %c0_i32_0 = arith.constant 0 : i32
    %c0_i32_1 = arith.constant 0 : i32
    return %c0_i32, %c0_i32_0 : i32, i32
  }
  func.func @transform_22(%arg0: i32) -> (i32, i32) {
    %c0_i32 = arith.constant 0 : i32
    %c0_i32_0 = arith.constant 0 : i32
    %c0_i32_1 = arith.constant 0 : i32
    return %c0_i32, %c0_i32_0 : i32, i32
  }
  func.func @transform_23(%arg0: i32) -> (i32, i32) {
    %c0_i32 = arith.constant 0 : i32
    %c0_i32_0 = arith.constant 0 : i32
    %c0_i32_1 = arith.constant 0 : i32
    return %c0_i32, %c0_i32_0 : i32, i32
  }
  func.func @transform_24(%arg0: i32) -> (i32, i32) {
    %c0_i32 = arith.constant 0 : i32
    %c0_i32_0 = arith.constant 0 : i32
    %c0_i32_1 = arith.constant 0 : i32
    return %c0_i32, %c0_i32_0 : i32, i32
  }
  func.func @transform_25(%arg0: i32) -> (i32, i32) {
    %c0_i32 = arith.constant 0 : i32
    %c0_i32_0 = arith.constant 0 : i32
    %c0_i32_1 = arith.constant 0 : i32
    return %c0_i32, %c0_i32_0 : i32, i32
  }
  func.func @transform_26(%arg0: i32) -> (i32, i32) {
    %c0_i32 = arith.constant 0 : i32
    %c0_i32_0 = arith.constant 0 : i32
    %c0_i32_1 = arith.constant 0 : i32
    return %c0_i32, %c0_i32_0 : i32, i32
  }
  func.func @transform_27(%arg0: i32) -> (i32, i32) {
    %c0_i32 = arith.constant 0 : i32
    %c0_i32_0 = arith.constant 0 : i32
    %c0_i32_1 = arith.constant 0 : i32
    return %c0_i32, %c0_i32_0 : i32, i32
  }
  func.func @transform_28(%arg0: i32) -> (i32, i32, i32) {
    %c0_i32 = arith.constant 0 : i32
    %c0_i32_0 = arith.constant 0 : i32
    %c0_i32_1 = arith.constant 0 : i32
    return %arg0, %c0_i32, %c0_i32_0 : i32, i32, i32
  }
}

</mosaic_0001>

<llo_original>
// kernel: tpu_custom_call.1
$region0: #{tpu_custom_call.1}
  #allocation0 [shape = 'u32[]', space=smem, size = 0x4, offset = 0x4, fixed_abs, tag = 'smem constant byte address 0x4 - core index']
  #allocation1 [shape = 'u32[144,128]{1,0:T(1,128)}', space=vmem, size = 0x12000, scoped, tag = 'internal scratch']
  %s0 = inlined_call_operand.vmem [shape: f32[2,8,32], index: 0, kind: input, shape index: {}]
  %s1 = inlined_call_operand.vmem [shape: f32[2,8,32], index: 1, kind: input, shape index: {}]
  %s2 = inlined_call_operand.vmem [shape: f32[4,32,8], index: 2, kind: input, shape index: {}]
  %s3 = inlined_call_operand.vmem [shape: f32[4,1,8], index: 3, kind: input, shape index: {}]
  %s4 = inlined_call_operand.vmem [shape: f32[4,32,8], index: 4, kind: input, shape index: {}]
  %s5 = inlined_call_operand.vmem [shape: f32[4,1,8], index: 5, kind: input, shape index: {}]
  %s6 = inlined_call_operand.vmem [shape: f32[4,32,8], index: 6, kind: input, shape index: {}]
  %s7 = inlined_call_operand.vmem [shape: f32[4,1,8], index: 7, kind: input, shape index: {}]
  %s8 = inlined_call_operand.vmem [shape: f32[4,8,32], index: 8, kind: input, shape index: {}]
  %s9 = inlined_call_operand.vmem [shape: f32[1,32], index: 9, kind: input, shape index: {}]
  %s10 = inlined_call_operand.vmem [shape: f32[1,32], index: 10, kind: input, shape index: {}]
  %s11 = inlined_call_operand.vmem [shape: f32[1,32], index: 11, kind: input, shape index: {}]
  %s12 = inlined_call_operand.vmem [shape: f32[4,32,8], index: 12, kind: input, shape index: {}]
  %s13 = inlined_call_operand.vmem [shape: f32[4,1,8], index: 13, kind: input, shape index: {}]
  %s14 = inlined_call_operand.vmem [shape: f32[4,32,8], index: 14, kind: input, shape index: {}]
  %s15 = inlined_call_operand.vmem [shape: f32[4,1,8], index: 15, kind: input, shape index: {}]
  %s16 = inlined_call_operand.vmem [shape: f32[4,32,8], index: 16, kind: input, shape index: {}]
  %s17 = inlined_call_operand.vmem [shape: f32[4,1,8], index: 17, kind: input, shape index: {}]
  %s18 = inlined_call_operand.vmem [shape: f32[4,8,32], index: 18, kind: input, shape index: {}]
  %s19 = inlined_call_operand.vmem [shape: f32[1,32], index: 19, kind: input, shape index: {}]
  %s20 = inlined_call_operand.vmem [shape: f32[1,32], index: 20, kind: input, shape index: {}]
  %s21 = inlined_call_operand.vmem [shape: f32[1,32], index: 21, kind: input, shape index: {}]
  %s22 = inlined_call_operand.vmem [shape: f32[32,64], index: 22, kind: input, shape index: {}]
  %s23 = inlined_call_operand.vmem [shape: f32[1,64], index: 23, kind: input, shape index: {}]
  %s24 = inlined_call_operand.vmem [shape: f32[64,32], index: 24, kind: input, shape index: {}]
  %s25 = inlined_call_operand.vmem [shape: f32[1,32], index: 25, kind: input, shape index: {}]
  %s26 = inlined_call_operand.vmem [shape: f32[1,32], index: 26, kind: input, shape index: {}]
  %s27 = inlined_call_operand.vmem [shape: f32[1,32], index: 27, kind: input, shape index: {}]
  %s28 = inlined_call_operand.hbm [shape: f32[2,8,32], index: 28, kind: output, shape index: {}]
  %s29 = sld [smem:[#allocation0]]
  $region145: #{tpu_custom_call.1} parent=0
    _
  %s31 = ssub.s32 1, %s29
  %s32 = scalar_select 0, %s31, %s29
  $region1: #{tpu_custom_call.1} parent=0
    #allocation2 [shape = 'u8[8192]{0}', space=vmem, size = 0x2000, scoped, tag = 'output window, operand 0']
    #allocation3 [shape = 's32[2]{0}', space=sflag, size = 0x8, scoped, tag = 'scoped memory for tpu_custom_call.1']
    %33 = vsyncpa [#allocation3], 0
    %s34 = scalar_lea.sflag [#allocation3], 1
    %35 = vsyncpa %s34, 0
    loop: start=0, step=1, limit=4
    $region2: #{tpu_custom_call.1} parent=1 // loop_pre_header
      _
    $region3: #{tpu_custom_call.1} parent=1 // loop_header
      %s37 = sphi 0, %s41
      %p38 = scmp.ge.s32.totalorder %s37, 4
      %s47 = sphi 0, %s49
      %s50 = sphi 0, %s47
      %s51 = sphi 0, %s50
      %s67 = sphi 0, %s51
      %s73 = sphi 0, %s75
      %s76 = sphi 0, %s73
      %s77 = sphi 0, %s76
      %s93 = sphi 0, %s77
      %s97 = sphi 0, %s97
      %s99 = sphi 0, %s97
      %s100 = sphi 0, %s99
      %s114 = sphi 0, %s100
      %s118 = sphi 0, %s118
      %s120 = sphi 0, %s118
      %s121 = sphi 0, %s120
      %s135 = sphi 0, %s121
      %s139 = sphi 0, %s139
      %s141 = sphi 0, %s139
      %s142 = sphi 0, %s141
      %s156 = sphi 0, %s142
      %s160 = sphi 0, %s160
      %s162 = sphi 0, %s160
      %s163 = sphi 0, %s162
      %s177 = sphi 0, %s163
      %s181 = sphi 0, %s181
      %s183 = sphi 0, %s181
      %s184 = sphi 0, %s183
      %s198 = sphi 0, %s184
      %s202 = sphi 0, %s202
      %s204 = sphi 0, %s202
      %s205 = sphi 0, %s204
      %s219 = sphi 0, %s205
      %s223 = sphi 0, %s223
      %s225 = sphi 0, %s223
      %s226 = sphi 0, %s225
      %s240 = sphi 0, %s226
      %s244 = sphi 0, %s244
      %s246 = sphi 0, %s244
      %s247 = sphi 0, %s246
      %s261 = sphi 0, %s247
      %s265 = sphi 0, %s265
      %s267 = sphi 0, %s265
      %s268 = sphi 0, %s267
      %s282 = sphi 0, %s268
      %s286 = sphi 0, %s286
      %s288 = sphi 0, %s286
      %s289 = sphi 0, %s288
      %s303 = sphi 0, %s289
      %s307 = sphi 0, %s307
      %s309 = sphi 0, %s307
      %s310 = sphi 0, %s309
      %s324 = sphi 0, %s310
      %s328 = sphi 0, %s328
      %s330 = sphi 0, %s328
      %s331 = sphi 0, %s330
      %s345 = sphi 0, %s331
      %s349 = sphi 0, %s349
      %s351 = sphi 0, %s349
      %s352 = sphi 0, %s351
      %s366 = sphi 0, %s352
      %s370 = sphi 0, %s370
      %s372 = sphi 0, %s370
      %s373 = sphi 0, %s372
      %s387 = sphi 0, %s373
      %s391 = sphi 0, %s391
      %s393 = sphi 0, %s391
      %s394 = sphi 0, %s393
      %s408 = sphi 0, %s394
      %s412 = sphi 0, %s412
      %s414 = sphi 0, %s412
      %s415 = sphi 0, %s414
      %s429 = sphi 0, %s415
      %s433 = sphi 0, %s433
      %s435 = sphi 0, %s433
      %s436 = sphi 0, %s435
      %s450 = sphi 0, %s436
      %s454 = sphi 0, %s454
      %s456 = sphi 0, %s454
      %s457 = sphi 0, %s456
      %s471 = sphi 0, %s457
      %s475 = sphi 0, %s475
      %s477 = sphi 0, %s475
      %s478 = sphi 0, %s477
      %s492 = sphi 0, %s478
      %s496 = sphi 0, %s496
      %s498 = sphi 0, %s496
      %s499 = sphi 0, %s498
      %s513 = sphi 0, %s499
      %s517 = sphi 0, %s517
      %s519 = sphi 0, %s517
      %s520 = sphi 0, %s519
      %s534 = sphi 0, %s520
      %s538 = sphi 0, %s538
      %s540 = sphi 0, %s538
      %s541 = sphi 0, %s540
      %s555 = sphi 0, %s541
      %s559 = sphi 0, %s559
      %s561 = sphi 0, %s559
      %s562 = sphi 0, %s561
      %s576 = sphi 0, %s562
      %s580 = sphi 0, %s580
      %s582 = sphi 0, %s580
      %s583 = sphi 0, %s582
      %s597 = sphi 0, %s583
      %s601 = sphi 0, %s601
      %s603 = sphi 0, %s601
      %s604 = sphi 0, %s603
      %s618 = sphi 0, %s604
      %s622 = sphi 0, %s622
      %s624 = sphi 0, %s622
      %s625 = sphi 0, %s624
      %s639 = sphi 0, %s625
      %s645 = sphi 0, %s647
      %s648 = sphi 0, %s645
      %s649 = sphi 0, %s648
      %s665 = sphi 0, %s649
    $region4: #{tpu_custom_call.1} parent=1 // loop_header_branch
      %40 = sbr.rel (%p38) target = $region8
    $region5: #{tpu_custom_call.1} parent=1 // loop_body
      %s42 = ssub.s32 %s37, 1
      %s43 = ssub.s32 %s37, 2
      %s44 = sadd.s32 %s37, 1
      %s45 = ssub.s32 %s37, %s44
      %p46 = scmp.eq.s32.totalorder %s45, 0
      %s48 = sadd.s32 %s47, 1
      %s49 = scalar_select %p46, %s47, %s48
      %p52 = pneg %p46
      %p53 = scmp.eq.s32.totalorder %s37, 1
      %p54 = por %p52, %p53
      %p55 = scmp.ne.s32.totalorder %s47, %s50
      %p56 = scmp.eq.s32.totalorder %s37, 0
      %p57 = por %p55, %p56
      %p58 = scmp.ne.s32.totalorder %s47, %s50
      %p59 = scmp.eq.s32.totalorder %s42, 1
      %p60 = por %p58, %p59
      %p61 = scmp.ne.s32.totalorder %s50, %s51
      %p62 = scmp.eq.s32.totalorder %s42, 0
      %p63 = por %p61, %p62
      %p64 = scmp.ne.s32.totalorder %s50, %s51
      %p65 = scmp.eq.s32.totalorder %s43, 1
      %p66 = por %p64, %p65
      %p68 = scmp.ne.s32.totalorder %s51, %s67
      %p69 = scmp.eq.s32.totalorder %s43, 0
      %p70 = por %p68, %p69
      %s71 = ssub.s32 %s37, %s44
      %p72 = scmp.eq.s32.totalorder %s71, 0
      %s74 = sadd.s32 %s73, 1
      %s75 = scalar_select %p72, %s73, %s74
      %p78 = pneg %p72
      %p79 = scmp.eq.s32.totalorder %s37, 1
      %p80 = por %p78, %p79
      %p81 = scmp.ne.s32.totalorder %s73, %s76
      %p82 = scmp.eq.s32.totalorder %s37, 0
      %p83 = por %p81, %p82
      %p84 = scmp.ne.s32.totalorder %s73, %s76
      %p85 = scmp.eq.s32.totalorder %s42, 1
      %p86 = por %p84, %p85
      %p87 = scmp.ne.s32.totalorder %s76, %s77
      %p88 = scmp.eq.s32.totalorder %s42, 0
      %p89 = por %p87, %p88
      %p90 = scmp.ne.s32.totalorder %s76, %s77
      %p91 = scmp.eq.s32.totalorder %s43, 1
      %p92 = por %p90, %p91
      %p94 = scmp.ne.s32.totalorder %s77, %s93
      %p95 = scmp.eq.s32.totalorder %s43, 0
      %p96 = por %p94, %p95
      %s98 = sadd.s32 %s97, 1
      %p101 = scmp.eq.s32.totalorder %s37, 1
      %p102 = scmp.ne.s32.totalorder %s97, %s99
      %p103 = scmp.eq.s32.totalorder %s37, 0
      %p104 = por %p102, %p103
      %p105 = scmp.ne.s32.totalorder %s97, %s99
      %p106 = scmp.eq.s32.totalorder %s42, 1
      %p107 = por %p105, %p106
      %p108 = scmp.ne.s32.totalorder %s99, %s100
      %p109 = scmp.eq.s32.totalorder %s42, 0
      %p110 = por %p108, %p109
      %p111 = scmp.ne.s32.totalorder %s99, %s100
      %p112 = scmp.eq.s32.totalorder %s43, 1
      %p113 = por %p111, %p112
      %p115 = scmp.ne.s32.totalorder %s100, %s114
      %p116 = scmp.eq.s32.totalorder %s43, 0
      %p117 = por %p115, %p116
      %s119 = sadd.s32 %s118, 1
      %p122 = scmp.eq.s32.totalorder %s37, 1
      %p123 = scmp.ne.s32.totalorder %s118, %s120
      %p124 = scmp.eq.s32.totalorder %s37, 0
      %p125 = por %p123, %p124
      %p126 = scmp.ne.s32.totalorder %s118, %s120
      %p127 = scmp.eq.s32.totalorder %s42, 1
      %p128 = por %p126, %p127
      %p129 = scmp.ne.s32.totalorder %s120, %s121
      %p130 = scmp.eq.s32.totalorder %s42, 0
      %p131 = por %p129, %p130
      %p132 = scmp.ne.s32.totalorder %s120, %s121
      %p133 = scmp.eq.s32.totalorder %s43, 1
      %p134 = por %p132, %p133
      %p136 = scmp.ne.s32.totalorder %s121, %s135
      %p137 = scmp.eq.s32.totalorder %s43, 0
      %p138 = por %p136, %p137
      %s140 = sadd.s32 %s139, 1
      %p143 = scmp.eq.s32.totalorder %s37, 1
      %p144 = scmp.ne.s32.totalorder %s139, %s141
      %p145 = scmp.eq.s32.totalorder %s37, 0
      %p146 = por %p144, %p145
      %p147 = scmp.ne.s32.totalorder %s139, %s141
      %p148 = scmp.eq.s32.totalorder %s42, 1
      %p149 = por %p147, %p148
      %p150 = scmp.ne.s32.totalorder %s141, %s142
      %p151 = scmp.eq.s32.totalorder %s42, 0
      %p152 = por %p150, %p151
      %p153 = scmp.ne.s32.totalorder %s141, %s142
      %p154 = scmp.eq.s32.totalorder %s43, 1
      %p155 = por %p153, %p154
      %p157 = scmp.ne.s32.totalorder %s142, %s156
      %p158 = scmp.eq.s32.totalorder %s43, 0
      %p159 = por %p157, %p158
      %s161 = sadd.s32 %s160, 1
      %p164 = scmp.eq.s32.totalorder %s37, 1
      %p165 = scmp.ne.s32.totalorder %s160, %s162
      %p166 = scmp.eq.s32.totalorder %s37, 0
      %p167 = por %p165, %p166
      %p168 = scmp.ne.s32.totalorder %s160, %s162
      %p169 = scmp.eq.s32.totalorder %s42, 1
      %p170 = por %p168, %p169
      %p171 = scmp.ne.s32.totalorder %s162, %s163
      %p172 = scmp.eq.s32.totalorder %s42, 0
      %p173 = por %p171, %p172
      %p174 = scmp.ne.s32.totalorder %s162, %s163
      %p175 = scmp.eq.s32.totalorder %s43, 1
      %p176 = por %p174, %p175
      %p178 = scmp.ne.s32.totalorder %s163, %s177
      %p179 = scmp.eq.s32.totalorder %s43, 0
      %p180 = por %p178, %p179
      %s182 = sadd.s32 %s181, 1
      %p185 = scmp.eq.s32.totalorder %s37, 1
      %p186 = scmp.ne.s32.totalorder %s181, %s183
      %p187 = scmp.eq.s32.totalorder %s37, 0
      %p188 = por %p186, %p187
      %p189 = scmp.ne.s32.totalorder %s181, %s183
      %p190 = scmp.eq.s32.totalorder %s42, 1
      %p191 = por %p189, %p190
      %p192 = scmp.ne.s32.totalorder %s183, %s184
      %p193 = scmp.eq.s32.totalorder %s42, 0
      %p194 = por %p192, %p193
      %p195 = scmp.ne.s32.totalorder %s183, %s184
      %p196 = scmp.eq.s32.totalorder %s43, 1
      %p197 = por %p195, %p196
      %p199 = scmp.ne.s32.totalorder %s184, %s198
      %p200 = scmp.eq.s32.totalorder %s43, 0
      %p201 = por %p199, %p200
      %s203 = sadd.s32 %s202, 1
      %p206 = scmp.eq.s32.totalorder %s37, 1
      %p207 = scmp.ne.s32.totalorder %s202, %s204
      %p208 = scmp.eq.s32.totalorder %s37, 0
      %p209 = por %p207, %p208
      %p210 = scmp.ne.s32.totalorder %s202, %s204
      %p211 = scmp.eq.s32.totalorder %s42, 1
      %p212 = por %p210, %p211
      %p213 = scmp.ne.s32.totalorder %s204, %s205
      %p214 = scmp.eq.s32.totalorder %s42, 0
      %p215 = por %p213, %p214
      %p216 = scmp.ne.s32.totalorder %s204, %s205
      %p217 = scmp.eq.s32.totalorder %s43, 1
      %p218 = por %p216, %p217
      %p220 = scmp.ne.s32.totalorder %s205, %s219
      %p221 = scmp.eq.s32.totalorder %s43, 0
      %p222 = por %p220, %p221
      %s224 = sadd.s32 %s223, 1
      %p227 = scmp.eq.s32.totalorder %s37, 1
      %p228 = scmp.ne.s32.totalorder %s223, %s225
      %p229 = scmp.eq.s32.totalorder %s37, 0
      %p230 = por %p228, %p229
      %p231 = scmp.ne.s32.totalorder %s223, %s225
      %p232 = scmp.eq.s32.totalorder %s42, 1
      %p233 = por %p231, %p232
      %p234 = scmp.ne.s32.totalorder %s225, %s226
      %p235 = scmp.eq.s32.totalorder %s42, 0
      %p236 = por %p234, %p235
      %p237 = scmp.ne.s32.totalorder %s225, %s226
      %p238 = scmp.eq.s32.totalorder %s43, 1
      %p239 = por %p237, %p238
      %p241 = scmp.ne.s32.totalorder %s226, %s240
      %p242 = scmp.eq.s32.totalorder %s43, 0
      %p243 = por %p241, %p242
      %s245 = sadd.s32 %s244, 1
      %p248 = scmp.eq.s32.totalorder %s37, 1
      %p249 = scmp.ne.s32.totalorder %s244, %s246
      %p250 = scmp.eq.s32.totalorder %s37, 0
      %p251 = por %p249, %p250
      %p252 = scmp.ne.s32.totalorder %s244, %s246
      %p253 = scmp.eq.s32.totalorder %s42, 1
      %p254 = por %p252, %p253
      %p255 = scmp.ne.s32.totalorder %s246, %s247
      %p256 = scmp.eq.s32.totalorder %s42, 0
      %p257 = por %p255, %p256
      %p258 = scmp.ne.s32.totalorder %s246, %s247
      %p259 = scmp.eq.s32.totalorder %s43, 1
      %p260 = por %p258, %p259
      %p262 = scmp.ne.s32.totalorder %s247, %s261
      %p263 = scmp.eq.s32.totalorder %s43, 0
      %p264 = por %p262, %p263
      %s266 = sadd.s32 %s265, 1
      %p269 = scmp.eq.s32.totalorder %s37, 1
      %p270 = scmp.ne.s32.totalorder %s265, %s267
      %p271 = scmp.eq.s32.totalorder %s37, 0
      %p272 = por %p270, %p271
      %p273 = scmp.ne.s32.totalorder %s265, %s267
      %p274 = scmp.eq.s32.totalorder %s42, 1
      %p275 = por %p273, %p274
      %p276 = scmp.ne.s32.totalorder %s267, %s268
      %p277 = scmp.eq.s32.totalorder %s42, 0
      %p278 = por %p276, %p277
      %p279 = scmp.ne.s32.totalorder %s267, %s268
      %p280 = scmp.eq.s32.totalorder %s43, 1
      %p281 = por %p279, %p280
      %p283 = scmp.ne.s32.totalorder %s268, %s282
      %p284 = scmp.eq.s32.totalorder %s43, 0
      %p285 = por %p283, %p284
      %s287 = sadd.s32 %s286, 1
      %p290 = scmp.eq.s32.totalorder %s37, 1
      %p291 = scmp.ne.s32.totalorder %s286, %s288
      %p292 = scmp.eq.s32.totalorder %s37, 0
      %p293 = por %p291, %p292
      %p294 = scmp.ne.s32.totalorder %s286, %s288
      %p295 = scmp.eq.s32.totalorder %s42, 1
      %p296 = por %p294, %p295
      %p297 = scmp.ne.s32.totalorder %s288, %s289
      %p298 = scmp.eq.s32.totalorder %s42, 0
      %p299 = por %p297, %p298
      %p300 = scmp.ne.s32.totalorder %s288, %s289
      %p301 = scmp.eq.s32.totalorder %s43, 1
      %p302 = por %p300, %p301
      %p304 = scmp.ne.s32.totalorder %s289, %s303
      %p305 = scmp.eq.s32.totalorder %s43, 0
      %p306 = por %p304, %p305
      %s308 = sadd.s32 %s307, 1
      %p311 = scmp.eq.s32.totalorder %s37, 1
      %p312 = scmp.ne.s32.totalorder %s307, %s309
      %p313 = scmp.eq.s32.totalorder %s37, 0
      %p314 = por %p312, %p313
      %p315 = scmp.ne.s32.totalorder %s307, %s309
      %p316 = scmp.eq.s32.totalorder %s42, 1
      %p317 = por %p315, %p316
      %p318 = scmp.ne.s32.totalorder %s309, %s310
      %p319 = scmp.eq.s32.totalorder %s42, 0
      %p320 = por %p318, %p319
      %p321 = scmp.ne.s32.totalorder %s309, %s310
      %p322 = scmp.eq.s32.totalorder %s43, 1
      %p323 = por %p321, %p322
      %p325 = scmp.ne.s32.totalorder %s310, %s324
      %p326 = scmp.eq.s32.totalorder %s43, 0
      %p327 = por %p325, %p326
      %s329 = sadd.s32 %s328, 1
      %p332 = scmp.eq.s32.totalorder %s37, 1
      %p333 = scmp.ne.s32.totalorder %s328, %s330
      %p334 = scmp.eq.s32.totalorder %s37, 0
      %p335 = por %p333, %p334
      %p336 = scmp.ne.s32.totalorder %s328, %s330
      %p337 = scmp.eq.s32.totalorder %s42, 1
      %p338 = por %p336, %p337
      %p339 = scmp.ne.s32.totalorder %s330, %s331
      %p340 = scmp.eq.s32.totalorder %s42, 0
      %p341 = por %p339, %p340
      %p342 = scmp.ne.s32.totalorder %s330, %s331
      %p343 = scmp.eq.s32.totalorder %s43, 1
      %p344 = por %p342, %p343
      %p346 = scmp.ne.s32.totalorder %s331, %s345
      %p347 = scmp.eq.s32.totalorder %s43, 0
      %p348 = por %p346, %p347
      %s350 = sadd.s32 %s349, 1
      %p353 = scmp.eq.s32.totalorder %s37, 1
      %p354 = scmp.ne.s32.totalorder %s349, %s351
      %p355 = scmp.eq.s32.totalorder %s37, 0
      %p356 = por %p354, %p355
      %p357 = scmp.ne.s32.totalorder %s349, %s351
      %p358 = scmp.eq.s32.totalorder %s42, 1
      %p359 = por %p357, %p358
      %p360 = scmp.ne.s32.totalorder %s351, %s352
      %p361 = scmp.eq.s32.totalorder %s42, 0
      %p362 = por %p360, %p361
      %p363 = scmp.ne.s32.totalorder %s351, %s352
      %p364 = scmp.eq.s32.totalorder %s43, 1
      %p365 = por %p363, %p364
      %p367 = scmp.ne.s32.totalorder %s352, %s366
      %p368 = scmp.eq.s32.totalorder %s43, 0
      %p369 = por %p367, %p368
      %s371 = sadd.s32 %s370, 1
      %p374 = scmp.eq.s32.totalorder %s37, 1
      %p375 = scmp.ne.s32.totalorder %s370, %s372
      %p376 = scmp.eq.s32.totalorder %s37, 0
      %p377 = por %p375, %p376
      %p378 = scmp.ne.s32.totalorder %s370, %s372
      %p379 = scmp.eq.s32.totalorder %s42, 1
      %p380 = por %p378, %p379
      %p381 = scmp.ne.s32.totalorder %s372, %s373
      %p382 = scmp.eq.s32.totalorder %s42, 0
      %p383 = por %p381, %p382
      %p384 = scmp.ne.s32.totalorder %s372, %s373
      %p385 = scmp.eq.s32.totalorder %s43, 1
      %p386 = por %p384, %p385
      %p388 = scmp.ne.s32.totalorder %s373, %s387
      %p389 = scmp.eq.s32.totalorder %s43, 0
      %p390 = por %p388, %p389
      %s392 = sadd.s32 %s391, 1
      %p395 = scmp.eq.s32.totalorder %s37, 1
      %p396 = scmp.ne.s32.totalorder %s391, %s393
      %p397 = scmp.eq.s32.totalorder %s37, 0
      %p398 = por %p396, %p397
      %p399 = scmp.ne.s32.totalorder %s391, %s393
      %p400 = scmp.eq.s32.totalorder %s42, 1
      %p401 = por %p399, %p400
      %p402 = scmp.ne.s32.totalorder %s393, %s394
      %p403 = scmp.eq.s32.totalorder %s42, 0
      %p404 = por %p402, %p403
      %p405 = scmp.ne.s32.totalorder %s393, %s394
      %p406 = scmp.eq.s32.totalorder %s43, 1
      %p407 = por %p405, %p406
      %p409 = scmp.ne.s32.totalorder %s394, %s408
      %p410 = scmp.eq.s32.totalorder %s43, 0
      %p411 = por %p409, %p410
      %s413 = sadd.s32 %s412, 1
      %p416 = scmp.eq.s32.totalorder %s37, 1
      %p417 = scmp.ne.s32.totalorder %s412, %s414
      %p418 = scmp.eq.s32.totalorder %s37, 0
      %p419 = por %p417, %p418
      %p420 = scmp.ne.s32.totalorder %s412, %s414
      %p421 = scmp.eq.s32.totalorder %s42, 1
      %p422 = por %p420, %p421
      %p423 = scmp.ne.s32.totalorder %s414, %s415
      %p424 = scmp.eq.s32.totalorder %s42, 0
      %p425 = por %p423, %p424
      %p426 = scmp.ne.s32.totalorder %s414, %s415
      %p427 = scmp.eq.s32.totalorder %s43, 1
      %p428 = por %p426, %p427
      %p430 = scmp.ne.s32.totalorder %s415, %s429
      %p431 = scmp.eq.s32.totalorder %s43, 0
      %p432 = por %p430, %p431
      %s434 = sadd.s32 %s433, 1
      %p437 = scmp.eq.s32.totalorder %s37, 1
      %p438 = scmp.ne.s32.totalorder %s433, %s435
      %p439 = scmp.eq.s32.totalorder %s37, 0
      %p440 = por %p438, %p439
      %p441 = scmp.ne.s32.totalorder %s433, %s435
      %p442 = scmp.eq.s32.totalorder %s42, 1
      %p443 = por %p441, %p442
      %p444 = scmp.ne.s32.totalorder %s435, %s436
      %p445 = scmp.eq.s32.totalorder %s42, 0
      %p446 = por %p444, %p445
      %p447 = scmp.ne.s32.totalorder %s435, %s436
      %p448 = scmp.eq.s32.totalorder %s43, 1
      %p449 = por %p447, %p448
      %p451 = scmp.ne.s32.totalorder %s436, %s450
      %p452 = scmp.eq.s32.totalorder %s43, 0
      %p453 = por %p451, %p452
      %s455 = sadd.s32 %s454, 1
      %p458 = scmp.eq.s32.totalorder %s37, 1
      %p459 = scmp.ne.s32.totalorder %s454, %s456
      %p460 = scmp.eq.s32.totalorder %s37, 0
      %p461 = por %p459, %p460
      %p462 = scmp.ne.s32.totalorder %s454, %s456
      %p463 = scmp.eq.s32.totalorder %s42, 1
      %p464 = por %p462, %p463
      %p465 = scmp.ne.s32.totalorder %s456, %s457
      %p466 = scmp.eq.s32.totalorder %s42, 0
      %p467 = por %p465, %p466
      %p468 = scmp.ne.s32.totalorder %s456, %s457
      %p469 = scmp.eq.s32.totalorder %s43, 1
      %p470 = por %p468, %p469
      %p472 = scmp.ne.s32.totalorder %s457, %s471
      %p473 = scmp.eq.s32.totalorder %s43, 0
      %p474 = por %p472, %p473
      %s476 = sadd.s32 %s475, 1
      %p479 = scmp.eq.s32.totalorder %s37, 1
      %p480 = scmp.ne.s32.totalorder %s475, %s477
      %p481 = scmp.eq.s32.totalorder %s37, 0
      %p482 = por %p480, %p481
      %p483 = scmp.ne.s32.totalorder %s475, %s477
      %p484 = scmp.eq.s32.totalorder %s42, 1
      %p485 = por %p483, %p484
      %p486 = scmp.ne.s32.totalorder %s477, %s478
      %p487 = scmp.eq.s32.totalorder %s42, 0
      %p488 = por %p486, %p487
      %p489 = scmp.ne.s32.totalorder %s477, %s478
      %p490 = scmp.eq.s32.totalorder %s43, 1
      %p491 = por %p489, %p490
      %p493 = scmp.ne.s32.totalorder %s478, %s492
      %p494 = scmp.eq.s32.totalorder %s43, 0
      %p495 = por %p493, %p494
      %s497 = sadd.s32 %s496, 1
      %p500 = scmp.eq.s32.totalorder %s37, 1
      %p501 = scmp.ne.s32.totalorder %s496, %s498
      %p502 = scmp.eq.s32.totalorder %s37, 0
      %p503 = por %p501, %p502
      %p504 = scmp.ne.s32.totalorder %s496, %s498
      %p505 = scmp.eq.s32.totalorder %s42, 1
      %p506 = por %p504, %p505
      %p507 = scmp.ne.s32.totalorder %s498, %s499
      %p508 = scmp.eq.s32.totalorder %s42, 0
      %p509 = por %p507, %p508
      %p510 = scmp.ne.s32.totalorder %s498, %s499
      %p511 = scmp.eq.s32.totalorder %s43, 1
      %p512 = por %p510, %p511
      %p514 = scmp.ne.s32.totalorder %s499, %s513
      %p515 = scmp.eq.s32.totalorder %s43, 0
      %p516 = por %p514, %p515
      %s518 = sadd.s32 %s517, 1
      %p521 = scmp.eq.s32.totalorder %s37, 1
      %p522 = scmp.ne.s32.totalorder %s517, %s519
      %p523 = scmp.eq.s32.totalorder %s37, 0
      %p524 = por %p522, %p523
      %p525 = scmp.ne.s32.totalorder %s517, %s519
      %p526 = scmp.eq.s32.totalorder %s42, 1
      %p527 = por %p525, %p526
      %p528 = scmp.ne.s32.totalorder %s519, %s520
      %p529 = scmp.eq.s32.totalorder %s42, 0
      %p530 = por %p528, %p529
      %p531 = scmp.ne.s32.totalorder %s519, %s520
      %p532 = scmp.eq.s32.totalorder %s43, 1
      %p533 = por %p531, %p532
      %p535 = scmp.ne.s32.totalorder %s520, %s534
      %p536 = scmp.eq.s32.totalorder %s43, 0
      %p537 = por %p535, %p536
      %s539 = sadd.s32 %s538, 1
      %p542 = scmp.eq.s32.totalorder %s37, 1
      %p543 = scmp.ne.s32.totalorder %s538, %s540
      %p544 = scmp.eq.s32.totalorder %s37, 0
      %p545 = por %p543, %p544
      %p546 = scmp.ne.s32.totalorder %s538, %s540
      %p547 = scmp.eq.s32.totalorder %s42, 1
      %p548 = por %p546, %p547
      %p549 = scmp.ne.s32.totalorder %s540, %s541
      %p550 = scmp.eq.s32.totalorder %s42, 0
      %p551 = por %p549, %p550
      %p552 = scmp.ne.s32.totalorder %s540, %s541
      %p553 = scmp.eq.s32.totalorder %s43, 1
      %p554 = por %p552, %p553
      %p556 = scmp.ne.s32.totalorder %s541, %s555
      %p557 = scmp.eq.s32.totalorder %s43, 0
      %p558 = por %p556, %p557
      %s560 = sadd.s32 %s559, 1
      %p563 = scmp.eq.s32.totalorder %s37, 1
      %p564 = scmp.ne.s32.totalorder %s559, %s561
      %p565 = scmp.eq.s32.totalorder %s37, 0
      %p566 = por %p564, %p565
      %p567 = scmp.ne.s32.totalorder %s559, %s561
      %p568 = scmp.eq.s32.totalorder %s42, 1
      %p569 = por %p567, %p568
      %p570 = scmp.ne.s32.totalorder %s561, %s562
      %p571 = scmp.eq.s32.totalorder %s42, 0
      %p572 = por %p570, %p571
      %p573 = scmp.ne.s32.totalorder %s561, %s562
      %p574 = scmp.eq.s32.totalorder %s43, 1
      %p575 = por %p573, %p574
      %p577 = scmp.ne.s32.totalorder %s562, %s576
      %p578 = scmp.eq.s32.totalorder %s43, 0
      %p579 = por %p577, %p578
      %s581 = sadd.s32 %s580, 1
      %p584 = scmp.eq.s32.totalorder %s37, 1
      %p585 = scmp.ne.s32.totalorder %s580, %s582
      %p586 = scmp.eq.s32.totalorder %s37, 0
      %p587 = por %p585, %p586
      %p588 = scmp.ne.s32.totalorder %s580, %s582
      %p589 = scmp.eq.s32.totalorder %s42, 1
      %p590 = por %p588, %p589
      %p591 = scmp.ne.s32.totalorder %s582, %s583
      %p592 = scmp.eq.s32.totalorder %s42, 0
      %p593 = por %p591, %p592
      %p594 = scmp.ne.s32.totalorder %s582, %s583
      %p595 = scmp.eq.s32.totalorder %s43, 1
      %p596 = por %p594, %p595
      %p598 = scmp.ne.s32.totalorder %s583, %s597
      %p599 = scmp.eq.s32.totalorder %s43, 0
      %p600 = por %p598, %p599
      %s602 = sadd.s32 %s601, 1
      %p605 = scmp.eq.s32.totalorder %s37, 1
      %p606 = scmp.ne.s32.totalorder %s601, %s603
      %p607 = scmp.eq.s32.totalorder %s37, 0
      %p608 = por %p606, %p607
      %p609 = scmp.ne.s32.totalorder %s601, %s603
      %p610 = scmp.eq.s32.totalorder %s42, 1
      %p611 = por %p609, %p610
      %p612 = scmp.ne.s32.totalorder %s603, %s604
      %p613 = scmp.eq.s32.totalorder %s42, 0
      %p614 = por %p612, %p613
      %p615 = scmp.ne.s32.totalorder %s603, %s604
      %p616 = scmp.eq.s32.totalorder %s43, 1
      %p617 = por %p615, %p616
      %p619 = scmp.ne.s32.totalorder %s604, %s618
      %p620 = scmp.eq.s32.totalorder %s43, 0
      %p621 = por %p619, %p620
      %s623 = sadd.s32 %s622, 1
      %p626 = scmp.eq.s32.totalorder %s37, 1
      %p627 = scmp.ne.s32.totalorder %s622, %s624
      %p628 = scmp.eq.s32.totalorder %s37, 0
      %p629 = por %p627, %p628
      %p630 = scmp.ne.s32.totalorder %s622, %s624
      %p631 = scmp.eq.s32.totalorder %s42, 1
      %p632 = por %p630, %p631
      %p633 = scmp.ne.s32.totalorder %s624, %s625
      %p634 = scmp.eq.s32.totalorder %s42, 0
      %p635 = por %p633, %p634
      %p636 = scmp.ne.s32.totalorder %s624, %s625
      %p637 = scmp.eq.s32.totalorder %s43, 1
      %p638 = por %p636, %p637
      %p640 = scmp.ne.s32.totalorder %s625, %s639
      %p641 = scmp.eq.s32.totalorder %s43, 0
      %p642 = por %p640, %p641
      %s643 = ssub.s32 %s37, %s44
      %p644 = scmp.eq.s32.totalorder %s643, 0
      %s646 = sadd.s32 %s645, 1
      %s647 = scalar_select %p644, %s645, %s646
      %p650 = pneg %p644
      %p651 = scmp.eq.s32.totalorder %s37, 1
      %p652 = por %p650, %p651
      %p653 = scmp.ne.s32.totalorder %s645, %s648
      %p654 = scmp.eq.s32.totalorder %s37, 0
      %p655 = por %p653, %p654
      %p656 = scmp.ne.s32.totalorder %s645, %s648
      %p657 = scmp.eq.s32.totalorder %s42, 1
      %p658 = por %p656, %p657
      %p659 = scmp.ne.s32.totalorder %s648, %s649
      %p660 = scmp.eq.s32.totalorder %s42, 0
      %p661 = por %p659, %p660
      %p662 = scmp.ne.s32.totalorder %s648, %s649
      %p663 = scmp.eq.s32.totalorder %s43, 1
      %p664 = por %p662, %p663
      %p666 = scmp.ne.s32.totalorder %s649, %s665
      %p667 = scmp.eq.s32.totalorder %s43, 0
      %p668 = por %p666, %p667
      %p669 = scmp.le.s32.totalorder 1, %s37
      %p670 = scmp.lt.s32.totalorder %s37, 3
      %p671 = pnand %p669, %p670
      %p672 = pneg %p671
      // Predicated region
      $region9: #{tpu_custom_call.1} parent=5 // pred_check
        _
      $region10: #{tpu_custom_call.1} parent=5 // pred_check_branch
        %674 = sbr.rel (%p671) target = $region12
      $region11: #{tpu_custom_call.1} parent=5 // pred_region
        %s675 = ssub.s32 %s37, 1
        // Predicated region
        $region13: #{tpu_custom_call.1} parent=11 // pred_check
          %p676 = pneg %p110
        $region14: #{tpu_custom_call.1} parent=11 // pred_check_branch
          %678 = sbr.rel (%p676) target = $region16
        $region15: #{tpu_custom_call.1} parent=11 // pred_region
          _
        $region16: #{tpu_custom_call.1} parent=11 // pred_fallthru
          _
        // Predicated region
        $region17: #{tpu_custom_call.1} parent=11 // pred_check
          %p679 = pneg %p131
        $region18: #{tpu_custom_call.1} parent=11 // pred_check_branch
          %681 = sbr.rel (%p679) target = $region20
        $region19: #{tpu_custom_call.1} parent=11 // pred_region
          _
        $region20: #{tpu_custom_call.1} parent=11 // pred_fallthru
          _
        // Predicated region
        $region21: #{tpu_custom_call.1} parent=11 // pred_check
          %p682 = pneg %p152
        $region22: #{tpu_custom_call.1} parent=11 // pred_check_branch
          %684 = sbr.rel (%p682) target = $region24
        $region23: #{tpu_custom_call.1} parent=11 // pred_region
          _
        $region24: #{tpu_custom_call.1} parent=11 // pred_fallthru
          _
        // Predicated region
        $region25: #{tpu_custom_call.1} parent=11 // pred_check
          %p685 = pneg %p173
        $region26: #{tpu_custom_call.1} parent=11 // pred_check_branch
          %687 = sbr.rel (%p685) target = $region28
        $region27: #{tpu_custom_call.1} parent=11 // pred_region
          _
        $region28: #{tpu_custom_call.1} parent=11 // pred_fallthru
          _
        // Predicated region
        $region29: #{tpu_custom_call.1} parent=11 // pred_check
          %p688 = pneg %p194
        $region30: #{tpu_custom_call.1} parent=11 // pred_check_branch
          %690 = sbr.rel (%p688) target = $region32
        $region31: #{tpu_custom_call.1} parent=11 // pred_region
          _
        $region32: #{tpu_custom_call.1} parent=11 // pred_fallthru
          _
        // Predicated region
        $region33: #{tpu_custom_call.1} parent=11 // pred_check
          %p691 = pneg %p215
        $region34: #{tpu_custom_call.1} parent=11 // pred_check_branch
          %693 = sbr.rel (%p691) target = $region36
        $region35: #{tpu_custom_call.1} parent=11 // pred_region
          _
        $region36: #{tpu_custom_call.1} parent=11 // pred_fallthru
          _
        // Predicated region
        $region37: #{tpu_custom_call.1} parent=11 // pred_check
          %p694 = pneg %p236
        $region38: #{tpu_custom_call.1} parent=11 // pred_check_branch
          %696 = sbr.rel (%p694) target = $region40
        $region39: #{tpu_custom_call.1} parent=11 // pred_region
          _
        $region40: #{tpu_custom_call.1} parent=11 // pred_fallthru
          _
        // Predicated region
        $region41: #{tpu_custom_call.1} parent=11 // pred_check
          %p697 = pneg %p257
        $region42: #{tpu_custom_call.1} parent=11 // pred_check_branch
          %699 = sbr.rel (%p697) target = $region44
        $region43: #{tpu_custom_call.1} parent=11 // pred_region
          _
        $region44: #{tpu_custom_call.1} parent=11 // pred_fallthru
          _
        // Predicated region
        $region45: #{tpu_custom_call.1} parent=11 // pred_check
          %p700 = pneg %p278
        $region46: #{tpu_custom_call.1} parent=11 // pred_check_branch
          %702 = sbr.rel (%p700) target = $region48
        $region47: #{tpu_custom_call.1} parent=11 // pred_region
          _
        $region48: #{tpu_custom_call.1} parent=11 // pred_fallthru
          _
        // Predicated region
        $region49: #{tpu_custom_call.1} parent=11 // pred_check
          %p703 = pneg %p299
        $region50: #{tpu_custom_call.1} parent=11 // pred_check_branch
          %705 = sbr.rel (%p703) target = $region52
        $region51: #{tpu_custom_call.1} parent=11 // pred_region
          _
        $region52: #{tpu_custom_call.1} parent=11 // pred_fallthru
          _
        // Predicated region
        $region53: #{tpu_custom_call.1} parent=11 // pred_check
          %p706 = pneg %p320
        $region54: #{tpu_custom_call.1} parent=11 // pred_check_branch
          %708 = sbr.rel (%p706) target = $region56
        $region55: #{tpu_custom_call.1} parent=11 // pred_region
          _
        $region56: #{tpu_custom_call.1} parent=11 // pred_fallthru
          _
        // Predicated region
        $region57: #{tpu_custom_call.1} parent=11 // pred_check
          %p709 = pneg %p341
        $region58: #{tpu_custom_call.1} parent=11 // pred_check_branch
          %711 = sbr.rel (%p709) target = $region60
        $region59: #{tpu_custom_call.1} parent=11 // pred_region
          _
        $region60: #{tpu_custom_call.1} parent=11 // pred_fallthru
          _
        // Predicated region
        $region61: #{tpu_custom_call.1} parent=11 // pred_check
          %p712 = pneg %p362
        $region62: #{tpu_custom_call.1} parent=11 // pred_check_branch
          %714 = sbr.rel (%p712) target = $region64
        $region63: #{tpu_custom_call.1} parent=11 // pred_region
          _
        $region64: #{tpu_custom_call.1} parent=11 // pred_fallthru
          _
        // Predicated region
        $region65: #{tpu_custom_call.1} parent=11 // pred_check
          %p715 = pneg %p383
        $region66: #{tpu_custom_call.1} parent=11 // pred_check_branch
          %717 = sbr.rel (%p715) target = $region68
        $region67: #{tpu_custom_call.1} parent=11 // pred_region
          _
        $region68: #{tpu_custom_call.1} parent=11 // pred_fallthru
          _
        // Predicated region
        $region69: #{tpu_custom_call.1} parent=11 // pred_check
          %p718 = pneg %p404
        $region70: #{tpu_custom_call.1} parent=11 // pred_check_branch
          %720 = sbr.rel (%p718) target = $region72
        $region71: #{tpu_custom_call.1} parent=11 // pred_region
          _
        $region72: #{tpu_custom_call.1} parent=11 // pred_fallthru
          _
        // Predicated region
        $region73: #{tpu_custom_call.1} parent=11 // pred_check
          %p721 = pneg %p425
        $region74: #{tpu_custom_call.1} parent=11 // pred_check_branch
          %723 = sbr.rel (%p721) target = $region76
        $region75: #{tpu_custom_call.1} parent=11 // pred_region
          _
        $region76: #{tpu_custom_call.1} parent=11 // pred_fallthru
          _
        // Predicated region
        $region77: #{tpu_custom_call.1} parent=11 // pred_check
          %p724 = pneg %p446
        $region78: #{tpu_custom_call.1} parent=11 // pred_check_branch
          %726 = sbr.rel (%p724) target = $region80
        $region79: #{tpu_custom_call.1} parent=11 // pred_region
          _
        $region80: #{tpu_custom_call.1} parent=11 // pred_fallthru
          _
        // Predicated region
        $region81: #{tpu_custom_call.1} parent=11 // pred_check
          %p727 = pneg %p467
        $region82: #{tpu_custom_call.1} parent=11 // pred_check_branch
          %729 = sbr.rel (%p727) target = $region84
        $region83: #{tpu_custom_call.1} parent=11 // pred_region
          _
        $region84: #{tpu_custom_call.1} parent=11 // pred_fallthru
          _
        // Predicated region
        $region85: #{tpu_custom_call.1} parent=11 // pred_check
          %p730 = pneg %p488
        $region86: #{tpu_custom_call.1} parent=11 // pred_check_branch
          %732 = sbr.rel (%p730) target = $region88
        $region87: #{tpu_custom_call.1} parent=11 // pred_region
          _
        $region88: #{tpu_custom_call.1} parent=11 // pred_fallthru
          _
        // Predicated region
        $region89: #{tpu_custom_call.1} parent=11 // pred_check
          %p733 = pneg %p509
        $region90: #{tpu_custom_call.1} parent=11 // pred_check_branch
          %735 = sbr.rel (%p733) target = $region92
        $region91: #{tpu_custom_call.1} parent=11 // pred_region
          _
        $region92: #{tpu_custom_call.1} parent=11 // pred_fallthru
          _
        // Predicated region
        $region93: #{tpu_custom_call.1} parent=11 // pred_check
          %p736 = pneg %p530
        $region94: #{tpu_custom_call.1} parent=11 // pred_check_branch
          %738 = sbr.rel (%p736) target = $region96
        $region95: #{tpu_custom_call.1} parent=11 // pred_region
          _
        $region96: #{tpu_custom_call.1} parent=11 // pred_fallthru
          _
        // Predicated region
        $region97: #{tpu_custom_call.1} parent=11 // pred_check
          %p739 = pneg %p551
        $region98: #{tpu_custom_call.1} parent=11 // pred_check_branch
          %741 = sbr.rel (%p739) target = $region100
        $region99: #{tpu_custom_call.1} parent=11 // pred_region
          _
        $region100: #{tpu_custom_call.1} parent=11 // pred_fallthru
          _
        // Predicated region
        $region101: #{tpu_custom_call.1} parent=11 // pred_check
          %p742 = pneg %p572
        $region102: #{tpu_custom_call.1} parent=11 // pred_check_branch
          %744 = sbr.rel (%p742) target = $region104
        $region103: #{tpu_custom_call.1} parent=11 // pred_region
          _
        $region104: #{tpu_custom_call.1} parent=11 // pred_fallthru
          _
        // Predicated region
        $region105: #{tpu_custom_call.1} parent=11 // pred_check
          %p745 = pneg %p593
        $region106: #{tpu_custom_call.1} parent=11 // pred_check_branch
          %747 = sbr.rel (%p745) target = $region108
        $region107: #{tpu_custom_call.1} parent=11 // pred_region
          _
        $region108: #{tpu_custom_call.1} parent=11 // pred_fallthru
          _
        // Predicated region
        $region109: #{tpu_custom_call.1} parent=11 // pred_check
          %p748 = pneg %p614
        $region110: #{tpu_custom_call.1} parent=11 // pred_check_branch
          %750 = sbr.rel (%p748) target = $region112
        $region111: #{tpu_custom_call.1} parent=11 // pred_region
          _
        $region112: #{tpu_custom_call.1} parent=11 // pred_fallthru
          _
        // Predicated region
        $region113: #{tpu_custom_call.1} parent=11 // pred_check
          %p751 = pneg %p635
        $region114: #{tpu_custom_call.1} parent=11 // pred_check_branch
          %753 = sbr.rel (%p751) target = $region116
        $region115: #{tpu_custom_call.1} parent=11 // pred_region
          _
        $region116: #{tpu_custom_call.1} parent=11 // pred_fallthru
          _
      $region12: #{tpu_custom_call.1} parent=5 // pred_fallthru
        _
      %p754 = scmp.lt.s32.totalorder %s37, 2
      // Predicated region
      $region117: #{tpu_custom_call.1} parent=5 // pred_check
        %p755 = pneg %p754
      $region118: #{tpu_custom_call.1} parent=5 // pred_check_branch
        %757 = sbr.rel (%p755) target = $region120
      $region119: #{tpu_custom_call.1} parent=5 // pred_region
        // Predicated region
        $region121: #{tpu_custom_call.1} parent=119 // pred_check
          %p758 = pneg %p57
        $region122: #{tpu_custom_call.1} parent=119 // pred_check_branch
          %760 = sbr.rel (%p758) target = $region124
        $region123: #{tpu_custom_call.1} parent=119 // pred_region
          %p761 = scmp.lt.s32.totalorder %s37, 1
          %s762 = scalar_select %p761, %s37, 1
          %s763 = smul.addr %s762, 8
          %s764 = scalar_lea.vmem %s0, %s763
        $region124: #{tpu_custom_call.1} parent=119 // pred_fallthru
          _
        // Predicated region
        $region125: #{tpu_custom_call.1} parent=119 // pred_check
          %p765 = pneg %p83
        $region126: #{tpu_custom_call.1} parent=119 // pred_check_branch
          %767 = sbr.rel (%p765) target = $region128
        $region127: #{tpu_custom_call.1} parent=119 // pred_region
          %p768 = scmp.lt.s32.totalorder %s37, 1
          %s769 = scalar_select %p768, %s37, 1
          %s770 = smul.addr %s769, 8
          %s771 = scalar_lea.vmem %s1, %s770
        $region128: #{tpu_custom_call.1} parent=119 // pred_fallthru
          _
      $region120: #{tpu_custom_call.1} parent=5 // pred_fallthru
        _
      %p772 = scmp.le.s32.totalorder 1, %s37
      %p773 = scmp.lt.s32.totalorder %s37, 3
      %p774 = pnand %p772, %p773
      %p775 = pneg %p774
      // Predicated region
      $region129: #{tpu_custom_call.1} parent=5 // pred_check
        _
      $region130: #{tpu_custom_call.1} parent=5 // pred_check_branch
        %777 = sbr.rel (%p774) target = $region132
      $region131: #{tpu_custom_call.1} parent=5 // pred_region
        %s778 = ssub.s32 %s37, 1
        %p779 = scmp.lt.s32.totalorder %s42, 1
        %s780 = scalar_select %p779, %s42, 1
        %s781 = smul.addr %s780, 8
        %s782 = scalar_lea.vmem %s0, %s781
        %p783 = pneg %p63
        %p784 = pneg %p60
        %p785 = scmp.lt.s32.totalorder %s42, 1
        %s786 = scalar_select %p785, %s42, 1
        %s787 = smul.addr %s786, 8
        %s788 = scalar_lea.vmem %s1, %s787
        %p789 = pneg %p89
        %p790 = pneg %p86
        %p791 = pneg %p110
        %p792 = pneg %p107
        %p793 = pneg %p131
        %p794 = pneg %p128
        %p795 = pneg %p152
        %p796 = pneg %p149
        %p797 = pneg %p173
        %p798 = pneg %p170
        %p799 = pneg %p194
        %p800 = pneg %p191
        %p801 = pneg %p215
        %p802 = pneg %p212
        %p803 = pneg %p236
        %p804 = pneg %p233
        %p805 = pneg %p257
        %p806 = pneg %p254
        %p807 = pneg %p278
        %p808 = pneg %p275
        %p809 = pneg %p299
        %p810 = pneg %p296
        %p811 = pneg %p320
        %p812 = pneg %p317
        %p813 = pneg %p341
        %p814 = pneg %p338
        %p815 = pneg %p362
        %p816 = pneg %p359
        %p817 = pneg %p383
        %p818 = pneg %p380
        %p819 = pneg %p404
        %p820 = pneg %p401
        %p821 = pneg %p425
        %p822 = pneg %p422
        %p823 = pneg %p446
        %p824 = pneg %p443
        %p825 = pneg %p467
        %p826 = pneg %p464
        %p827 = pneg %p488
        %p828 = pneg %p485
        %p829 = pneg %p509
        %p830 = pneg %p506
        %p831 = pneg %p530
        %p832 = pneg %p527
        %p833 = pneg %p551
        %p834 = pneg %p548
        %p835 = pneg %p572
        %p836 = pneg %p569
        %p837 = pneg %p593
        %p838 = pneg %p590
        %p839 = pneg %p614
        %p840 = pneg %p611
        %p841 = pneg %p635
        %p842 = pneg %p632
        %p843 = pneg %p661
        %p844 = pneg %p658
        %s845 = sand.u32 %s648, 1
        %s846 = scalar_lea.sflag [#allocation3], %s845
        %s847 = sand.u32 %s648, 1
        %s848 = smul.addr %s847, 8
        %s849 = scalar_lea.vmem [#allocation2], %s848
        %p850 = scmp.lt.s32.totalorder %s42, 1
        %s851 = scalar_select %p850, %s42, 1
        %s852 = smul.addr %s851, 8
        %s853 = scalar_lea.vmem %s0, %s852
        %p854 = scmp.lt.s32.totalorder %s42, 1
        %s855 = scalar_select %p854, %s42, 1
        %s856 = smul.addr %s855, 8
        %s857 = scalar_lea.vmem %s1, %s856
        %v859 = vld [vmem:[%s853] sm:$0xff]
        %v860 = vld [vmem:[%s857] sm:$0xff]
        %v861 = vpack.c.bf16 %v859, %v859
        %v862 = vld [vmem:[%s2] sm:$0xff]
        %v863 = vld [vmem:[%s2 + $0x8] sm:$0xff]
        %v864 = vld [vmem:[%s2 + $0x10] sm:$0xff]
        %v865 = vld [vmem:[%s2 + $0x18] sm:$0xff]
        %v866 = vld [vmem:[%s2 + $0x20] sm:$0xff]
        %v867 = vld [vmem:[%s2 + $0x28] sm:$0xff]
        %v868 = vld [vmem:[%s2 + $0x30] sm:$0xff]
        %v869 = vld [vmem:[%s2 + $0x38] sm:$0xff]
        %v870 = vld [vmem:[%s2 + $0x40] sm:$0xff]
        %v871 = vld [vmem:[%s2 + $0x48] sm:$0xff]
        %v872 = vld [vmem:[%s2 + $0x50] sm:$0xff]
        %v873 = vld [vmem:[%s2 + $0x58] sm:$0xff]
        %v874 = vld [vmem:[%s2 + $0x60] sm:$0xff]
        %v875 = vld [vmem:[%s2 + $0x68] sm:$0xff]
        %v876 = vld [vmem:[%s2 + $0x70] sm:$0xff]
        %v877 = vld [vmem:[%s2 + $0x78] sm:$0xff]
        %v878 = vpack.c.bf16 %v863, %v862
        %v879 = vpack.c.bf16 %v865, %v864
        %v880 = vpack.c.bf16 %v867, %v866
        %v881 = vpack.c.bf16 %v869, %v868
        %v882 = vpack.c.bf16 %v871, %v870
        %v883 = vpack.c.bf16 %v873, %v872
        %v884 = vpack.c.bf16 %v875, %v874
        %v885 = vpack.c.bf16 %v877, %v876
        %v886 = vld [vmem:[%s3] sm:$0x1]
        %v887 = vld [vmem:[%s3 + $0x1] sm:$0x1]
        %v888 = vld [vmem:[%s3 + $0x2] sm:$0x1]
        %v889 = vld [vmem:[%s3 + $0x3] sm:$0x1]
        %v894 = vlaneseq
        %v895 = vshrl.u32 %v894, 7
        %v896 = vsub.s32 0, %v895
        %v897 = vrot.slane %v886, %v896
        %v898 = vlaneseq
        %v899 = vshrl.u32 %v898, 7
        %v900 = vsub.s32 0, %v899
        %v901 = vrot.slane %v887, %v900
        %v902 = vlaneseq
        %v903 = vshrl.u32 %v902, 7
        %v904 = vsub.s32 0, %v903
        %v905 = vrot.slane %v888, %v904
        %v906 = vlaneseq
        %v907 = vshrl.u32 %v906, 7
        %v908 = vsub.s32 0, %v907
        %v909 = vrot.slane %v889, %v908
        %vm914 = vcmask 261120
        %v916 = vsel %vm914, %v861, 0
        %918 = vmatprep.subr.bf16.mxu0 0
        %919 = vmatpush1.bf16.msra.mxu0 0
        %920 = vmatprep.subr.bf16.mxu0 0
        %921 = vmatpush1.bf16.msra.mxu0 0
        %922 = vmatprep.subr.bf16.mxu0 0
        %923 = vmatpush1.bf16.msra.mxu0 0
        %924 = vmatprep.subr.bf16.mxu0 0
        %925 = vmatpush1.bf16.msra.mxu0 0
        %926 = vmatprep.subr.bf16.mxu0 0
        %927 = vmatpush1.bf16.msra.mxu0 0
        %928 = vmatprep.subr.bf16.mxu0 0
        %929 = vmatpush1.bf16.msra.mxu0 0
        %930 = vmatprep.subr.bf16.mxu0 0
        %931 = vmatpush1.bf16.msra.mxu0 %v879
        %932 = vmatprep.subr.bf16.mxu0 0
        %933 = vmatpush1.bf16.msra.mxu0 %v878
        %934 = vmatprep.subr.bf16.mxu0 0
        %935 = vmatpush2.bf16.msra.mxu0 0
        %936 = vmatprep.subr.bf16.mxu0 0
        %937 = vmatpush2.bf16.msra.mxu0 0
        %938 = vmatprep.subr.bf16.mxu0 0
        %939 = vmatpush2.bf16.msra.mxu0 0
        %940 = vmatprep.subr.bf16.mxu0 0
        %941 = vmatpush2.bf16.msra.mxu0 0
        %942 = vmatprep.subr.bf16.mxu0 0
        %943 = vmatpush2.bf16.msra.mxu0 0
        %944 = vmatprep.subr.bf16.mxu0 0
        %945 = vmatpush2.bf16.msra.mxu0 0
        %946 = vmatprep.subr.bf16.mxu0 0
        %947 = vmatpush2.bf16.msra.mxu0 0
        %948 = vmatprep.subr.bf16.mxu0 0
        %949 = vmatpush2.bf16.msra.mxu0 0
        %950 = vmatprep.mubr.bf16.mxu0 0
        %951 = vmatmul.mubr.bf16.gmra.mxu0 %v916
        %v952 = vpop.f32.mrf.mxu0
        %v953 = vadd.f32 %v897, %v952
        %v954 = vpop.f32.mrf.mxu0
        %v955 = vpop.f32.mrf.mxu0
        %v956 = vpop.f32.mrf.mxu0
        %957 = vdwg.mxu0
        %958 = vmatprep.subr.bf16.mxu0 0
        %959 = vmatpush1.bf16.msra.mxu0 0
        %960 = vmatprep.subr.bf16.mxu0 0
        %961 = vmatpush1.bf16.msra.mxu0 0
        %962 = vmatprep.subr.bf16.mxu0 0
        %963 = vmatpush1.bf16.msra.mxu0 0
        %964 = vmatprep.subr.bf16.mxu0 0
        %965 = vmatpush1.bf16.msra.mxu0 0
        %966 = vmatprep.subr.bf16.mxu0 0
        %967 = vmatpush1.bf16.msra.mxu0 0
        %968 = vmatprep.subr.bf16.mxu0 0
        %969 = vmatpush1.bf16.msra.mxu0 0
        %970 = vmatprep.subr.bf16.mxu0 0
        %971 = vmatpush1.bf16.msra.mxu0 %v881
        %972 = vmatprep.subr.bf16.mxu0 0
        %973 = vmatpush1.bf16.msra.mxu0 %v880
        %974 = vmatprep.subr.bf16.mxu0 0
        %975 = vmatpush2.bf16.msra.mxu0 0
        %976 = vmatprep.subr.bf16.mxu0 0
        %977 = vmatpush2.bf16.msra.mxu0 0
        %978 = vmatprep.subr.bf16.mxu0 0
        %979 = vmatpush2.bf16.msra.mxu0 0
        %980 = vmatprep.subr.bf16.mxu0 0
        %981 = vmatpush2.bf16.msra.mxu0 0
        %982 = vmatprep.subr.bf16.mxu0 0
        %983 = vmatpush2.bf16.msra.mxu0 0
        %984 = vmatprep.subr.bf16.mxu0 0
        %985 = vmatpush2.bf16.msra.mxu0 0
        %986 = vmatprep.subr.bf16.mxu0 0
        %987 = vmatpush2.bf16.msra.mxu0 0
        %988 = vmatprep.subr.bf16.mxu0 0
        %989 = vmatpush2.bf16.msra.mxu0 0
        %990 = vmatprep.mubr.bf16.mxu0 0
        %991 = vmatmul.mubr.bf16.gmra.mxu0 %v916
        %v992 = vpop.f32.mrf.mxu0
        %v993 = vadd.f32 %v901, %v992
        %v994 = vpop.f32.mrf.mxu0
        %v995 = vpop.f32.mrf.mxu0
        %v996 = vpop.f32.mrf.mxu0
        %997 = vdwg.mxu0
        %998 = vmatprep.subr.bf16.mxu0 0
        %999 = vmatpush1.bf16.msra.mxu0 0
        %1000 = vmatprep.subr.bf16.mxu0 0
        %1001 = vmatpush1.bf16.msra.mxu0 0
        %1002 = vmatprep.subr.bf16.mxu0 0
        %1003 = vmatpush1.bf16.msra.mxu0 0
        %1004 = vmatprep.subr.bf16.mxu0 0
        %1005 = vmatpush1.bf16.msra.mxu0 0
        %1006 = vmatprep.subr.bf16.mxu0 0
        %1007 = vmatpush1.bf16.msra.mxu0 0
        %1008 = vmatprep.subr.bf16.mxu0 0
        %1009 = vmatpush1.bf16.msra.mxu0 0
        %1010 = vmatprep.subr.bf16.mxu0 0
        %1011 = vmatpush1.bf16.msra.mxu0 %v883
        %1012 = vmatprep.subr.bf16.mxu0 0
        %1013 = vmatpush1.bf16.msra.mxu0 %v882
        %1014 = vmatprep.subr.bf16.mxu0 0
        %1015 = vmatpush2.bf16.msra.mxu0 0
        %1016 = vmatprep.subr.bf16.mxu0 0
        %1017 = vmatpush2.bf16.msra.mxu0 0
        %1018 = vmatprep.subr.bf16.mxu0 0
        %1019 = vmatpush2.bf16.msra.mxu0 0
        %1020 = vmatprep.subr.bf16.mxu0 0
        %1021 = vmatpush2.bf16.msra.mxu0 0
        %1022 = vmatprep.subr.bf16.mxu0 0
        %1023 = vmatpush2.bf16.msra.mxu0 0
        %1024 = vmatprep.subr.bf16.mxu0 0
        %1025 = vmatpush2.bf16.msra.mxu0 0
        %1026 = vmatprep.subr.bf16.mxu0 0
        %1027 = vmatpush2.bf16.msra.mxu0 0
        %1028 = vmatprep.subr.bf16.mxu0 0
        %1029 = vmatpush2.bf16.msra.mxu0 0
        %1030 = vmatprep.mubr.bf16.mxu0 0
        %1031 = vmatmul.mubr.bf16.gmra.mxu0 %v916
        %v1032 = vpop.f32.mrf.mxu0
        %v1033 = vadd.f32 %v905, %v1032
        %v1034 = vpop.f32.mrf.mxu0
        %v1035 = vpop.f32.mrf.mxu0
        %v1036 = vpop.f32.mrf.mxu0
        %1037 = vdwg.mxu0
        %1038 = vmatprep.subr.bf16.mxu0 0
        %1039 = vmatpush1.bf16.msra.mxu0 0
        %1040 = vmatprep.subr.bf16.mxu0 0
        %1041 = vmatpush1.bf16.msra.mxu0 0
        %1042 = vmatprep.subr.bf16.mxu0 0
        %1043 = vmatpush1.bf16.msra.mxu0 0
        %1044 = vmatprep.subr.bf16.mxu0 0
        %1045 = vmatpush1.bf16.msra.mxu0 0
        %1046 = vmatprep.subr.bf16.mxu0 0
        %1047 = vmatpush1.bf16.msra.mxu0 0
        %1048 = vmatprep.subr.bf16.mxu0 0
        %1049 = vmatpush1.bf16.msra.mxu0 0
        %1050 = vmatprep.subr.bf16.mxu0 0
        %1051 = vmatpush1.bf16.msra.mxu0 %v885
        %1052 = vmatprep.subr.bf16.mxu0 0
        %1053 = vmatpush1.bf16.msra.mxu0 %v884
        %1054 = vmatprep.subr.bf16.mxu0 0
        %1055 = vmatpush2.bf16.msra.mxu0 0
        %1056 = vmatprep.subr.bf16.mxu0 0
        %1057 = vmatpush2.bf16.msra.mxu0 0
        %1058 = vmatprep.subr.bf16.mxu0 0
        %1059 = vmatpush2.bf16.msra.mxu0 0
        %1060 = vmatprep.subr.bf16.mxu0 0
        %1061 = vmatpush2.bf16.msra.mxu0 0
        %1062 = vmatprep.subr.bf16.mxu0 0
        %1063 = vmatpush2.bf16.msra.mxu0 0
        %1064 = vmatprep.subr.bf16.mxu0 0
        %1065 = vmatpush2.bf16.msra.mxu0 0
        %1066 = vmatprep.subr.bf16.mxu0 0
        %1067 = vmatpush2.bf16.msra.mxu0 0
        %1068 = vmatprep.subr.bf16.mxu0 0
        %1069 = vmatpush2.bf16.msra.mxu0 0
        %1070 = vmatprep.mubr.bf16.mxu0 0
        %1071 = vmatmul.mubr.bf16.gmra.mxu0 %v916
        %v1072 = vpop.f32.mrf.mxu0
        %v1073 = vadd.f32 %v909, %v1072
        %v1074 = vpop.f32.mrf.mxu0
        %v1075 = vpop.f32.mrf.mxu0
        %v1076 = vpop.f32.mrf.mxu0
        %1077 = vdwg.mxu0
        %v1078 = vld [vmem:[%s4] sm:$0xff]
        %v1079 = vld [vmem:[%s4 + $0x8] sm:$0xff]
        %v1080 = vld [vmem:[%s4 + $0x10] sm:$0xff]
        %v1081 = vld [vmem:[%s4 + $0x18] sm:$0xff]
        %v1082 = vld [vmem:[%s4 + $0x20] sm:$0xff]
        %v1083 = vld [vmem:[%s4 + $0x28] sm:$0xff]
        %v1084 = vld [vmem:[%s4 + $0x30] sm:$0xff]
        %v1085 = vld [vmem:[%s4 + $0x38] sm:$0xff]
        %v1086 = vld [vmem:[%s4 + $0x40] sm:$0xff]
        %v1087 = vld [vmem:[%s4 + $0x48] sm:$0xff]
        %v1088 = vld [vmem:[%s4 + $0x50] sm:$0xff]
        %v1089 = vld [vmem:[%s4 + $0x58] sm:$0xff]
        %v1090 = vld [vmem:[%s4 + $0x60] sm:$0xff]
        %v1091 = vld [vmem:[%s4 + $0x68] sm:$0xff]
        %v1092 = vld [vmem:[%s4 + $0x70] sm:$0xff]
        %v1093 = vld [vmem:[%s4 + $0x78] sm:$0xff]
        %v1094 = vpack.c.bf16 %v1079, %v1078
        %v1095 = vpack.c.bf16 %v1081, %v1080
        %v1096 = vpack.c.bf16 %v1083, %v1082
        %v1097 = vpack.c.bf16 %v1085, %v1084
        %v1098 = vpack.c.bf16 %v1087, %v1086
        %v1099 = vpack.c.bf16 %v1089, %v1088
        %v1100 = vpack.c.bf16 %v1091, %v1090
        %v1101 = vpack.c.bf16 %v1093, %v1092
        %v1102 = vld [vmem:[%s5] sm:$0x1]
        %v1103 = vld [vmem:[%s5 + $0x1] sm:$0x1]
        %v1104 = vld [vmem:[%s5 + $0x2] sm:$0x1]
        %v1105 = vld [vmem:[%s5 + $0x3] sm:$0x1]
        %v1110 = vlaneseq
        %v1111 = vshrl.u32 %v1110, 7
        %v1112 = vsub.s32 0, %v1111
        %v1113 = vrot.slane %v1102, %v1112
        %v1114 = vlaneseq
        %v1115 = vshrl.u32 %v1114, 7
        %v1116 = vsub.s32 0, %v1115
        %v1117 = vrot.slane %v1103, %v1116
        %v1118 = vlaneseq
        %v1119 = vshrl.u32 %v1118, 7
        %v1120 = vsub.s32 0, %v1119
        %v1121 = vrot.slane %v1104, %v1120
        %v1122 = vlaneseq
        %v1123 = vshrl.u32 %v1122, 7
        %v1124 = vsub.s32 0, %v1123
        %v1125 = vrot.slane %v1105, %v1124
        %1130 = vmatprep.subr.bf16.mxu0 0
        %1131 = vmatpush1.bf16.msra.mxu0 0
        %1132 = vmatprep.subr.bf16.mxu0 0
        %1133 = vmatpush1.bf16.msra.mxu0 0
        %1134 = vmatprep.subr.bf16.mxu0 0
        %1135 = vmatpush1.bf16.msra.mxu0 0
        %1136 = vmatprep.subr.bf16.mxu0 0
        %1137 = vmatpush1.bf16.msra.mxu0 0
        %1138 = vmatprep.subr.bf16.mxu0 0
        %1139 = vmatpush1.bf16.msra.mxu0 0
        %1140 = vmatprep.subr.bf16.mxu0 0
        %1141 = vmatpush1.bf16.msra.mxu0 0
        %1142 = vmatprep.subr.bf16.mxu0 0
        %1143 = vmatpush1.bf16.msra.mxu0 %v1095
        %1144 = vmatprep.subr.bf16.mxu0 0
        %1145 = vmatpush1.bf16.msra.mxu0 %v1094
        %1146 = vmatprep.subr.bf16.mxu0 0
        %1147 = vmatpush2.bf16.msra.mxu0 0
        %1148 = vmatprep.subr.bf16.mxu0 0
        %1149 = vmatpush2.bf16.msra.mxu0 0
        %1150 = vmatprep.subr.bf16.mxu0 0
        %1151 = vmatpush2.bf16.msra.mxu0 0
        %1152 = vmatprep.subr.bf16.mxu0 0
        %1153 = vmatpush2.bf16.msra.mxu0 0
        %1154 = vmatprep.subr.bf16.mxu0 0
        %1155 = vmatpush2.bf16.msra.mxu0 0
        %1156 = vmatprep.subr.bf16.mxu0 0
        %1157 = vmatpush2.bf16.msra.mxu0 0
        %1158 = vmatprep.subr.bf16.mxu0 0
        %1159 = vmatpush2.bf16.msra.mxu0 0
        %1160 = vmatprep.subr.bf16.mxu0 0
        %1161 = vmatpush2.bf16.msra.mxu0 0
        %1162 = vmatprep.mubr.bf16.mxu0 0
        %1163 = vmatmul.mubr.bf16.gmra.mxu0 %v916
        %v1164 = vpop.f32.mrf.mxu0
        %v1165 = vadd.f32 %v1113, %v1164
        %v1166 = vpop.f32.mrf.mxu0
        %v1167 = vpop.f32.mrf.mxu0
        %v1168 = vpop.f32.mrf.mxu0
        %1169 = vdwg.mxu0
        %1170 = vmatprep.subr.bf16.mxu0 0
        %1171 = vmatpush1.bf16.msra.mxu0 0
        %1172 = vmatprep.subr.bf16.mxu0 0
        %1173 = vmatpush1.bf16.msra.mxu0 0
        %1174 = vmatprep.subr.bf16.mxu0 0
        %1175 = vmatpush1.bf16.msra.mxu0 0
        %1176 = vmatprep.subr.bf16.mxu0 0
        %1177 = vmatpush1.bf16.msra.mxu0 0
        %1178 = vmatprep.subr.bf16.mxu0 0
        %1179 = vmatpush1.bf16.msra.mxu0 0
        %1180 = vmatprep.subr.bf16.mxu0 0
        %1181 = vmatpush1.bf16.msra.mxu0 0
        %1182 = vmatprep.subr.bf16.mxu0 0
        %1183 = vmatpush1.bf16.msra.mxu0 %v1097
        %1184 = vmatprep.subr.bf16.mxu0 0
        %1185 = vmatpush1.bf16.msra.mxu0 %v1096
        %1186 = vmatprep.subr.bf16.mxu0 0
        %1187 = vmatpush2.bf16.msra.mxu0 0
        %1188 = vmatprep.subr.bf16.mxu0 0
        %1189 = vmatpush2.bf16.msra.mxu0 0
        %1190 = vmatprep.subr.bf16.mxu0 0
        %1191 = vmatpush2.bf16.msra.mxu0 0
        %1192 = vmatprep.subr.bf16.mxu0 0
        %1193 = vmatpush2.bf16.msra.mxu0 0
        %1194 = vmatprep.subr.bf16.mxu0 0
        %1195 = vmatpush2.bf16.msra.mxu0 0
        %1196 = vmatprep.subr.bf16.mxu0 0
        %1197 = vmatpush2.bf16.msra.mxu0 0
        %1198 = vmatprep.subr.bf16.mxu0 0
        %1199 = vmatpush2.bf16.msra.mxu0 0
        %1200 = vmatprep.subr.bf16.mxu0 0
        %1201 = vmatpush2.bf16.msra.mxu0 0
        %1202 = vmatprep.mubr.bf16.mxu0 0
        %1203 = vmatmul.mubr.bf16.gmra.mxu0 %v916
        %v1204 = vpop.f32.mrf.mxu0
        %v1205 = vadd.f32 %v1117, %v1204
        %v1206 = vpop.f32.mrf.mxu0
        %v1207 = vpop.f32.mrf.mxu0
        %v1208 = vpop.f32.mrf.mxu0
        %1209 = vdwg.mxu0
        %1210 = vmatprep.subr.bf16.mxu0 0
        %1211 = vmatpush1.bf16.msra.mxu0 0
        %1212 = vmatprep.subr.bf16.mxu0 0
        %1213 = vmatpush1.bf16.msra.mxu0 0
        %1214 = vmatprep.subr.bf16.mxu0 0
        %1215 = vmatpush1.bf16.msra.mxu0 0
        %1216 = vmatprep.subr.bf16.mxu0 0
        %1217 = vmatpush1.bf16.msra.mxu0 0
        %1218 = vmatprep.subr.bf16.mxu0 0
        %1219 = vmatpush1.bf16.msra.mxu0 0
        %1220 = vmatprep.subr.bf16.mxu0 0
        %1221 = vmatpush1.bf16.msra.mxu0 0
        %1222 = vmatprep.subr.bf16.mxu0 0
        %1223 = vmatpush1.bf16.msra.mxu0 %v1099
        %1224 = vmatprep.subr.bf16.mxu0 0
        %1225 = vmatpush1.bf16.msra.mxu0 %v1098
        %1226 = vmatprep.subr.bf16.mxu0 0
        %1227 = vmatpush2.bf16.msra.mxu0 0
        %1228 = vmatprep.subr.bf16.mxu0 0
        %1229 = vmatpush2.bf16.msra.mxu0 0
        %1230 = vmatprep.subr.bf16.mxu0 0
        %1231 = vmatpush2.bf16.msra.mxu0 0
        %1232 = vmatprep.subr.bf16.mxu0 0
        %1233 = vmatpush2.bf16.msra.mxu0 0
        %1234 = vmatprep.subr.bf16.mxu0 0
        %1235 = vmatpush2.bf16.msra.mxu0 0
        %1236 = vmatprep.subr.bf16.mxu0 0
        %1237 = vmatpush2.bf16.msra.mxu0 0
        %1238 = vmatprep.subr.bf16.mxu0 0
        %1239 = vmatpush2.bf16.msra.mxu0 0
        %1240 = vmatprep.subr.bf16.mxu0 0
        %1241 = vmatpush2.bf16.msra.mxu0 0
        %1242 = vmatprep.mubr.bf16.mxu0 0
        %1243 = vmatmul.mubr.bf16.gmra.mxu0 %v916
        %v1244 = vpop.f32.mrf.mxu0
        %v1245 = vadd.f32 %v1121, %v1244
        %v1246 = vpop.f32.mrf.mxu0
        %v1247 = vpop.f32.mrf.mxu0
        %v1248 = vpop.f32.mrf.mxu0
        %1249 = vdwg.mxu0
        %1250 = vmatprep.subr.bf16.mxu0 0
        %1251 = vmatpush1.bf16.msra.mxu0 0
        %1252 = vmatprep.subr.bf16.mxu0 0
        %1253 = vmatpush1.bf16.msra.mxu0 0
        %1254 = vmatprep.subr.bf16.mxu0 0
        %1255 = vmatpush1.bf16.msra.mxu0 0
        %1256 = vmatprep.subr.bf16.mxu0 0
        %1257 = vmatpush1.bf16.msra.mxu0 0
        %1258 = vmatprep.subr.bf16.mxu0 0
        %1259 = vmatpush1.bf16.msra.mxu0 0
        %1260 = vmatprep.subr.bf16.mxu0 0
        %1261 = vmatpush1.bf16.msra.mxu0 0
        %1262 = vmatprep.subr.bf16.mxu0 0
        %1263 = vmatpush1.bf16.msra.mxu0 %v1101
        %1264 = vmatprep.subr.bf16.mxu0 0
        %1265 = vmatpush1.bf16.msra.mxu0 %v1100
        %1266 = vmatprep.subr.bf16.mxu0 0
        %1267 = vmatpush2.bf16.msra.mxu0 0
        %1268 = vmatprep.subr.bf16.mxu0 0
        %1269 = vmatpush2.bf16.msra.mxu0 0
        %1270 = vmatprep.subr.bf16.mxu0 0
        %1271 = vmatpush2.bf16.msra.mxu0 0
        %1272 = vmatprep.subr.bf16.mxu0 0
        %1273 = vmatpush2.bf16.msra.mxu0 0
        %1274 = vmatprep.subr.bf16.mxu0 0
        %1275 = vmatpush2.bf16.msra.mxu0 0
        %1276 = vmatprep.subr.bf16.mxu0 0
        %1277 = vmatpush2.bf16.msra.mxu0 0
        %1278 = vmatprep.subr.bf16.mxu0 0
        %1279 = vmatpush2.bf16.msra.mxu0 0
        %1280 = vmatprep.subr.bf16.mxu0 0
        %1281 = vmatpush2.bf16.msra.mxu0 0
        %1282 = vmatprep.mubr.bf16.mxu0 0
        %1283 = vmatmul.mubr.bf16.gmra.mxu0 %v916
        %v1284 = vpop.f32.mrf.mxu0
        %v1285 = vadd.f32 %v1125, %v1284
        %v1286 = vpop.f32.mrf.mxu0
        %v1287 = vpop.f32.mrf.mxu0
        %v1288 = vpop.f32.mrf.mxu0
        %1289 = vdwg.mxu0
        %v1290 = vld [vmem:[%s6] sm:$0xff]
        %v1291 = vld [vmem:[%s6 + $0x8] sm:$0xff]
        %v1292 = vld [vmem:[%s6 + $0x10] sm:$0xff]
        %v1293 = vld [vmem:[%s6 + $0x18] sm:$0xff]
        %v1294 = vld [vmem:[%s6 + $0x20] sm:$0xff]
        %v1295 = vld [vmem:[%s6 + $0x28] sm:$0xff]
        %v1296 = vld [vmem:[%s6 + $0x30] sm:$0xff]
        %v1297 = vld [vmem:[%s6 + $0x38] sm:$0xff]
        %v1298 = vld [vmem:[%s6 + $0x40] sm:$0xff]
        %v1299 = vld [vmem:[%s6 + $0x48] sm:$0xff]
        %v1300 = vld [vmem:[%s6 + $0x50] sm:$0xff]
        %v1301 = vld [vmem:[%s6 + $0x58] sm:$0xff]
        %v1302 = vld [vmem:[%s6 + $0x60] sm:$0xff]
        %v1303 = vld [vmem:[%s6 + $0x68] sm:$0xff]
        %v1304 = vld [vmem:[%s6 + $0x70] sm:$0xff]
        %v1305 = vld [vmem:[%s6 + $0x78] sm:$0xff]
        %v1306 = vpack.c.bf16 %v1291, %v1290
        %v1307 = vpack.c.bf16 %v1293, %v1292
        %v1308 = vpack.c.bf16 %v1295, %v1294
        %v1309 = vpack.c.bf16 %v1297, %v1296
        %v1310 = vpack.c.bf16 %v1299, %v1298
        %v1311 = vpack.c.bf16 %v1301, %v1300
        %v1312 = vpack.c.bf16 %v1303, %v1302
        %v1313 = vpack.c.bf16 %v1305, %v1304
        %v1314 = vld [vmem:[%s7] sm:$0x1]
        %v1315 = vld [vmem:[%s7 + $0x1] sm:$0x1]
        %v1316 = vld [vmem:[%s7 + $0x2] sm:$0x1]
        %v1317 = vld [vmem:[%s7 + $0x3] sm:$0x1]
        %v1322 = vlaneseq
        %v1323 = vshrl.u32 %v1322, 7
        %v1324 = vsub.s32 0, %v1323
        %v1325 = vrot.slane %v1314, %v1324
        %v1326 = vlaneseq
        %v1327 = vshrl.u32 %v1326, 7
        %v1328 = vsub.s32 0, %v1327
        %v1329 = vrot.slane %v1315, %v1328
        %v1330 = vlaneseq
        %v1331 = vshrl.u32 %v1330, 7
        %v1332 = vsub.s32 0, %v1331
        %v1333 = vrot.slane %v1316, %v1332
        %v1334 = vlaneseq
        %v1335 = vshrl.u32 %v1334, 7
        %v1336 = vsub.s32 0, %v1335
        %v1337 = vrot.slane %v1317, %v1336
        %1342 = vmatprep.subr.bf16.mxu0 0
        %1343 = vmatpush1.bf16.msra.mxu0 0
        %1344 = vmatprep.subr.bf16.mxu0 0
        %1345 = vmatpush1.bf16.msra.mxu0 0
        %1346 = vmatprep.subr.bf16.mxu0 0
        %1347 = vmatpush1.bf16.msra.mxu0 0
        %1348 = vmatprep.subr.bf16.mxu0 0
        %1349 = vmatpush1.bf16.msra.mxu0 0
        %1350 = vmatprep.subr.bf16.mxu0 0
        %1351 = vmatpush1.bf16.msra.mxu0 0
        %1352 = vmatprep.subr.bf16.mxu0 0
        %1353 = vmatpush1.bf16.msra.mxu0 0
        %1354 = vmatprep.subr.bf16.mxu0 0
        %1355 = vmatpush1.bf16.msra.mxu0 %v1307
        %1356 = vmatprep.subr.bf16.mxu0 0
        %1357 = vmatpush1.bf16.msra.mxu0 %v1306
        %1358 = vmatprep.subr.bf16.mxu0 0
        %1359 = vmatpush2.bf16.msra.mxu0 0
        %1360 = vmatprep.subr.bf16.mxu0 0
        %1361 = vmatpush2.bf16.msra.mxu0 0
        %1362 = vmatprep.subr.bf16.mxu0 0
        %1363 = vmatpush2.bf16.msra.mxu0 0
        %1364 = vmatprep.subr.bf16.mxu0 0
        %1365 = vmatpush2.bf16.msra.mxu0 0
        %1366 = vmatprep.subr.bf16.mxu0 0
        %1367 = vmatpush2.bf16.msra.mxu0 0
        %1368 = vmatprep.subr.bf16.mxu0 0
        %1369 = vmatpush2.bf16.msra.mxu0 0
        %1370 = vmatprep.subr.bf16.mxu0 0
        %1371 = vmatpush2.bf16.msra.mxu0 0
        %1372 = vmatprep.subr.bf16.mxu0 0
        %1373 = vmatpush2.bf16.msra.mxu0 0
        %1374 = vmatprep.mubr.bf16.mxu0 0
        %1375 = vmatmul.mubr.bf16.gmra.mxu0 %v916
        %v1376 = vpop.f32.mrf.mxu0
        %v1377 = vadd.f32 %v1325, %v1376
        %v1378 = vpop.f32.mrf.mxu0
        %v1379 = vpop.f32.mrf.mxu0
        %v1380 = vpop.f32.mrf.mxu0
        %1381 = vdwg.mxu0
        %1382 = vmatprep.subr.bf16.mxu0 0
        %1383 = vmatpush1.bf16.msra.mxu0 0
        %1384 = vmatprep.subr.bf16.mxu0 0
        %1385 = vmatpush1.bf16.msra.mxu0 0
        %1386 = vmatprep.subr.bf16.mxu0 0
        %1387 = vmatpush1.bf16.msra.mxu0 0
        %1388 = vmatprep.subr.bf16.mxu0 0
        %1389 = vmatpush1.bf16.msra.mxu0 0
        %1390 = vmatprep.subr.bf16.mxu0 0
        %1391 = vmatpush1.bf16.msra.mxu0 0
        %1392 = vmatprep.subr.bf16.mxu0 0
        %1393 = vmatpush1.bf16.msra.mxu0 0
        %1394 = vmatprep.subr.bf16.mxu0 0
        %1395 = vmatpush1.bf16.msra.mxu0 %v1309
        %1396 = vmatprep.subr.bf16.mxu0 0
        %1397 = vmatpush1.bf16.msra.mxu0 %v1308
        %1398 = vmatprep.subr.bf16.mxu0 0
        %1399 = vmatpush2.bf16.msra.mxu0 0
        %1400 = vmatprep.subr.bf16.mxu0 0
        %1401 = vmatpush2.bf16.msra.mxu0 0
        %1402 = vmatprep.subr.bf16.mxu0 0
        %1403 = vmatpush2.bf16.msra.mxu0 0
        %1404 = vmatprep.subr.bf16.mxu0 0
        %1405 = vmatpush2.bf16.msra.mxu0 0
        %1406 = vmatprep.subr.bf16.mxu0 0
        %1407 = vmatpush2.bf16.msra.mxu0 0
        %1408 = vmatprep.subr.bf16.mxu0 0
        %1409 = vmatpush2.bf16.msra.mxu0 0
        %1410 = vmatprep.subr.bf16.mxu0 0
        %1411 = vmatpush2.bf16.msra.mxu0 0
        %1412 = vmatprep.subr.bf16.mxu0 0
        %1413 = vmatpush2.bf16.msra.mxu0 0
        %1414 = vmatprep.mubr.bf16.mxu0 0
        %1415 = vmatmul.mubr.bf16.gmra.mxu0 %v916
        %v1416 = vpop.f32.mrf.mxu0
        %v1417 = vadd.f32 %v1329, %v1416
        %v1418 = vpop.f32.mrf.mxu0
        %v1419 = vpop.f32.mrf.mxu0
        %v1420 = vpop.f32.mrf.mxu0
        %1421 = vdwg.mxu0
        %1422 = vmatprep.subr.bf16.mxu0 0
        %1423 = vmatpush1.bf16.msra.mxu0 0
        %1424 = vmatprep.subr.bf16.mxu0 0
        %1425 = vmatpush1.bf16.msra.mxu0 0
        %1426 = vmatprep.subr.bf16.mxu0 0
        %1427 = vmatpush1.bf16.msra.mxu0 0
        %1428 = vmatprep.subr.bf16.mxu0 0
        %1429 = vmatpush1.bf16.msra.mxu0 0
        %1430 = vmatprep.subr.bf16.mxu0 0
        %1431 = vmatpush1.bf16.msra.mxu0 0
        %1432 = vmatprep.subr.bf16.mxu0 0
        %1433 = vmatpush1.bf16.msra.mxu0 0
        %1434 = vmatprep.subr.bf16.mxu0 0
        %1435 = vmatpush1.bf16.msra.mxu0 %v1311
        %1436 = vmatprep.subr.bf16.mxu0 0
        %1437 = vmatpush1.bf16.msra.mxu0 %v1310
        %1438 = vmatprep.subr.bf16.mxu0 0
        %1439 = vmatpush2.bf16.msra.mxu0 0
        %1440 = vmatprep.subr.bf16.mxu0 0
        %1441 = vmatpush2.bf16.msra.mxu0 0
        %1442 = vmatprep.subr.bf16.mxu0 0
        %1443 = vmatpush2.bf16.msra.mxu0 0
        %1444 = vmatprep.subr.bf16.mxu0 0
        %1445 = vmatpush2.bf16.msra.mxu0 0
        %1446 = vmatprep.subr.bf16.mxu0 0
        %1447 = vmatpush2.bf16.msra.mxu0 0
        %1448 = vmatprep.subr.bf16.mxu0 0
        %1449 = vmatpush2.bf16.msra.mxu0 0
        %1450 = vmatprep.subr.bf16.mxu0 0
        %1451 = vmatpush2.bf16.msra.mxu0 0
        %1452 = vmatprep.subr.bf16.mxu0 0
        %1453 = vmatpush2.bf16.msra.mxu0 0
        %1454 = vmatprep.mubr.bf16.mxu0 0
        %1455 = vmatmul.mubr.bf16.gmra.mxu0 %v916
        %v1456 = vpop.f32.mrf.mxu0
        %v1457 = vadd.f32 %v1333, %v1456
        %v1458 = vpop.f32.mrf.mxu0
        %v1459 = vpop.f32.mrf.mxu0
        %v1460 = vpop.f32.mrf.mxu0
        %1461 = vdwg.mxu0
        %1462 = vmatprep.subr.bf16.mxu0 0
        %1463 = vmatpush1.bf16.msra.mxu0 0
        %1464 = vmatprep.subr.bf16.mxu0 0
        %1465 = vmatpush1.bf16.msra.mxu0 0
        %1466 = vmatprep.subr.bf16.mxu0 0
        %1467 = vmatpush1.bf16.msra.mxu0 0
        %1468 = vmatprep.subr.bf16.mxu0 0
        %1469 = vmatpush1.bf16.msra.mxu0 0
        %1470 = vmatprep.subr.bf16.mxu0 0
        %1471 = vmatpush1.bf16.msra.mxu0 0
        %1472 = vmatprep.subr.bf16.mxu0 0
        %1473 = vmatpush1.bf16.msra.mxu0 0
        %1474 = vmatprep.subr.bf16.mxu0 0
        %1475 = vmatpush1.bf16.msra.mxu0 %v1313
        %1476 = vmatprep.subr.bf16.mxu0 0
        %1477 = vmatpush1.bf16.msra.mxu0 %v1312
        %1478 = vmatprep.subr.bf16.mxu0 0
        %1479 = vmatpush2.bf16.msra.mxu0 0
        %1480 = vmatprep.subr.bf16.mxu0 0
        %1481 = vmatpush2.bf16.msra.mxu0 0
        %1482 = vmatprep.subr.bf16.mxu0 0
        %1483 = vmatpush2.bf16.msra.mxu0 0
        %1484 = vmatprep.subr.bf16.mxu0 0
        %1485 = vmatpush2.bf16.msra.mxu0 0
        %1486 = vmatprep.subr.bf16.mxu0 0
        %1487 = vmatpush2.bf16.msra.mxu0 0
        %1488 = vmatprep.subr.bf16.mxu0 0
        %1489 = vmatpush2.bf16.msra.mxu0 0
        %1490 = vmatprep.subr.bf16.mxu0 0
        %1491 = vmatpush2.bf16.msra.mxu0 0
        %1492 = vmatprep.subr.bf16.mxu0 0
        %1493 = vmatpush2.bf16.msra.mxu0 0
        %1494 = vmatprep.mubr.bf16.mxu0 0
        %1495 = vmatmul.mubr.bf16.gmra.mxu0 %v916
        %v1496 = vpop.f32.mrf.mxu0
        %v1497 = vadd.f32 %v1337, %v1496
        %v1498 = vpop.f32.mrf.mxu0
        %v1499 = vpop.f32.mrf.mxu0
        %v1500 = vpop.f32.mrf.mxu0
        %1501 = vdwg.mxu0
        %v1502 = vpack.c.bf16 %v953, %v953
        %v1503 = vpack.c.bf16 %v993, %v993
        %v1504 = vpack.c.bf16 %v1033, %v1033
        %v1505 = vpack.c.bf16 %v1073, %v1073
        %v1506 = vpack.c.bf16 %v1165, %v1165
        %v1507 = vpack.c.bf16 %v1205, %v1205
        %v1508 = vpack.c.bf16 %v1245, %v1245
        %v1509 = vpack.c.bf16 %v1285, %v1285
        %vm1510 = vcmask 64512
        %v1512 = vsel %vm1510, %v1502, 0
        %v1515 = vsel %vm1510, %v1506, 0
        %1517 = vmatprep.subr.bf16.mxu0 0
        %1518 = vmatpush1.bf16.xpose.msra.mxu0 0
        %1519 = vmatprep.subr.bf16.mxu0 0
        %1520 = vmatpush1.bf16.xpose.msra.mxu0 0
        %1521 = vmatprep.subr.bf16.mxu0 0
        %1522 = vmatpush1.bf16.xpose.msra.mxu0 0
        %1523 = vmatprep.subr.bf16.mxu0 0
        %1524 = vmatpush1.bf16.xpose.msra.mxu0 0
        %1525 = vmatprep.subr.bf16.mxu0 0
        %1526 = vmatpush1.bf16.xpose.msra.mxu0 0
        %1527 = vmatprep.subr.bf16.mxu0 0
        %1528 = vmatpush1.bf16.xpose.msra.mxu0 0
        %1529 = vmatprep.subr.bf16.mxu0 0
        %1530 = vmatpush1.bf16.xpose.msra.mxu0 0
        %1531 = vmatprep.subr.bf16.mxu0 0
        %1532 = vmatpush1.bf16.xpose.msra.mxu0 %v1515
        %1533 = vmatprep.subr.bf16.mxu0 0
        %1534 = vmatpush2.bf16.xpose.msra.mxu0 0
        %1535 = vmatprep.subr.bf16.mxu0 0
        %1536 = vmatpush2.bf16.xpose.msra.mxu0 0
        %1537 = vmatprep.subr.bf16.mxu0 0
        %1538 = vmatpush2.bf16.xpose.msra.mxu0 0
        %1539 = vmatprep.subr.bf16.mxu0 0
        %1540 = vmatpush2.bf16.xpose.msra.mxu0 0
        %1541 = vmatprep.subr.bf16.mxu0 0
        %1542 = vmatpush2.bf16.xpose.msra.mxu0 0
        %1543 = vmatprep.subr.bf16.mxu0 0
        %1544 = vmatpush2.bf16.xpose.msra.mxu0 0
        %1545 = vmatprep.subr.bf16.mxu0 0
        %1546 = vmatpush2.bf16.xpose.msra.mxu0 0
        %1547 = vmatprep.subr.bf16.mxu0 0
        %1548 = vmatpush2.bf16.xpose.msra.mxu0 0
        %1549 = vmatprep.mubr.bf16.mxu0 0
        %1550 = vmatmul.mubr.bf16.gmra.mxu0 %v1512
        %v1551 = vpop.f32.mrf.mxu0
        %v1552 = vadd.f32 0.0, %v1551
        %v1553 = vpop.f32.mrf.mxu0
        %v1554 = vpop.f32.mrf.mxu0
        %v1555 = vpop.f32.mrf.mxu0
        %1556 = vdwg.mxu0
        %v1558 = vsel %vm1510, %v1503, 0
        %v1561 = vsel %vm1510, %v1507, 0
        %1563 = vmatprep.subr.bf16.mxu0 0
        %1564 = vmatpush1.bf16.xpose.msra.mxu0 0
        %1565 = vmatprep.subr.bf16.mxu0 0
        %1566 = vmatpush1.bf16.xpose.msra.mxu0 0
        %1567 = vmatprep.subr.bf16.mxu0 0
        %1568 = vmatpush1.bf16.xpose.msra.mxu0 0
        %1569 = vmatprep.subr.bf16.mxu0 0
        %1570 = vmatpush1.bf16.xpose.msra.mxu0 0
        %1571 = vmatprep.subr.bf16.mxu0 0
        %1572 = vmatpush1.bf16.xpose.msra.mxu0 0
        %1573 = vmatprep.subr.bf16.mxu0 0
        %1574 = vmatpush1.bf16.xpose.msra.mxu0 0
        %1575 = vmatprep.subr.bf16.mxu0 0
        %1576 = vmatpush1.bf16.xpose.msra.mxu0 0
        %1577 = vmatprep.subr.bf16.mxu0 0
        %1578 = vmatpush1.bf16.xpose.msra.mxu0 %v1561
        %1579 = vmatprep.subr.bf16.mxu0 0
        %1580 = vmatpush2.bf16.xpose.msra.mxu0 0
        %1581 = vmatprep.subr.bf16.mxu0 0
        %1582 = vmatpush2.bf16.xpose.msra.mxu0 0
        %1583 = vmatprep.subr.bf16.mxu0 0
        %1584 = vmatpush2.bf16.xpose.msra.mxu0 0
        %1585 = vmatprep.subr.bf16.mxu0 0
        %1586 = vmatpush2.bf16.xpose.msra.mxu0 0
        %1587 = vmatprep.subr.bf16.mxu0 0
        %1588 = vmatpush2.bf16.xpose.msra.mxu0 0
        %1589 = vmatprep.subr.bf16.mxu0 0
        %1590 = vmatpush2.bf16.xpose.msra.mxu0 0
        %1591 = vmatprep.subr.bf16.mxu0 0
        %1592 = vmatpush2.bf16.xpose.msra.mxu0 0
        %1593 = vmatprep.subr.bf16.mxu0 0
        %1594 = vmatpush2.bf16.xpose.msra.mxu0 0
        %1595 = vmatprep.mubr.bf16.mxu0 0
        %1596 = vmatmul.mubr.bf16.gmra.mxu0 %v1558
        %v1597 = vpop.f32.mrf.mxu0
        %v1598 = vadd.f32 0.0, %v1597
        %v1599 = vpop.f32.mrf.mxu0
        %v1600 = vpop.f32.mrf.mxu0
        %v1601 = vpop.f32.mrf.mxu0
        %1602 = vdwg.mxu0
        %v1604 = vsel %vm1510, %v1504, 0
        %v1607 = vsel %vm1510, %v1508, 0
        %1609 = vmatprep.subr.bf16.mxu0 0
        %1610 = vmatpush1.bf16.xpose.msra.mxu0 0
        %1611 = vmatprep.subr.bf16.mxu0 0
        %1612 = vmatpush1.bf16.xpose.msra.mxu0 0
        %1613 = vmatprep.subr.bf16.mxu0 0
        %1614 = vmatpush1.bf16.xpose.msra.mxu0 0
        %1615 = vmatprep.subr.bf16.mxu0 0
        %1616 = vmatpush1.bf16.xpose.msra.mxu0 0
        %1617 = vmatprep.subr.bf16.mxu0 0
        %1618 = vmatpush1.bf16.xpose.msra.mxu0 0
        %1619 = vmatprep.subr.bf16.mxu0 0
        %1620 = vmatpush1.bf16.xpose.msra.mxu0 0
        %1621 = vmatprep.subr.bf16.mxu0 0
        %1622 = vmatpush1.bf16.xpose.msra.mxu0 0
        %1623 = vmatprep.subr.bf16.mxu0 0
        %1624 = vmatpush1.bf16.xpose.msra.mxu0 %v1607
        %1625 = vmatprep.subr.bf16.mxu0 0
        %1626 = vmatpush2.bf16.xpose.msra.mxu0 0
        %1627 = vmatprep.subr.bf16.mxu0 0
        %1628 = vmatpush2.bf16.xpose.msra.mxu0 0
        %1629 = vmatprep.subr.bf16.mxu0 0
        %1630 = vmatpush2.bf16.xpose.msra.mxu0 0
        %1631 = vmatprep.subr.bf16.mxu0 0
        %1632 = vmatpush2.bf16.xpose.msra.mxu0 0
        %1633 = vmatprep.subr.bf16.mxu0 0
        %1634 = vmatpush2.bf16.xpose.msra.mxu0 0
        %1635 = vmatprep.subr.bf16.mxu0 0
        %1636 = vmatpush2.bf16.xpose.msra.mxu0 0
        %1637 = vmatprep.subr.bf16.mxu0 0
        %1638 = vmatpush2.bf16.xpose.msra.mxu0 0
        %1639 = vmatprep.subr.bf16.mxu0 0
        %1640 = vmatpush2.bf16.xpose.msra.mxu0 0
        %1641 = vmatprep.mubr.bf16.mxu0 0
        %1642 = vmatmul.mubr.bf16.gmra.mxu0 %v1604
        %v1643 = vpop.f32.mrf.mxu0
        %v1644 = vadd.f32 0.0, %v1643
        %v1645 = vpop.f32.mrf.mxu0
        %v1646 = vpop.f32.mrf.mxu0
        %v1647 = vpop.f32.mrf.mxu0
        %1648 = vdwg.mxu0
        %v1650 = vsel %vm1510, %v1505, 0
        %v1653 = vsel %vm1510, %v1509, 0
        %1655 = vmatprep.subr.bf16.mxu0 0
        %1656 = vmatpush1.bf16.xpose.msra.mxu0 0
        %1657 = vmatprep.subr.bf16.mxu0 0
        %1658 = vmatpush1.bf16.xpose.msra.mxu0 0
        %1659 = vmatprep.subr.bf16.mxu0 0
        %1660 = vmatpush1.bf16.xpose.msra.mxu0 0
        %1661 = vmatprep.subr.bf16.mxu0 0
        %1662 = vmatpush1.bf16.xpose.msra.mxu0 0
        %1663 = vmatprep.subr.bf16.mxu0 0
        %1664 = vmatpush1.bf16.xpose.msra.mxu0 0
        %1665 = vmatprep.subr.bf16.mxu0 0
        %1666 = vmatpush1.bf16.xpose.msra.mxu0 0
        %1667 = vmatprep.subr.bf16.mxu0 0
        %1668 = vmatpush1.bf16.xpose.msra.mxu0 0
        %1669 = vmatprep.subr.bf16.mxu0 0
        %1670 = vmatpush1.bf16.xpose.msra.mxu0 %v1653
        %1671 = vmatprep.subr.bf16.mxu0 0
        %1672 = vmatpush2.bf16.xpose.msra.mxu0 0
        %1673 = vmatprep.subr.bf16.mxu0 0
        %1674 = vmatpush2.bf16.xpose.msra.mxu0 0
        %1675 = vmatprep.subr.bf16.mxu0 0
        %1676 = vmatpush2.bf16.xpose.msra.mxu0 0
        %1677 = vmatprep.subr.bf16.mxu0 0
        %1678 = vmatpush2.bf16.xpose.msra.mxu0 0
        %1679 = vmatprep.subr.bf16.mxu0 0
        %1680 = vmatpush2.bf16.xpose.msra.mxu0 0
        %1681 = vmatprep.subr.bf16.mxu0 0
        %1682 = vmatpush2.bf16.xpose.msra.mxu0 0
        %1683 = vmatprep.subr.bf16.mxu0 0
        %1684 = vmatpush2.bf16.xpose.msra.mxu0 0
        %1685 = vmatprep.subr.bf16.mxu0 0
        %1686 = vmatpush2.bf16.xpose.msra.mxu0 0
        %1687 = vmatprep.mubr.bf16.mxu0 0
        %1688 = vmatmul.mubr.bf16.gmra.mxu0 %v1650
        %v1689 = vpop.f32.mrf.mxu0
        %v1690 = vadd.f32 0.0, %v1689
        %v1691 = vpop.f32.mrf.mxu0
        %v1692 = vpop.f32.mrf.mxu0
        %v1693 = vpop.f32.mrf.mxu0
        %1694 = vdwg.mxu0
        %v1695 = vmul.f32 %v1552, 0.35355338
        %v1696 = vmul.f32 %v1598, 0.35355338
        %v1697 = vmul.f32 %v1644, 0.35355338
        %v1698 = vmul.f32 %v1690, 0.35355338
        %v1699 = vsel %vm1510, %v1695, -inf
        %1700 = vmax.xlane.f32.xlu0 %v1699
        %v1701 = vpop.xlane.xlu0 %1700
        %v1702 = vsel %vm1510, %v1696, -inf
        %1703 = vmax.xlane.f32.xlu0 %v1702
        %v1704 = vpop.xlane.xlu0 %1703
        %v1705 = vsel %vm1510, %v1697, -inf
        %1706 = vmax.xlane.f32.xlu0 %v1705
        %v1707 = vpop.xlane.xlu0 %1706
        %v1708 = vsel %vm1510, %v1698, -inf
        %1709 = vmax.xlane.f32.xlu0 %v1708
        %v1710 = vpop.xlane.xlu0 %1709
        %v1711 = vsub.f32 %v1695, %v1701
        %v1712 = vsub.f32 %v1696, %v1704
        %v1713 = vsub.f32 %v1697, %v1707
        %v1714 = vsub.f32 %v1698, %v1710
        %v1715 = vmul.f32 %v1711, 1.442695
        %v1716 = vpow.pop %v1715
        %v1717 = vmul.f32 %v1712, 1.442695
        %v1718 = vpow.pop %v1717
        %v1719 = vmul.f32 %v1713, 1.442695
        %v1720 = vpow.pop %v1719
        %v1721 = vmul.f32 %v1714, 1.442695
        %v1722 = vpow.pop %v1721
        %v1723 = vsel %vm1510, %v1716, 0.0
        %1724 = vadd.xlane.f32.xlu0 %v1723
        %v1725 = vpop.xlane.xlu0 %1724
        %v1726 = vsel %vm1510, %v1718, 0.0
        %1727 = vadd.xlane.f32.xlu0 %v1726
        %v1728 = vpop.xlane.xlu0 %1727
        %v1729 = vsel %vm1510, %v1720, 0.0
        %1730 = vadd.xlane.f32.xlu0 %v1729
        %v1731 = vpop.xlane.xlu0 %1730
        %v1732 = vsel %vm1510, %v1722, 0.0
        %1733 = vadd.xlane.f32.xlu0 %v1732
        %v1734 = vpop.xlane.xlu0 %1733
        %v1735 = vrcp.pop %v1725
        %v1736 = vrcp.pop %v1728
        %v1737 = vrcp.pop %v1731
        %v1738 = vrcp.pop %v1734
        %v1739 = vmul.f32 %v1725, %v1735
        %v1740 = vmul.f32 %v1728, %v1736
        %v1741 = vmul.f32 %v1731, %v1737
        %v1742 = vmul.f32 %v1734, %v1738
        %v1743 = vsub.f32 2.0, %v1739
        %v1744 = vsub.f32 2.0, %v1740
        %v1745 = vsub.f32 2.0, %v1741
        %v1746 = vsub.f32 2.0, %v1742
        %v1747 = vmul.f32 %v1735, %v1743
        %v1748 = vmul.f32 %v1736, %v1744
        %v1749 = vmul.f32 %v1737, %v1745
        %v1750 = vmul.f32 %v1738, %v1746
        %v1751 = vmul.f32 %v1716, %v1747
        %v1752 = vmul.f32 %v1718, %v1748
        %v1753 = vmul.f32 %v1720, %v1749
        %v1754 = vmul.f32 %v1722, %v1750
        %v1755 = vpack.c.bf16 %v1751, %v1751
        %v1756 = vpack.c.bf16 %v1752, %v1752
        %v1757 = vpack.c.bf16 %v1753, %v1753
        %v1758 = vpack.c.bf16 %v1754, %v1754
        %v1759 = vpack.c.bf16 %v1377, %v1377
        %v1760 = vpack.c.bf16 %v1417, %v1417
        %v1761 = vpack.c.bf16 %v1457, %v1457
        %v1762 = vpack.c.bf16 %v1497, %v1497
        %v1764 = vsel %vm1510, %v1755, 0
        %vm1766 = vcmask 1043456
        %v1768 = vsel %vm1766, %v1759, 0
        %1770 = vmatprep.subr.bf16.mxu0 0
        %1771 = vmatpush1.bf16.msra.mxu0 0
        %1772 = vmatprep.subr.bf16.mxu0 0
        %1773 = vmatpush1.bf16.msra.mxu0 0
        %1774 = vmatprep.subr.bf16.mxu0 0
        %1775 = vmatpush1.bf16.msra.mxu0 0
        %1776 = vmatprep.subr.bf16.mxu0 0
        %1777 = vmatpush1.bf16.msra.mxu0 0
        %1778 = vmatprep.subr.bf16.mxu0 0
        %1779 = vmatpush1.bf16.msra.mxu0 0
        %1780 = vmatprep.subr.bf16.mxu0 0
        %1781 = vmatpush1.bf16.msra.mxu0 0
        %1782 = vmatprep.subr.bf16.mxu0 0
        %1783 = vmatpush1.bf16.msra.mxu0 0
        %1784 = vmatprep.subr.bf16.mxu0 0
        %1785 = vmatpush1.bf16.msra.mxu0 %v1768
        %1786 = vmatprep.subr.bf16.mxu0 0
        %1787 = vmatpush2.bf16.msra.mxu0 0
        %1788 = vmatprep.subr.bf16.mxu0 0
        %1789 = vmatpush2.bf16.msra.mxu0 0
        %1790 = vmatprep.subr.bf16.mxu0 0
        %1791 = vmatpush2.bf16.msra.mxu0 0
        %1792 = vmatprep.subr.bf16.mxu0 0
        %1793 = vmatpush2.bf16.msra.mxu0 0
        %1794 = vmatprep.subr.bf16.mxu0 0
        %1795 = vmatpush2.bf16.msra.mxu0 0
        %1796 = vmatprep.subr.bf16.mxu0 0
        %1797 = vmatpush2.bf16.msra.mxu0 0
        %1798 = vmatprep.subr.bf16.mxu0 0
        %1799 = vmatpush2.bf16.msra.mxu0 0
        %1800 = vmatprep.subr.bf16.mxu0 0
        %1801 = vmatpush2.bf16.msra.mxu0 0
        %1802 = vmatprep.mubr.bf16.mxu0 0
        %1803 = vmatmul.mubr.bf16.gmra.mxu0 %v1764
        %v1804 = vpop.f32.mrf.mxu0
        %v1805 = vadd.f32 0.0, %v1804
        %v1806 = vpop.f32.mrf.mxu0
        %v1807 = vpop.f32.mrf.mxu0
        %v1808 = vpop.f32.mrf.mxu0
        %1809 = vdwg.mxu0
        %v1811 = vsel %vm1510, %v1756, 0
        %v1814 = vsel %vm1766, %v1760, 0
        %1816 = vmatprep.subr.bf16.mxu0 0
        %1817 = vmatpush1.bf16.msra.mxu0 0
        %1818 = vmatprep.subr.bf16.mxu0 0
        %1819 = vmatpush1.bf16.msra.mxu0 0
        %1820 = vmatprep.subr.bf16.mxu0 0
        %1821 = vmatpush1.bf16.msra.mxu0 0
        %1822 = vmatprep.subr.bf16.mxu0 0
        %1823 = vmatpush1.bf16.msra.mxu0 0
        %1824 = vmatprep.subr.bf16.mxu0 0
        %1825 = vmatpush1.bf16.msra.mxu0 0
        %1826 = vmatprep.subr.bf16.mxu0 0
        %1827 = vmatpush1.bf16.msra.mxu0 0
        %1828 = vmatprep.subr.bf16.mxu0 0
        %1829 = vmatpush1.bf16.msra.mxu0 0
        %1830 = vmatprep.subr.bf16.mxu0 0
        %1831 = vmatpush1.bf16.msra.mxu0 %v1814
        %1832 = vmatprep.subr.bf16.mxu0 0
        %1833 = vmatpush2.bf16.msra.mxu0 0
        %1834 = vmatprep.subr.bf16.mxu0 0
        %1835 = vmatpush2.bf16.msra.mxu0 0
        %1836 = vmatprep.subr.bf16.mxu0 0
        %1837 = vmatpush2.bf16.msra.mxu0 0
        %1838 = vmatprep.subr.bf16.mxu0 0
        %1839 = vmatpush2.bf16.msra.mxu0 0
        %1840 = vmatprep.subr.bf16.mxu0 0
        %1841 = vmatpush2.bf16.msra.mxu0 0
        %1842 = vmatprep.subr.bf16.mxu0 0
        %1843 = vmatpush2.bf16.msra.mxu0 0
        %1844 = vmatprep.subr.bf16.mxu0 0
        %1845 = vmatpush2.bf16.msra.mxu0 0
        %1846 = vmatprep.subr.bf16.mxu0 0
        %1847 = vmatpush2.bf16.msra.mxu0 0
        %1848 = vmatprep.mubr.bf16.mxu0 0
        %1849 = vmatmul.mubr.bf16.gmra.mxu0 %v1811
        %v1850 = vpop.f32.mrf.mxu0
        %v1851 = vadd.f32 0.0, %v1850
        %v1852 = vpop.f32.mrf.mxu0
        %v1853 = vpop.f32.mrf.mxu0
        %v1854 = vpop.f32.mrf.mxu0
        %1855 = vdwg.mxu0
        %v1857 = vsel %vm1510, %v1757, 0
        %v1860 = vsel %vm1766, %v1761, 0
        %1862 = vmatprep.subr.bf16.mxu0 0
        %1863 = vmatpush1.bf16.msra.mxu0 0
        %1864 = vmatprep.subr.bf16.mxu0 0
        %1865 = vmatpush1.bf16.msra.mxu0 0
        %1866 = vmatprep.subr.bf16.mxu0 0
        %1867 = vmatpush1.bf16.msra.mxu0 0
        %1868 = vmatprep.subr.bf16.mxu0 0
        %1869 = vmatpush1.bf16.msra.mxu0 0
        %1870 = vmatprep.subr.bf16.mxu0 0
        %1871 = vmatpush1.bf16.msra.mxu0 0
        %1872 = vmatprep.subr.bf16.mxu0 0
        %1873 = vmatpush1.bf16.msra.mxu0 0
        %1874 = vmatprep.subr.bf16.mxu0 0
        %1875 = vmatpush1.bf16.msra.mxu0 0
        %1876 = vmatprep.subr.bf16.mxu0 0
        %1877 = vmatpush1.bf16.msra.mxu0 %v1860
        %1878 = vmatprep.subr.bf16.mxu0 0
        %1879 = vmatpush2.bf16.msra.mxu0 0
        %1880 = vmatprep.subr.bf16.mxu0 0
        %1881 = vmatpush2.bf16.msra.mxu0 0
        %1882 = vmatprep.subr.bf16.mxu0 0
        %1883 = vmatpush2.bf16.msra.mxu0 0
        %1884 = vmatprep.subr.bf16.mxu0 0
        %1885 = vmatpush2.bf16.msra.mxu0 0
        %1886 = vmatprep.subr.bf16.mxu0 0
        %1887 = vmatpush2.bf16.msra.mxu0 0
        %1888 = vmatprep.subr.bf16.mxu0 0
        %1889 = vmatpush2.bf16.msra.mxu0 0
        %1890 = vmatprep.subr.bf16.mxu0 0
        %1891 = vmatpush2.bf16.msra.mxu0 0
        %1892 = vmatprep.subr.bf16.mxu0 0
        %1893 = vmatpush2.bf16.msra.mxu0 0
        %1894 = vmatprep.mubr.bf16.mxu0 0
        %1895 = vmatmul.mubr.bf16.gmra.mxu0 %v1857
        %v1896 = vpop.f32.mrf.mxu0
        %v1897 = vadd.f32 0.0, %v1896
        %v1898 = vpop.f32.mrf.mxu0
        %v1899 = vpop.f32.mrf.mxu0
        %v1900 = vpop.f32.mrf.mxu0
        %1901 = vdwg.mxu0
        %v1903 = vsel %vm1510, %v1758, 0
        %v1906 = vsel %vm1766, %v1762, 0
        %1908 = vmatprep.subr.bf16.mxu0 0
        %1909 = vmatpush1.bf16.msra.mxu0 0
        %1910 = vmatprep.subr.bf16.mxu0 0
        %1911 = vmatpush1.bf16.msra.mxu0 0
        %1912 = vmatprep.subr.bf16.mxu0 0
        %1913 = vmatpush1.bf16.msra.mxu0 0
        %1914 = vmatprep.subr.bf16.mxu0 0
        %1915 = vmatpush1.bf16.msra.mxu0 0
        %1916 = vmatprep.subr.bf16.mxu0 0
        %1917 = vmatpush1.bf16.msra.mxu0 0
        %1918 = vmatprep.subr.bf16.mxu0 0
        %1919 = vmatpush1.bf16.msra.mxu0 0
        %1920 = vmatprep.subr.bf16.mxu0 0
        %1921 = vmatpush1.bf16.msra.mxu0 0
        %1922 = vmatprep.subr.bf16.mxu0 0
        %1923 = vmatpush1.bf16.msra.mxu0 %v1906
        %1924 = vmatprep.subr.bf16.mxu0 0
        %1925 = vmatpush2.bf16.msra.mxu0 0
        %1926 = vmatprep.subr.bf16.mxu0 0
        %1927 = vmatpush2.bf16.msra.mxu0 0
        %1928 = vmatprep.subr.bf16.mxu0 0
        %1929 = vmatpush2.bf16.msra.mxu0 0
        %1930 = vmatprep.subr.bf16.mxu0 0
        %1931 = vmatpush2.bf16.msra.mxu0 0
        %1932 = vmatprep.subr.bf16.mxu0 0
        %1933 = vmatpush2.bf16.msra.mxu0 0
        %1934 = vmatprep.subr.bf16.mxu0 0
        %1935 = vmatpush2.bf16.msra.mxu0 0
        %1936 = vmatprep.subr.bf16.mxu0 0
        %1937 = vmatpush2.bf16.msra.mxu0 0
        %1938 = vmatprep.subr.bf16.mxu0 0
        %1939 = vmatpush2.bf16.msra.mxu0 0
        %1940 = vmatprep.mubr.bf16.mxu0 0
        %1941 = vmatmul.mubr.bf16.gmra.mxu0 %v1903
        %v1942 = vpop.f32.mrf.mxu0
        %v1943 = vadd.f32 0.0, %v1942
        %v1944 = vpop.f32.mrf.mxu0
        %v1945 = vpop.f32.mrf.mxu0
        %v1946 = vpop.f32.mrf.mxu0
        %1947 = vdwg.mxu0
        %v1948 = vpack.c.bf16 %v1805, %v1805
        %v1949 = vpack.c.bf16 %v1851, %v1851
        %v1950 = vpack.c.bf16 %v1897, %v1897
        %v1951 = vpack.c.bf16 %v1943, %v1943
        %v1952 = vld [vmem:[%s8] sm:$0xff]
        %v1953 = vld [vmem:[%s8 + $0x8] sm:$0xff]
        %v1954 = vld [vmem:[%s8 + $0x10] sm:$0xff]
        %v1955 = vld [vmem:[%s8 + $0x18] sm:$0xff]
        %v1956 = vpack.c.bf16 %v1952, %v1952
        %v1957 = vpack.c.bf16 %v1953, %v1953
        %v1958 = vpack.c.bf16 %v1954, %v1954
        %v1959 = vpack.c.bf16 %v1955, %v1955
        %v1961 = vsel %vm1510, %v1948, 0
        %v1964 = vsel %vm1766, %v1956, 0
        %1966 = vmatprep.subr.bf16.mxu0 0
        %1967 = vmatpush1.bf16.msra.mxu0 0
        %1968 = vmatprep.subr.bf16.mxu0 0
        %1969 = vmatpush1.bf16.msra.mxu0 0
        %1970 = vmatprep.subr.bf16.mxu0 0
        %1971 = vmatpush1.bf16.msra.mxu0 0
        %1972 = vmatprep.subr.bf16.mxu0 0
        %1973 = vmatpush1.bf16.msra.mxu0 0
        %1974 = vmatprep.subr.bf16.mxu0 0
        %1975 = vmatpush1.bf16.msra.mxu0 0
        %1976 = vmatprep.subr.bf16.mxu0 0
        %1977 = vmatpush1.bf16.msra.mxu0 0
        %1978 = vmatprep.subr.bf16.mxu0 0
        %1979 = vmatpush1.bf16.msra.mxu0 0
        %1980 = vmatprep.subr.bf16.mxu0 0
        %1981 = vmatpush1.bf16.msra.mxu0 %v1964
        %1982 = vmatprep.subr.bf16.mxu0 0
        %1983 = vmatpush2.bf16.msra.mxu0 0
        %1984 = vmatprep.subr.bf16.mxu0 0
        %1985 = vmatpush2.bf16.msra.mxu0 0
        %1986 = vmatprep.subr.bf16.mxu0 0
        %1987 = vmatpush2.bf16.msra.mxu0 0
        %1988 = vmatprep.subr.bf16.mxu0 0
        %1989 = vmatpush2.bf16.msra.mxu0 0
        %1990 = vmatprep.subr.bf16.mxu0 0
        %1991 = vmatpush2.bf16.msra.mxu0 0
        %1992 = vmatprep.subr.bf16.mxu0 0
        %1993 = vmatpush2.bf16.msra.mxu0 0
        %1994 = vmatprep.subr.bf16.mxu0 0
        %1995 = vmatpush2.bf16.msra.mxu0 0
        %1996 = vmatprep.subr.bf16.mxu0 0
        %1997 = vmatpush2.bf16.msra.mxu0 0
        %1998 = vmatprep.mubr.bf16.mxu0 0
        %1999 = vmatmul.mubr.bf16.gmra.mxu0 %v1961
        %v2000 = vpop.f32.mrf.mxu0
        %v2001 = vadd.f32 0.0, %v2000
        %v2002 = vpop.f32.mrf.mxu0
        %v2003 = vpop.f32.mrf.mxu0
        %v2004 = vpop.f32.mrf.mxu0
        %2005 = vdwg.mxu0
        %v2007 = vsel %vm1510, %v1949, 0
        %v2010 = vsel %vm1766, %v1957, 0
        %2012 = vmatprep.subr.bf16.mxu0 0
        %2013 = vmatpush1.bf16.msra.mxu0 0
        %2014 = vmatprep.subr.bf16.mxu0 0
        %2015 = vmatpush1.bf16.msra.mxu0 0
        %2016 = vmatprep.subr.bf16.mxu0 0
        %2017 = vmatpush1.bf16.msra.mxu0 0
        %2018 = vmatprep.subr.bf16.mxu0 0
        %2019 = vmatpush1.bf16.msra.mxu0 0
        %2020 = vmatprep.subr.bf16.mxu0 0
        %2021 = vmatpush1.bf16.msra.mxu0 0
        %2022 = vmatprep.subr.bf16.mxu0 0
        %2023 = vmatpush1.bf16.msra.mxu0 0
        %2024 = vmatprep.subr.bf16.mxu0 0
        %2025 = vmatpush1.bf16.msra.mxu0 0
        %2026 = vmatprep.subr.bf16.mxu0 0
        %2027 = vmatpush1.bf16.msra.mxu0 %v2010
        %2028 = vmatprep.subr.bf16.mxu0 0
        %2029 = vmatpush2.bf16.msra.mxu0 0
        %2030 = vmatprep.subr.bf16.mxu0 0
        %2031 = vmatpush2.bf16.msra.mxu0 0
        %2032 = vmatprep.subr.bf16.mxu0 0
        %2033 = vmatpush2.bf16.msra.mxu0 0
        %2034 = vmatprep.subr.bf16.mxu0 0
        %2035 = vmatpush2.bf16.msra.mxu0 0
        %2036 = vmatprep.subr.bf16.mxu0 0
        %2037 = vmatpush2.bf16.msra.mxu0 0
        %2038 = vmatprep.subr.bf16.mxu0 0
        %2039 = vmatpush2.bf16.msra.mxu0 0
        %2040 = vmatprep.subr.bf16.mxu0 0
        %2041 = vmatpush2.bf16.msra.mxu0 0
        %2042 = vmatprep.subr.bf16.mxu0 0
        %2043 = vmatpush2.bf16.msra.mxu0 0
        %2044 = vmatprep.mubr.bf16.mxu0 0
        %2045 = vmatmul.mubr.bf16.gmra.mxu0 %v2007
        %v2046 = vpop.f32.mrf.mxu0
        %v2047 = vadd.f32 0.0, %v2046
        %v2048 = vpop.f32.mrf.mxu0
        %v2049 = vpop.f32.mrf.mxu0
        %v2050 = vpop.f32.mrf.mxu0
        %2051 = vdwg.mxu0
        %v2053 = vsel %vm1510, %v1950, 0
        %v2056 = vsel %vm1766, %v1958, 0
        %2058 = vmatprep.subr.bf16.mxu0 0
        %2059 = vmatpush1.bf16.msra.mxu0 0
        %2060 = vmatprep.subr.bf16.mxu0 0
        %2061 = vmatpush1.bf16.msra.mxu0 0
        %2062 = vmatprep.subr.bf16.mxu0 0
        %2063 = vmatpush1.bf16.msra.mxu0 0
        %2064 = vmatprep.subr.bf16.mxu0 0
        %2065 = vmatpush1.bf16.msra.mxu0 0
        %2066 = vmatprep.subr.bf16.mxu0 0
        %2067 = vmatpush1.bf16.msra.mxu0 0
        %2068 = vmatprep.subr.bf16.mxu0 0
        %2069 = vmatpush1.bf16.msra.mxu0 0
        %2070 = vmatprep.subr.bf16.mxu0 0
        %2071 = vmatpush1.bf16.msra.mxu0 0
        %2072 = vmatprep.subr.bf16.mxu0 0
        %2073 = vmatpush1.bf16.msra.mxu0 %v2056
        %2074 = vmatprep.subr.bf16.mxu0 0
        %2075 = vmatpush2.bf16.msra.mxu0 0
        %2076 = vmatprep.subr.bf16.mxu0 0
        %2077 = vmatpush2.bf16.msra.mxu0 0
        %2078 = vmatprep.subr.bf16.mxu0 0
        %2079 = vmatpush2.bf16.msra.mxu0 0
        %2080 = vmatprep.subr.bf16.mxu0 0
        %2081 = vmatpush2.bf16.msra.mxu0 0
        %2082 = vmatprep.subr.bf16.mxu0 0
        %2083 = vmatpush2.bf16.msra.mxu0 0
        %2084 = vmatprep.subr.bf16.mxu0 0
        %2085 = vmatpush2.bf16.msra.mxu0 0
        %2086 = vmatprep.subr.bf16.mxu0 0
        %2087 = vmatpush2.bf16.msra.mxu0 0
        %2088 = vmatprep.subr.bf16.mxu0 0
        %2089 = vmatpush2.bf16.msra.mxu0 0
        %2090 = vmatprep.mubr.bf16.mxu0 0
        %2091 = vmatmul.mubr.bf16.gmra.mxu0 %v2053
        %v2092 = vpop.f32.mrf.mxu0
        %v2093 = vadd.f32 0.0, %v2092
        %v2094 = vpop.f32.mrf.mxu0
        %v2095 = vpop.f32.mrf.mxu0
        %v2096 = vpop.f32.mrf.mxu0
        %2097 = vdwg.mxu0
        %v2099 = vsel %vm1510, %v1951, 0
        %v2102 = vsel %vm1766, %v1959, 0
        %2104 = vmatprep.subr.bf16.mxu0 0
        %2105 = vmatpush1.bf16.msra.mxu0 0
        %2106 = vmatprep.subr.bf16.mxu0 0
        %2107 = vmatpush1.bf16.msra.mxu0 0
        %2108 = vmatprep.subr.bf16.mxu0 0
        %2109 = vmatpush1.bf16.msra.mxu0 0
        %2110 = vmatprep.subr.bf16.mxu0 0
        %2111 = vmatpush1.bf16.msra.mxu0 0
        %2112 = vmatprep.subr.bf16.mxu0 0
        %2113 = vmatpush1.bf16.msra.mxu0 0
        %2114 = vmatprep.subr.bf16.mxu0 0
        %2115 = vmatpush1.bf16.msra.mxu0 0
        %2116 = vmatprep.subr.bf16.mxu0 0
        %2117 = vmatpush1.bf16.msra.mxu0 0
        %2118 = vmatprep.subr.bf16.mxu0 0
        %2119 = vmatpush1.bf16.msra.mxu0 %v2102
        %2120 = vmatprep.subr.bf16.mxu0 0
        %2121 = vmatpush2.bf16.msra.mxu0 0
        %2122 = vmatprep.subr.bf16.mxu0 0
        %2123 = vmatpush2.bf16.msra.mxu0 0
        %2124 = vmatprep.subr.bf16.mxu0 0
        %2125 = vmatpush2.bf16.msra.mxu0 0
        %2126 = vmatprep.subr.bf16.mxu0 0
        %2127 = vmatpush2.bf16.msra.mxu0 0
        %2128 = vmatprep.subr.bf16.mxu0 0
        %2129 = vmatpush2.bf16.msra.mxu0 0
        %2130 = vmatprep.subr.bf16.mxu0 0
        %2131 = vmatpush2.bf16.msra.mxu0 0
        %2132 = vmatprep.subr.bf16.mxu0 0
        %2133 = vmatpush2.bf16.msra.mxu0 0
        %2134 = vmatprep.subr.bf16.mxu0 0
        %2135 = vmatpush2.bf16.msra.mxu0 0
        %2136 = vmatprep.mubr.bf16.mxu0 0
        %2137 = vmatmul.mubr.bf16.gmra.mxu0 %v2099
        %v2138 = vpop.f32.mrf.mxu0
        %v2139 = vadd.f32 0.0, %v2138
        %v2140 = vpop.f32.mrf.mxu0
        %v2141 = vpop.f32.mrf.mxu0
        %v2142 = vpop.f32.mrf.mxu0
        %2143 = vdwg.mxu0
        %v2144 = vsel %vm914, %v2001, 0.0
        %v2145 = vsel %vm914, %v2047, 0.0
        %v2146 = vadd.f32 %v2144, %v2145
        %v2147 = vsel %vm914, %v2093, 0.0
        %v2148 = vadd.f32 %v2146, %v2147
        %v2149 = vsel %vm914, %v2139, 0.0
        %v2150 = vadd.f32 %v2148, %v2149
        %v2151 = vld [vmem:[%s9] sm:$0x1]
        %v2153 = vlaneseq
        %v2154 = vshrl.u32 %v2153, 7
        %v2155 = vsub.s32 0, %v2154
        %v2156 = vrot.slane %v2151, %v2155
        %v2158 = vadd.f32 %v2150, %v2156
        %v2159 = vadd.f32 %v859, %v2158
        %v2160 = vsel %vm914, %v2159, 0.0
        %2161 = vadd.xlane.f32.xlu0 %v2160
        %v2162 = vpop.xlane.xlu0 %2161
        %v2163 = vrcp.pop 32.0
        %v2164 = vmul.f32 %v2162, %v2163
        %v2165 = vsub.f32 %v2159, %v2164
        %v2166 = vmul.f32 %v2165, %v2165
        %v2167 = vsel %vm914, %v2166, 0.0
        %2168 = vadd.xlane.f32.xlu0 %v2167
        %v2169 = vpop.xlane.xlu0 %2168
        %v2170 = vmul.f32 %v2169, %v2163
        %v2171 = vadd.f32 %v2170, 1e-05
        %v2172 = vrsqrt.pop %v2171
        %v2173 = vmul.f32 %v2165, %v2172
        %v2174 = vld [vmem:[%s10] sm:$0x1]
        %v2176 = vlaneseq
        %v2177 = vshrl.u32 %v2176, 7
        %v2178 = vsub.s32 0, %v2177
        %v2179 = vrot.slane %v2174, %v2178
        %v2181 = vmul.f32 %v2173, %v2179
        %v2182 = vld [vmem:[%s11] sm:$0x1]
        %v2184 = vlaneseq
        %v2185 = vshrl.u32 %v2184, 7
        %v2186 = vsub.s32 0, %v2185
        %v2187 = vrot.slane %v2182, %v2186
        %v2189 = vadd.f32 %v2181, %v2187
        %v2190 = vpack.c.bf16 %v2189, %v2189
        %v2191 = vpack.c.bf16 %v860, %v860
        %v2192 = vld [vmem:[%s12] sm:$0xff]
        %v2193 = vld [vmem:[%s12 + $0x8] sm:$0xff]
        %v2194 = vld [vmem:[%s12 + $0x10] sm:$0xff]
        %v2195 = vld [vmem:[%s12 + $0x18] sm:$0xff]
        %v2196 = vld [vmem:[%s12 + $0x20] sm:$0xff]
        %v2197 = vld [vmem:[%s12 + $0x28] sm:$0xff]
        %v2198 = vld [vmem:[%s12 + $0x30] sm:$0xff]
        %v2199 = vld [vmem:[%s12 + $0x38] sm:$0xff]
        %v2200 = vld [vmem:[%s12 + $0x40] sm:$0xff]
        %v2201 = vld [vmem:[%s12 + $0x48] sm:$0xff]
        %v2202 = vld [vmem:[%s12 + $0x50] sm:$0xff]
        %v2203 = vld [vmem:[%s12 + $0x58] sm:$0xff]
        %v2204 = vld [vmem:[%s12 + $0x60] sm:$0xff]
        %v2205 = vld [vmem:[%s12 + $0x68] sm:$0xff]
        %v2206 = vld [vmem:[%s12 + $0x70] sm:$0xff]
        %v2207 = vld [vmem:[%s12 + $0x78] sm:$0xff]
        %v2208 = vpack.c.bf16 %v2193, %v2192
        %v2209 = vpack.c.bf16 %v2195, %v2194
        %v2210 = vpack.c.bf16 %v2197, %v2196
        %v2211 = vpack.c.bf16 %v2199, %v2198
        %v2212 = vpack.c.bf16 %v2201, %v2200
        %v2213 = vpack.c.bf16 %v2203, %v2202
        %v2214 = vpack.c.bf16 %v2205, %v2204
        %v2215 = vpack.c.bf16 %v2207, %v2206
        %v2216 = vld [vmem:[%s13] sm:$0x1]
        %v2217 = vld [vmem:[%s13 + $0x1] sm:$0x1]
        %v2218 = vld [vmem:[%s13 + $0x2] sm:$0x1]
        %v2219 = vld [vmem:[%s13 + $0x3] sm:$0x1]
        %v2224 = vlaneseq
        %v2225 = vshrl.u32 %v2224, 7
        %v2226 = vsub.s32 0, %v2225
        %v2227 = vrot.slane %v2216, %v2226
        %v2228 = vlaneseq
        %v2229 = vshrl.u32 %v2228, 7
        %v2230 = vsub.s32 0, %v2229
        %v2231 = vrot.slane %v2217, %v2230
        %v2232 = vlaneseq
        %v2233 = vshrl.u32 %v2232, 7
        %v2234 = vsub.s32 0, %v2233
        %v2235 = vrot.slane %v2218, %v2234
        %v2236 = vlaneseq
        %v2237 = vshrl.u32 %v2236, 7
        %v2238 = vsub.s32 0, %v2237
        %v2239 = vrot.slane %v2219, %v2238
        %v2245 = vsel %vm914, %v2190, 0
        %2247 = vmatprep.subr.bf16.mxu0 0
        %2248 = vmatpush1.bf16.msra.mxu0 0
        %2249 = vmatprep.subr.bf16.mxu0 0
        %2250 = vmatpush1.bf16.msra.mxu0 0
        %2251 = vmatprep.subr.bf16.mxu0 0
        %2252 = vmatpush1.bf16.msra.mxu0 0
        %2253 = vmatprep.subr.bf16.mxu0 0
        %2254 = vmatpush1.bf16.msra.mxu0 0
        %2255 = vmatprep.subr.bf16.mxu0 0
        %2256 = vmatpush1.bf16.msra.mxu0 0
        %2257 = vmatprep.subr.bf16.mxu0 0
        %2258 = vmatpush1.bf16.msra.mxu0 0
        %2259 = vmatprep.subr.bf16.mxu0 0
        %2260 = vmatpush1.bf16.msra.mxu0 %v2209
        %2261 = vmatprep.subr.bf16.mxu0 0
        %2262 = vmatpush1.bf16.msra.mxu0 %v2208
        %2263 = vmatprep.subr.bf16.mxu0 0
        %2264 = vmatpush2.bf16.msra.mxu0 0
        %2265 = vmatprep.subr.bf16.mxu0 0
        %2266 = vmatpush2.bf16.msra.mxu0 0
        %2267 = vmatprep.subr.bf16.mxu0 0
        %2268 = vmatpush2.bf16.msra.mxu0 0
        %2269 = vmatprep.subr.bf16.mxu0 0
        %2270 = vmatpush2.bf16.msra.mxu0 0
        %2271 = vmatprep.subr.bf16.mxu0 0
        %2272 = vmatpush2.bf16.msra.mxu0 0
        %2273 = vmatprep.subr.bf16.mxu0 0
        %2274 = vmatpush2.bf16.msra.mxu0 0
        %2275 = vmatprep.subr.bf16.mxu0 0
        %2276 = vmatpush2.bf16.msra.mxu0 0
        %2277 = vmatprep.subr.bf16.mxu0 0
        %2278 = vmatpush2.bf16.msra.mxu0 0
        %2279 = vmatprep.mubr.bf16.mxu0 0
        %2280 = vmatmul.mubr.bf16.gmra.mxu0 %v2245
        %v2281 = vpop.f32.mrf.mxu0
        %v2282 = vadd.f32 %v2227, %v2281
        %v2283 = vpop.f32.mrf.mxu0
        %v2284 = vpop.f32.mrf.mxu0
        %v2285 = vpop.f32.mrf.mxu0
        %2286 = vdwg.mxu0
        %2287 = vmatprep.subr.bf16.mxu0 0
        %2288 = vmatpush1.bf16.msra.mxu0 0
        %2289 = vmatprep.subr.bf16.mxu0 0
        %2290 = vmatpush1.bf16.msra.mxu0 0
        %2291 = vmatprep.subr.bf16.mxu0 0
        %2292 = vmatpush1.bf16.msra.mxu0 0
        %2293 = vmatprep.subr.bf16.mxu0 0
        %2294 = vmatpush1.bf16.msra.mxu0 0
        %2295 = vmatprep.subr.bf16.mxu0 0
        %2296 = vmatpush1.bf16.msra.mxu0 0
        %2297 = vmatprep.subr.bf16.mxu0 0
        %2298 = vmatpush1.bf16.msra.mxu0 0
        %2299 = vmatprep.subr.bf16.mxu0 0
        %2300 = vmatpush1.bf16.msra.mxu0 %v2211
        %2301 = vmatprep.subr.bf16.mxu0 0
        %2302 = vmatpush1.bf16.msra.mxu0 %v2210
        %2303 = vmatprep.subr.bf16.mxu0 0
        %2304 = vmatpush2.bf16.msra.mxu0 0
        %2305 = vmatprep.subr.bf16.mxu0 0
        %2306 = vmatpush2.bf16.msra.mxu0 0
        %2307 = vmatprep.subr.bf16.mxu0 0
        %2308 = vmatpush2.bf16.msra.mxu0 0
        %2309 = vmatprep.subr.bf16.mxu0 0
        %2310 = vmatpush2.bf16.msra.mxu0 0
        %2311 = vmatprep.subr.bf16.mxu0 0
        %2312 = vmatpush2.bf16.msra.mxu0 0
        %2313 = vmatprep.subr.bf16.mxu0 0
        %2314 = vmatpush2.bf16.msra.mxu0 0
        %2315 = vmatprep.subr.bf16.mxu0 0
        %2316 = vmatpush2.bf16.msra.mxu0 0
        %2317 = vmatprep.subr.bf16.mxu0 0
        %2318 = vmatpush2.bf16.msra.mxu0 0
        %2319 = vmatprep.mubr.bf16.mxu0 0
        %2320 = vmatmul.mubr.bf16.gmra.mxu0 %v2245
        %v2321 = vpop.f32.mrf.mxu0
        %v2322 = vadd.f32 %v2231, %v2321
        %v2323 = vpop.f32.mrf.mxu0
        %v2324 = vpop.f32.mrf.mxu0
        %v2325 = vpop.f32.mrf.mxu0
        %2326 = vdwg.mxu0
        %2327 = vmatprep.subr.bf16.mxu0 0
        %2328 = vmatpush1.bf16.msra.mxu0 0
        %2329 = vmatprep.subr.bf16.mxu0 0
        %2330 = vmatpush1.bf16.msra.mxu0 0
        %2331 = vmatprep.subr.bf16.mxu0 0
        %2332 = vmatpush1.bf16.msra.mxu0 0
        %2333 = vmatprep.subr.bf16.mxu0 0
        %2334 = vmatpush1.bf16.msra.mxu0 0
        %2335 = vmatprep.subr.bf16.mxu0 0
        %2336 = vmatpush1.bf16.msra.mxu0 0
        %2337 = vmatprep.subr.bf16.mxu0 0
        %2338 = vmatpush1.bf16.msra.mxu0 0
        %2339 = vmatprep.subr.bf16.mxu0 0
        %2340 = vmatpush1.bf16.msra.mxu0 %v2213
        %2341 = vmatprep.subr.bf16.mxu0 0
        %2342 = vmatpush1.bf16.msra.mxu0 %v2212
        %2343 = vmatprep.subr.bf16.mxu0 0
        %2344 = vmatpush2.bf16.msra.mxu0 0
        %2345 = vmatprep.subr.bf16.mxu0 0
        %2346 = vmatpush2.bf16.msra.mxu0 0
        %2347 = vmatprep.subr.bf16.mxu0 0
        %2348 = vmatpush2.bf16.msra.mxu0 0
        %2349 = vmatprep.subr.bf16.mxu0 0
        %2350 = vmatpush2.bf16.msra.mxu0 0
        %2351 = vmatprep.subr.bf16.mxu0 0
        %2352 = vmatpush2.bf16.msra.mxu0 0
        %2353 = vmatprep.subr.bf16.mxu0 0
        %2354 = vmatpush2.bf16.msra.mxu0 0
        %2355 = vmatprep.subr.bf16.mxu0 0
        %2356 = vmatpush2.bf16.msra.mxu0 0
        %2357 = vmatprep.subr.bf16.mxu0 0
        %2358 = vmatpush2.bf16.msra.mxu0 0
        %2359 = vmatprep.mubr.bf16.mxu0 0
        %2360 = vmatmul.mubr.bf16.gmra.mxu0 %v2245
        %v2361 = vpop.f32.mrf.mxu0
        %v2362 = vadd.f32 %v2235, %v2361
        %v2363 = vpop.f32.mrf.mxu0
        %v2364 = vpop.f32.mrf.mxu0
        %v2365 = vpop.f32.mrf.mxu0
        %2366 = vdwg.mxu0
        %2367 = vmatprep.subr.bf16.mxu0 0
        %2368 = vmatpush1.bf16.msra.mxu0 0
        %2369 = vmatprep.subr.bf16.mxu0 0
        %2370 = vmatpush1.bf16.msra.mxu0 0
        %2371 = vmatprep.subr.bf16.mxu0 0
        %2372 = vmatpush1.bf16.msra.mxu0 0
        %2373 = vmatprep.subr.bf16.mxu0 0
        %2374 = vmatpush1.bf16.msra.mxu0 0
        %2375 = vmatprep.subr.bf16.mxu0 0
        %2376 = vmatpush1.bf16.msra.mxu0 0
        %2377 = vmatprep.subr.bf16.mxu0 0
        %2378 = vmatpush1.bf16.msra.mxu0 0
        %2379 = vmatprep.subr.bf16.mxu0 0
        %2380 = vmatpush1.bf16.msra.mxu0 %v2215
        %2381 = vmatprep.subr.bf16.mxu0 0
        %2382 = vmatpush1.bf16.msra.mxu0 %v2214
        %2383 = vmatprep.subr.bf16.mxu0 0
        %2384 = vmatpush2.bf16.msra.mxu0 0
        %2385 = vmatprep.subr.bf16.mxu0 0
        %2386 = vmatpush2.bf16.msra.mxu0 0
        %2387 = vmatprep.subr.bf16.mxu0 0
        %2388 = vmatpush2.bf16.msra.mxu0 0
        %2389 = vmatprep.subr.bf16.mxu0 0
        %2390 = vmatpush2.bf16.msra.mxu0 0
        %2391 = vmatprep.subr.bf16.mxu0 0
        %2392 = vmatpush2.bf16.msra.mxu0 0
        %2393 = vmatprep.subr.bf16.mxu0 0
        %2394 = vmatpush2.bf16.msra.mxu0 0
        %2395 = vmatprep.subr.bf16.mxu0 0
        %2396 = vmatpush2.bf16.msra.mxu0 0
        %2397 = vmatprep.subr.bf16.mxu0 0
        %2398 = vmatpush2.bf16.msra.mxu0 0
        %2399 = vmatprep.mubr.bf16.mxu0 0
        %2400 = vmatmul.mubr.bf16.gmra.mxu0 %v2245
        %v2401 = vpop.f32.mrf.mxu0
        %v2402 = vadd.f32 %v2239, %v2401
        %v2403 = vpop.f32.mrf.mxu0
        %v2404 = vpop.f32.mrf.mxu0
        %v2405 = vpop.f32.mrf.mxu0
        %2406 = vdwg.mxu0
        %v2407 = vld [vmem:[%s14] sm:$0xff]
        %v2408 = vld [vmem:[%s14 + $0x8] sm:$0xff]
        %v2409 = vld [vmem:[%s14 + $0x10] sm:$0xff]
        %v2410 = vld [vmem:[%s14 + $0x18] sm:$0xff]
        %v2411 = vld [vmem:[%s14 + $0x20] sm:$0xff]
        %v2412 = vld [vmem:[%s14 + $0x28] sm:$0xff]
        %v2413 = vld [vmem:[%s14 + $0x30] sm:$0xff]
        %v2414 = vld [vmem:[%s14 + $0x38] sm:$0xff]
        %v2415 = vld [vmem:[%s14 + $0x40] sm:$0xff]
        %v2416 = vld [vmem:[%s14 + $0x48] sm:$0xff]
        %v2417 = vld [vmem:[%s14 + $0x50] sm:$0xff]
        %v2418 = vld [vmem:[%s14 + $0x58] sm:$0xff]
        %v2419 = vld [vmem:[%s14 + $0x60] sm:$0xff]
        %v2420 = vld [vmem:[%s14 + $0x68] sm:$0xff]
        %v2421 = vld [vmem:[%s14 + $0x70] sm:$0xff]
        %v2422 = vld [vmem:[%s14 + $0x78] sm:$0xff]
        %v2423 = vpack.c.bf16 %v2408, %v2407
        %v2424 = vpack.c.bf16 %v2410, %v2409
        %v2425 = vpack.c.bf16 %v2412, %v2411
        %v2426 = vpack.c.bf16 %v2414, %v2413
        %v2427 = vpack.c.bf16 %v2416, %v2415
        %v2428 = vpack.c.bf16 %v2418, %v2417
        %v2429 = vpack.c.bf16 %v2420, %v2419
        %v2430 = vpack.c.bf16 %v2422, %v2421
        %v2431 = vld [vmem:[%s15] sm:$0x1]
        %v2432 = vld [vmem:[%s15 + $0x1] sm:$0x1]
        %v2433 = vld [vmem:[%s15 + $0x2] sm:$0x1]
        %v2434 = vld [vmem:[%s15 + $0x3] sm:$0x1]
        %v2439 = vlaneseq
        %v2440 = vshrl.u32 %v2439, 7
        %v2441 = vsub.s32 0, %v2440
        %v2442 = vrot.slane %v2431, %v2441
        %v2443 = vlaneseq
        %v2444 = vshrl.u32 %v2443, 7
        %v2445 = vsub.s32 0, %v2444
        %v2446 = vrot.slane %v2432, %v2445
        %v2447 = vlaneseq
        %v2448 = vshrl.u32 %v2447, 7
        %v2449 = vsub.s32 0, %v2448
        %v2450 = vrot.slane %v2433, %v2449
        %v2451 = vlaneseq
        %v2452 = vshrl.u32 %v2451, 7
        %v2453 = vsub.s32 0, %v2452
        %v2454 = vrot.slane %v2434, %v2453
        %v2460 = vsel %vm914, %v2191, 0
        %2462 = vmatprep.subr.bf16.mxu0 0
        %2463 = vmatpush1.bf16.msra.mxu0 0
        %2464 = vmatprep.subr.bf16.mxu0 0
        %2465 = vmatpush1.bf16.msra.mxu0 0
        %2466 = vmatprep.subr.bf16.mxu0 0
        %2467 = vmatpush1.bf16.msra.mxu0 0
        %2468 = vmatprep.subr.bf16.mxu0 0
        %2469 = vmatpush1.bf16.msra.mxu0 0
        %2470 = vmatprep.subr.bf16.mxu0 0
        %2471 = vmatpush1.bf16.msra.mxu0 0
        %2472 = vmatprep.subr.bf16.mxu0 0
        %2473 = vmatpush1.bf16.msra.mxu0 0
        %2474 = vmatprep.subr.bf16.mxu0 0
        %2475 = vmatpush1.bf16.msra.mxu0 %v2424
        %2476 = vmatprep.subr.bf16.mxu0 0
        %2477 = vmatpush1.bf16.msra.mxu0 %v2423
        %2478 = vmatprep.subr.bf16.mxu0 0
        %2479 = vmatpush2.bf16.msra.mxu0 0
        %2480 = vmatprep.subr.bf16.mxu0 0
        %2481 = vmatpush2.bf16.msra.mxu0 0
        %2482 = vmatprep.subr.bf16.mxu0 0
        %2483 = vmatpush2.bf16.msra.mxu0 0
        %2484 = vmatprep.subr.bf16.mxu0 0
        %2485 = vmatpush2.bf16.msra.mxu0 0
        %2486 = vmatprep.subr.bf16.mxu0 0
        %2487 = vmatpush2.bf16.msra.mxu0 0
        %2488 = vmatprep.subr.bf16.mxu0 0
        %2489 = vmatpush2.bf16.msra.mxu0 0
        %2490 = vmatprep.subr.bf16.mxu0 0
        %2491 = vmatpush2.bf16.msra.mxu0 0
        %2492 = vmatprep.subr.bf16.mxu0 0
        %2493 = vmatpush2.bf16.msra.mxu0 0
        %2494 = vmatprep.mubr.bf16.mxu0 0
        %2495 = vmatmul.mubr.bf16.gmra.mxu0 %v2460
        %v2496 = vpop.f32.mrf.mxu0
        %v2497 = vadd.f32 %v2442, %v2496
        %v2498 = vpop.f32.mrf.mxu0
        %v2499 = vpop.f32.mrf.mxu0
        %v2500 = vpop.f32.mrf.mxu0
        %2501 = vdwg.mxu0
        %2502 = vmatprep.subr.bf16.mxu0 0
        %2503 = vmatpush1.bf16.msra.mxu0 0
        %2504 = vmatprep.subr.bf16.mxu0 0
        %2505 = vmatpush1.bf16.msra.mxu0 0
        %2506 = vmatprep.subr.bf16.mxu0 0
        %2507 = vmatpush1.bf16.msra.mxu0 0
        %2508 = vmatprep.subr.bf16.mxu0 0
        %2509 = vmatpush1.bf16.msra.mxu0 0
        %2510 = vmatprep.subr.bf16.mxu0 0
        %2511 = vmatpush1.bf16.msra.mxu0 0
        %2512 = vmatprep.subr.bf16.mxu0 0
        %2513 = vmatpush1.bf16.msra.mxu0 0
        %2514 = vmatprep.subr.bf16.mxu0 0
        %2515 = vmatpush1.bf16.msra.mxu0 %v2426
        %2516 = vmatprep.subr.bf16.mxu0 0
        %2517 = vmatpush1.bf16.msra.mxu0 %v2425
        %2518 = vmatprep.subr.bf16.mxu0 0
        %2519 = vmatpush2.bf16.msra.mxu0 0
        %2520 = vmatprep.subr.bf16.mxu0 0
        %2521 = vmatpush2.bf16.msra.mxu0 0
        %2522 = vmatprep.subr.bf16.mxu0 0
        %2523 = vmatpush2.bf16.msra.mxu0 0
        %2524 = vmatprep.subr.bf16.mxu0 0
        %2525 = vmatpush2.bf16.msra.mxu0 0
        %2526 = vmatprep.subr.bf16.mxu0 0
        %2527 = vmatpush2.bf16.msra.mxu0 0
        %2528 = vmatprep.subr.bf16.mxu0 0
        %2529 = vmatpush2.bf16.msra.mxu0 0
        %2530 = vmatprep.subr.bf16.mxu0 0
        %2531 = vmatpush2.bf16.msra.mxu0 0
        %2532 = vmatprep.subr.bf16.mxu0 0
        %2533 = vmatpush2.bf16.msra.mxu0 0
        %2534 = vmatprep.mubr.bf16.mxu0 0
        %2535 = vmatmul.mubr.bf16.gmra.mxu0 %v2460
        %v2536 = vpop.f32.mrf.mxu0
        %v2537 = vadd.f32 %v2446, %v2536
        %v2538 = vpop.f32.mrf.mxu0
        %v2539 = vpop.f32.mrf.mxu0
        %v2540 = vpop.f32.mrf.mxu0
        %2541 = vdwg.mxu0
        %2542 = vmatprep.subr.bf16.mxu0 0
        %2543 = vmatpush1.bf16.msra.mxu0 0
        %2544 = vmatprep.subr.bf16.mxu0 0
        %2545 = vmatpush1.bf16.msra.mxu0 0
        %2546 = vmatprep.subr.bf16.mxu0 0
        %2547 = vmatpush1.bf16.msra.mxu0 0
        %2548 = vmatprep.subr.bf16.mxu0 0
        %2549 = vmatpush1.bf16.msra.mxu0 0
        %2550 = vmatprep.subr.bf16.mxu0 0
        %2551 = vmatpush1.bf16.msra.mxu0 0
        %2552 = vmatprep.subr.bf16.mxu0 0
        %2553 = vmatpush1.bf16.msra.mxu0 0
        %2554 = vmatprep.subr.bf16.mxu0 0
        %2555 = vmatpush1.bf16.msra.mxu0 %v2428
        %2556 = vmatprep.subr.bf16.mxu0 0
        %2557 = vmatpush1.bf16.msra.mxu0 %v2427
        %2558 = vmatprep.subr.bf16.mxu0 0
        %2559 = vmatpush2.bf16.msra.mxu0 0
        %2560 = vmatprep.subr.bf16.mxu0 0
        %2561 = vmatpush2.bf16.msra.mxu0 0
        %2562 = vmatprep.subr.bf16.mxu0 0
        %2563 = vmatpush2.bf16.msra.mxu0 0
        %2564 = vmatprep.subr.bf16.mxu0 0
        %2565 = vmatpush2.bf16.msra.mxu0 0
        %2566 = vmatprep.subr.bf16.mxu0 0
        %2567 = vmatpush2.bf16.msra.mxu0 0
        %2568 = vmatprep.subr.bf16.mxu0 0
        %2569 = vmatpush2.bf16.msra.mxu0 0
        %2570 = vmatprep.subr.bf16.mxu0 0
        %2571 = vmatpush2.bf16.msra.mxu0 0
        %2572 = vmatprep.subr.bf16.mxu0 0
        %2573 = vmatpush2.bf16.msra.mxu0 0
        %2574 = vmatprep.mubr.bf16.mxu0 0
        %2575 = vmatmul.mubr.bf16.gmra.mxu0 %v2460
        %v2576 = vpop.f32.mrf.mxu0
        %v2577 = vadd.f32 %v2450, %v2576
        %v2578 = vpop.f32.mrf.mxu0
        %v2579 = vpop.f32.mrf.mxu0
        %v2580 = vpop.f32.mrf.mxu0
        %2581 = vdwg.mxu0
        %2582 = vmatprep.subr.bf16.mxu0 0
        %2583 = vmatpush1.bf16.msra.mxu0 0
        %2584 = vmatprep.subr.bf16.mxu0 0
        %2585 = vmatpush1.bf16.msra.mxu0 0
        %2586 = vmatprep.subr.bf16.mxu0 0
        %2587 = vmatpush1.bf16.msra.mxu0 0
        %2588 = vmatprep.subr.bf16.mxu0 0
        %2589 = vmatpush1.bf16.msra.mxu0 0
        %2590 = vmatprep.subr.bf16.mxu0 0
        %2591 = vmatpush1.bf16.msra.mxu0 0
        %2592 = vmatprep.subr.bf16.mxu0 0
        %2593 = vmatpush1.bf16.msra.mxu0 0
        %2594 = vmatprep.subr.bf16.mxu0 0
        %2595 = vmatpush1.bf16.msra.mxu0 %v2430
        %2596 = vmatprep.subr.bf16.mxu0 0
        %2597 = vmatpush1.bf16.msra.mxu0 %v2429
        %2598 = vmatprep.subr.bf16.mxu0 0
        %2599 = vmatpush2.bf16.msra.mxu0 0
        %2600 = vmatprep.subr.bf16.mxu0 0
        %2601 = vmatpush2.bf16.msra.mxu0 0
        %2602 = vmatprep.subr.bf16.mxu0 0
        %2603 = vmatpush2.bf16.msra.mxu0 0
        %2604 = vmatprep.subr.bf16.mxu0 0
        %2605 = vmatpush2.bf16.msra.mxu0 0
        %2606 = vmatprep.subr.bf16.mxu0 0
        %2607 = vmatpush2.bf16.msra.mxu0 0
        %2608 = vmatprep.subr.bf16.mxu0 0
        %2609 = vmatpush2.bf16.msra.mxu0 0
        %2610 = vmatprep.subr.bf16.mxu0 0
        %2611 = vmatpush2.bf16.msra.mxu0 0
        %2612 = vmatprep.subr.bf16.mxu0 0
        %2613 = vmatpush2.bf16.msra.mxu0 0
        %2614 = vmatprep.mubr.bf16.mxu0 0
        %2615 = vmatmul.mubr.bf16.gmra.mxu0 %v2460
        %v2616 = vpop.f32.mrf.mxu0
        %v2617 = vadd.f32 %v2454, %v2616
        %v2618 = vpop.f32.mrf.mxu0
        %v2619 = vpop.f32.mrf.mxu0
        %v2620 = vpop.f32.mrf.mxu0
        %2621 = vdwg.mxu0
        %v2622 = vld [vmem:[%s16] sm:$0xff]
        %v2623 = vld [vmem:[%s16 + $0x8] sm:$0xff]
        %v2624 = vld [vmem:[%s16 + $0x10] sm:$0xff]
        %v2625 = vld [vmem:[%s16 + $0x18] sm:$0xff]
        %v2626 = vld [vmem:[%s16 + $0x20] sm:$0xff]
        %v2627 = vld [vmem:[%s16 + $0x28] sm:$0xff]
        %v2628 = vld [vmem:[%s16 + $0x30] sm:$0xff]
        %v2629 = vld [vmem:[%s16 + $0x38] sm:$0xff]
        %v2630 = vld [vmem:[%s16 + $0x40] sm:$0xff]
        %v2631 = vld [vmem:[%s16 + $0x48] sm:$0xff]
        %v2632 = vld [vmem:[%s16 + $0x50] sm:$0xff]
        %v2633 = vld [vmem:[%s16 + $0x58] sm:$0xff]
        %v2634 = vld [vmem:[%s16 + $0x60] sm:$0xff]
        %v2635 = vld [vmem:[%s16 + $0x68] sm:$0xff]
        %v2636 = vld [vmem:[%s16 + $0x70] sm:$0xff]
        %v2637 = vld [vmem:[%s16 + $0x78] sm:$0xff]
        %v2638 = vpack.c.bf16 %v2623, %v2622
        %v2639 = vpack.c.bf16 %v2625, %v2624
        %v2640 = vpack.c.bf16 %v2627, %v2626
        %v2641 = vpack.c.bf16 %v2629, %v2628
        %v2642 = vpack.c.bf16 %v2631, %v2630
        %v2643 = vpack.c.bf16 %v2633, %v2632
        %v2644 = vpack.c.bf16 %v2635, %v2634
        %v2645 = vpack.c.bf16 %v2637, %v2636
        %v2646 = vld [vmem:[%s17] sm:$0x1]
        %v2647 = vld [vmem:[%s17 + $0x1] sm:$0x1]
        %v2648 = vld [vmem:[%s17 + $0x2] sm:$0x1]
        %v2649 = vld [vmem:[%s17 + $0x3] sm:$0x1]
        %v2654 = vlaneseq
        %v2655 = vshrl.u32 %v2654, 7
        %v2656 = vsub.s32 0, %v2655
        %v2657 = vrot.slane %v2646, %v2656
        %v2658 = vlaneseq
        %v2659 = vshrl.u32 %v2658, 7
        %v2660 = vsub.s32 0, %v2659
        %v2661 = vrot.slane %v2647, %v2660
        %v2662 = vlaneseq
        %v2663 = vshrl.u32 %v2662, 7
        %v2664 = vsub.s32 0, %v2663
        %v2665 = vrot.slane %v2648, %v2664
        %v2666 = vlaneseq
        %v2667 = vshrl.u32 %v2666, 7
        %v2668 = vsub.s32 0, %v2667
        %v2669 = vrot.slane %v2649, %v2668
        %2674 = vmatprep.subr.bf16.mxu0 0
        %2675 = vmatpush1.bf16.msra.mxu0 0
        %2676 = vmatprep.subr.bf16.mxu0 0
        %2677 = vmatpush1.bf16.msra.mxu0 0
        %2678 = vmatprep.subr.bf16.mxu0 0
        %2679 = vmatpush1.bf16.msra.mxu0 0
        %2680 = vmatprep.subr.bf16.mxu0 0
        %2681 = vmatpush1.bf16.msra.mxu0 0
        %2682 = vmatprep.subr.bf16.mxu0 0
        %2683 = vmatpush1.bf16.msra.mxu0 0
        %2684 = vmatprep.subr.bf16.mxu0 0
        %2685 = vmatpush1.bf16.msra.mxu0 0
        %2686 = vmatprep.subr.bf16.mxu0 0
        %2687 = vmatpush1.bf16.msra.mxu0 %v2639
        %2688 = vmatprep.subr.bf16.mxu0 0
        %2689 = vmatpush1.bf16.msra.mxu0 %v2638
        %2690 = vmatprep.subr.bf16.mxu0 0
        %2691 = vmatpush2.bf16.msra.mxu0 0
        %2692 = vmatprep.subr.bf16.mxu0 0
        %2693 = vmatpush2.bf16.msra.mxu0 0
        %2694 = vmatprep.subr.bf16.mxu0 0
        %2695 = vmatpush2.bf16.msra.mxu0 0
        %2696 = vmatprep.subr.bf16.mxu0 0
        %2697 = vmatpush2.bf16.msra.mxu0 0
        %2698 = vmatprep.subr.bf16.mxu0 0
        %2699 = vmatpush2.bf16.msra.mxu0 0
        %2700 = vmatprep.subr.bf16.mxu0 0
        %2701 = vmatpush2.bf16.msra.mxu0 0
        %2702 = vmatprep.subr.bf16.mxu0 0
        %2703 = vmatpush2.bf16.msra.mxu0 0
        %2704 = vmatprep.subr.bf16.mxu0 0
        %2705 = vmatpush2.bf16.msra.mxu0 0
        %2706 = vmatprep.mubr.bf16.mxu0 0
        %2707 = vmatmul.mubr.bf16.gmra.mxu0 %v2460
        %v2708 = vpop.f32.mrf.mxu0
        %v2709 = vadd.f32 %v2657, %v2708
        %v2710 = vpop.f32.mrf.mxu0
        %v2711 = vpop.f32.mrf.mxu0
        %v2712 = vpop.f32.mrf.mxu0
        %2713 = vdwg.mxu0
        %2714 = vmatprep.subr.bf16.mxu0 0
        %2715 = vmatpush1.bf16.msra.mxu0 0
        %2716 = vmatprep.subr.bf16.mxu0 0
        %2717 = vmatpush1.bf16.msra.mxu0 0
        %2718 = vmatprep.subr.bf16.mxu0 0
        %2719 = vmatpush1.bf16.msra.mxu0 0
        %2720 = vmatprep.subr.bf16.mxu0 0
        %2721 = vmatpush1.bf16.msra.mxu0 0
        %2722 = vmatprep.subr.bf16.mxu0 0
        %2723 = vmatpush1.bf16.msra.mxu0 0
        %2724 = vmatprep.subr.bf16.mxu0 0
        %2725 = vmatpush1.bf16.msra.mxu0 0
        %2726 = vmatprep.subr.bf16.mxu0 0
        %2727 = vmatpush1.bf16.msra.mxu0 %v2641
        %2728 = vmatprep.subr.bf16.mxu0 0
        %2729 = vmatpush1.bf16.msra.mxu0 %v2640
        %2730 = vmatprep.subr.bf16.mxu0 0
        %2731 = vmatpush2.bf16.msra.mxu0 0
        %2732 = vmatprep.subr.bf16.mxu0 0
        %2733 = vmatpush2.bf16.msra.mxu0 0
        %2734 = vmatprep.subr.bf16.mxu0 0
        %2735 = vmatpush2.bf16.msra.mxu0 0
        %2736 = vmatprep.subr.bf16.mxu0 0
        %2737 = vmatpush2.bf16.msra.mxu0 0
        %2738 = vmatprep.subr.bf16.mxu0 0
        %2739 = vmatpush2.bf16.msra.mxu0 0
        %2740 = vmatprep.subr.bf16.mxu0 0
        %2741 = vmatpush2.bf16.msra.mxu0 0
        %2742 = vmatprep.subr.bf16.mxu0 0
        %2743 = vmatpush2.bf16.msra.mxu0 0
        %2744 = vmatprep.subr.bf16.mxu0 0
        %2745 = vmatpush2.bf16.msra.mxu0 0
        %2746 = vmatprep.mubr.bf16.mxu0 0
        %2747 = vmatmul.mubr.bf16.gmra.mxu0 %v2460
        %v2748 = vpop.f32.mrf.mxu0
        %v2749 = vadd.f32 %v2661, %v2748
        %v2750 = vpop.f32.mrf.mxu0
        %v2751 = vpop.f32.mrf.mxu0
        %v2752 = vpop.f32.mrf.mxu0
        %2753 = vdwg.mxu0
        %2754 = vmatprep.subr.bf16.mxu0 0
        %2755 = vmatpush1.bf16.msra.mxu0 0
        %2756 = vmatprep.subr.bf16.mxu0 0
        %2757 = vmatpush1.bf16.msra.mxu0 0
        %2758 = vmatprep.subr.bf16.mxu0 0
        %2759 = vmatpush1.bf16.msra.mxu0 0
        %2760 = vmatprep.subr.bf16.mxu0 0
        %2761 = vmatpush1.bf16.msra.mxu0 0
        %2762 = vmatprep.subr.bf16.mxu0 0
        %2763 = vmatpush1.bf16.msra.mxu0 0
        %2764 = vmatprep.subr.bf16.mxu0 0
        %2765 = vmatpush1.bf16.msra.mxu0 0
        %2766 = vmatprep.subr.bf16.mxu0 0
        %2767 = vmatpush1.bf16.msra.mxu0 %v2643
        %2768 = vmatprep.subr.bf16.mxu0 0
        %2769 = vmatpush1.bf16.msra.mxu0 %v2642
        %2770 = vmatprep.subr.bf16.mxu0 0
        %2771 = vmatpush2.bf16.msra.mxu0 0
        %2772 = vmatprep.subr.bf16.mxu0 0
        %2773 = vmatpush2.bf16.msra.mxu0 0
        %2774 = vmatprep.subr.bf16.mxu0 0
        %2775 = vmatpush2.bf16.msra.mxu0 0
        %2776 = vmatprep.subr.bf16.mxu0 0
        %2777 = vmatpush2.bf16.msra.mxu0 0
        %2778 = vmatprep.subr.bf16.mxu0 0
        %2779 = vmatpush2.bf16.msra.mxu0 0
        %2780 = vmatprep.subr.bf16.mxu0 0
        %2781 = vmatpush2.bf16.msra.mxu0 0
        %2782 = vmatprep.subr.bf16.mxu0 0
        %2783 = vmatpush2.bf16.msra.mxu0 0
        %2784 = vmatprep.subr.bf16.mxu0 0
        %2785 = vmatpush2.bf16.msra.mxu0 0
        %2786 = vmatprep.mubr.bf16.mxu0 0
        %2787 = vmatmul.mubr.bf16.gmra.mxu0 %v2460
        %v2788 = vpop.f32.mrf.mxu0
        %v2789 = vadd.f32 %v2665, %v2788
        %v2790 = vpop.f32.mrf.mxu0
        %v2791 = vpop.f32.mrf.mxu0
        %v2792 = vpop.f32.mrf.mxu0
        %2793 = vdwg.mxu0
        %2794 = vmatprep.subr.bf16.mxu0 0
        %2795 = vmatpush1.bf16.msra.mxu0 0
        %2796 = vmatprep.subr.bf16.mxu0 0
        %2797 = vmatpush1.bf16.msra.mxu0 0
        %2798 = vmatprep.subr.bf16.mxu0 0
        %2799 = vmatpush1.bf16.msra.mxu0 0
        %2800 = vmatprep.subr.bf16.mxu0 0
        %2801 = vmatpush1.bf16.msra.mxu0 0
        %2802 = vmatprep.subr.bf16.mxu0 0
        %2803 = vmatpush1.bf16.msra.mxu0 0
        %2804 = vmatprep.subr.bf16.mxu0 0
        %2805 = vmatpush1.bf16.msra.mxu0 0
        %2806 = vmatprep.subr.bf16.mxu0 0
        %2807 = vmatpush1.bf16.msra.mxu0 %v2645
        %2808 = vmatprep.subr.bf16.mxu0 0
        %2809 = vmatpush1.bf16.msra.mxu0 %v2644
        %2810 = vmatprep.subr.bf16.mxu0 0
        %2811 = vmatpush2.bf16.msra.mxu0 0
        %2812 = vmatprep.subr.bf16.mxu0 0
        %2813 = vmatpush2.bf16.msra.mxu0 0
        %2814 = vmatprep.subr.bf16.mxu0 0
        %2815 = vmatpush2.bf16.msra.mxu0 0
        %2816 = vmatprep.subr.bf16.mxu0 0
        %2817 = vmatpush2.bf16.msra.mxu0 0
        %2818 = vmatprep.subr.bf16.mxu0 0
        %2819 = vmatpush2.bf16.msra.mxu0 0
        %2820 = vmatprep.subr.bf16.mxu0 0
        %2821 = vmatpush2.bf16.msra.mxu0 0
        %2822 = vmatprep.subr.bf16.mxu0 0
        %2823 = vmatpush2.bf16.msra.mxu0 0
        %2824 = vmatprep.subr.bf16.mxu0 0
        %2825 = vmatpush2.bf16.msra.mxu0 0
        %2826 = vmatprep.mubr.bf16.mxu0 0
        %2827 = vmatmul.mubr.bf16.gmra.mxu0 %v2460
        %v2828 = vpop.f32.mrf.mxu0
        %v2829 = vadd.f32 %v2669, %v2828
        %v2830 = vpop.f32.mrf.mxu0
        %v2831 = vpop.f32.mrf.mxu0
        %v2832 = vpop.f32.mrf.mxu0
        %2833 = vdwg.mxu0
        %v2834 = vpack.c.bf16 %v2282, %v2282
        %v2835 = vpack.c.bf16 %v2322, %v2322
        %v2836 = vpack.c.bf16 %v2362, %v2362
        %v2837 = vpack.c.bf16 %v2402, %v2402
        %v2838 = vpack.c.bf16 %v2497, %v2497
        %v2839 = vpack.c.bf16 %v2537, %v2537
        %v2840 = vpack.c.bf16 %v2577, %v2577
        %v2841 = vpack.c.bf16 %v2617, %v2617
        %v2843 = vsel %vm1510, %v2834, 0
        %v2846 = vsel %vm1510, %v2838, 0
        %2848 = vmatprep.subr.bf16.mxu0 0
        %2849 = vmatpush1.bf16.xpose.msra.mxu0 0
        %2850 = vmatprep.subr.bf16.mxu0 0
        %2851 = vmatpush1.bf16.xpose.msra.mxu0 0
        %2852 = vmatprep.subr.bf16.mxu0 0
        %2853 = vmatpush1.bf16.xpose.msra.mxu0 0
        %2854 = vmatprep.subr.bf16.mxu0 0
        %2855 = vmatpush1.bf16.xpose.msra.mxu0 0
        %2856 = vmatprep.subr.bf16.mxu0 0
        %2857 = vmatpush1.bf16.xpose.msra.mxu0 0
        %2858 = vmatprep.subr.bf16.mxu0 0
        %2859 = vmatpush1.bf16.xpose.msra.mxu0 0
        %2860 = vmatprep.subr.bf16.mxu0 0
        %2861 = vmatpush1.bf16.xpose.msra.mxu0 0
        %2862 = vmatprep.subr.bf16.mxu0 0
        %2863 = vmatpush1.bf16.xpose.msra.mxu0 %v2846
        %2864 = vmatprep.subr.bf16.mxu0 0
        %2865 = vmatpush2.bf16.xpose.msra.mxu0 0
        %2866 = vmatprep.subr.bf16.mxu0 0
        %2867 = vmatpush2.bf16.xpose.msra.mxu0 0
        %2868 = vmatprep.subr.bf16.mxu0 0
        %2869 = vmatpush2.bf16.xpose.msra.mxu0 0
        %2870 = vmatprep.subr.bf16.mxu0 0
        %2871 = vmatpush2.bf16.xpose.msra.mxu0 0
        %2872 = vmatprep.subr.bf16.mxu0 0
        %2873 = vmatpush2.bf16.xpose.msra.mxu0 0
        %2874 = vmatprep.subr.bf16.mxu0 0
        %2875 = vmatpush2.bf16.xpose.msra.mxu0 0
        %2876 = vmatprep.subr.bf16.mxu0 0
        %2877 = vmatpush2.bf16.xpose.msra.mxu0 0
        %2878 = vmatprep.subr.bf16.mxu0 0
        %2879 = vmatpush2.bf16.xpose.msra.mxu0 0
        %2880 = vmatprep.mubr.bf16.mxu0 0
        %2881 = vmatmul.mubr.bf16.gmra.mxu0 %v2843
        %v2882 = vpop.f32.mrf.mxu0
        %v2883 = vadd.f32 0.0, %v2882
        %v2884 = vpop.f32.mrf.mxu0
        %v2885 = vpop.f32.mrf.mxu0
        %v2886 = vpop.f32.mrf.mxu0
        %2887 = vdwg.mxu0
        %v2889 = vsel %vm1510, %v2835, 0
        %v2892 = vsel %vm1510, %v2839, 0
        %2894 = vmatprep.subr.bf16.mxu0 0
        %2895 = vmatpush1.bf16.xpose.msra.mxu0 0
        %2896 = vmatprep.subr.bf16.mxu0 0
        %2897 = vmatpush1.bf16.xpose.msra.mxu0 0
        %2898 = vmatprep.subr.bf16.mxu0 0
        %2899 = vmatpush1.bf16.xpose.msra.mxu0 0
        %2900 = vmatprep.subr.bf16.mxu0 0
        %2901 = vmatpush1.bf16.xpose.msra.mxu0 0
        %2902 = vmatprep.subr.bf16.mxu0 0
        %2903 = vmatpush1.bf16.xpose.msra.mxu0 0
        %2904 = vmatprep.subr.bf16.mxu0 0
        %2905 = vmatpush1.bf16.xpose.msra.mxu0 0
        %2906 = vmatprep.subr.bf16.mxu0 0
        %2907 = vmatpush1.bf16.xpose.msra.mxu0 0
        %2908 = vmatprep.subr.bf16.mxu0 0
        %2909 = vmatpush1.bf16.xpose.msra.mxu0 %v2892
        %2910 = vmatprep.subr.bf16.mxu0 0
        %2911 = vmatpush2.bf16.xpose.msra.mxu0 0
        %2912 = vmatprep.subr.bf16.mxu0 0
        %2913 = vmatpush2.bf16.xpose.msra.mxu0 0
        %2914 = vmatprep.subr.bf16.mxu0 0
        %2915 = vmatpush2.bf16.xpose.msra.mxu0 0
        %2916 = vmatprep.subr.bf16.mxu0 0
        %2917 = vmatpush2.bf16.xpose.msra.mxu0 0
        %2918 = vmatprep.subr.bf16.mxu0 0
        %2919 = vmatpush2.bf16.xpose.msra.mxu0 0
        %2920 = vmatprep.subr.bf16.mxu0 0
        %2921 = vmatpush2.bf16.xpose.msra.mxu0 0
        %2922 = vmatprep.subr.bf16.mxu0 0
        %2923 = vmatpush2.bf16.xpose.msra.mxu0 0
        %2924 = vmatprep.subr.bf16.mxu0 0
        %2925 = vmatpush2.bf16.xpose.msra.mxu0 0
        %2926 = vmatprep.mubr.bf16.mxu0 0
        %2927 = vmatmul.mubr.bf16.gmra.mxu0 %v2889
        %v2928 = vpop.f32.mrf.mxu0
        %v2929 = vadd.f32 0.0, %v2928
        %v2930 = vpop.f32.mrf.mxu0
        %v2931 = vpop.f32.mrf.mxu0
        %v2932 = vpop.f32.mrf.mxu0
        %2933 = vdwg.mxu0
        %v2935 = vsel %vm1510, %v2836, 0
        %v2938 = vsel %vm1510, %v2840, 0
        %2940 = vmatprep.subr.bf16.mxu0 0
        %2941 = vmatpush1.bf16.xpose.msra.mxu0 0
        %2942 = vmatprep.subr.bf16.mxu0 0
        %2943 = vmatpush1.bf16.xpose.msra.mxu0 0
        %2944 = vmatprep.subr.bf16.mxu0 0
        %2945 = vmatpush1.bf16.xpose.msra.mxu0 0
        %2946 = vmatprep.subr.bf16.mxu0 0
        %2947 = vmatpush1.bf16.xpose.msra.mxu0 0
        %2948 = vmatprep.subr.bf16.mxu0 0
        %2949 = vmatpush1.bf16.xpose.msra.mxu0 0
        %2950 = vmatprep.subr.bf16.mxu0 0
        %2951 = vmatpush1.bf16.xpose.msra.mxu0 0
        %2952 = vmatprep.subr.bf16.mxu0 0
        %2953 = vmatpush1.bf16.xpose.msra.mxu0 0
        %2954 = vmatprep.subr.bf16.mxu0 0
        %2955 = vmatpush1.bf16.xpose.msra.mxu0 %v2938
        %2956 = vmatprep.subr.bf16.mxu0 0
        %2957 = vmatpush2.bf16.xpose.msra.mxu0 0
        %2958 = vmatprep.subr.bf16.mxu0 0
        %2959 = vmatpush2.bf16.xpose.msra.mxu0 0
        %2960 = vmatprep.subr.bf16.mxu0 0
        %2961 = vmatpush2.bf16.xpose.msra.mxu0 0
        %2962 = vmatprep.subr.bf16.mxu0 0
        %2963 = vmatpush2.bf16.xpose.msra.mxu0 0
        %2964 = vmatprep.subr.bf16.mxu0 0
        %2965 = vmatpush2.bf16.xpose.msra.mxu0 0
        %2966 = vmatprep.subr.bf16.mxu0 0
        %2967 = vmatpush2.bf16.xpose.msra.mxu0 0
        %2968 = vmatprep.subr.bf16.mxu0 0
        %2969 = vmatpush2.bf16.xpose.msra.mxu0 0
        %2970 = vmatprep.subr.bf16.mxu0 0
        %2971 = vmatpush2.bf16.xpose.msra.mxu0 0
        %2972 = vmatprep.mubr.bf16.mxu0 0
        %2973 = vmatmul.mubr.bf16.gmra.mxu0 %v2935
        %v2974 = vpop.f32.mrf.mxu0
        %v2975 = vadd.f32 0.0, %v2974
        %v2976 = vpop.f32.mrf.mxu0
        %v2977 = vpop.f32.mrf.mxu0
        %v2978 = vpop.f32.mrf.mxu0
        %2979 = vdwg.mxu0
        %v2981 = vsel %vm1510, %v2837, 0
        %v2984 = vsel %vm1510, %v2841, 0
        %2986 = vmatprep.subr.bf16.mxu0 0
        %2987 = vmatpush1.bf16.xpose.msra.mxu0 0
        %2988 = vmatprep.subr.bf16.mxu0 0
        %2989 = vmatpush1.bf16.xpose.msra.mxu0 0
        %2990 = vmatprep.subr.bf16.mxu0 0
        %2991 = vmatpush1.bf16.xpose.msra.mxu0 0
        %2992 = vmatprep.subr.bf16.mxu0 0
        %2993 = vmatpush1.bf16.xpose.msra.mxu0 0
        %2994 = vmatprep.subr.bf16.mxu0 0
        %2995 = vmatpush1.bf16.xpose.msra.mxu0 0
        %2996 = vmatprep.subr.bf16.mxu0 0
        %2997 = vmatpush1.bf16.xpose.msra.mxu0 0
        %2998 = vmatprep.subr.bf16.mxu0 0
        %2999 = vmatpush1.bf16.xpose.msra.mxu0 0
        %3000 = vmatprep.subr.bf16.mxu0 0
        %3001 = vmatpush1.bf16.xpose.msra.mxu0 %v2984
        %3002 = vmatprep.subr.bf16.mxu0 0
        %3003 = vmatpush2.bf16.xpose.msra.mxu0 0
        %3004 = vmatprep.subr.bf16.mxu0 0
        %3005 = vmatpush2.bf16.xpose.msra.mxu0 0
        %3006 = vmatprep.subr.bf16.mxu0 0
        %3007 = vmatpush2.bf16.xpose.msra.mxu0 0
        %3008 = vmatprep.subr.bf16.mxu0 0
        %3009 = vmatpush2.bf16.xpose.msra.mxu0 0
        %3010 = vmatprep.subr.bf16.mxu0 0
        %3011 = vmatpush2.bf16.xpose.msra.mxu0 0
        %3012 = vmatprep.subr.bf16.mxu0 0
        %3013 = vmatpush2.bf16.xpose.msra.mxu0 0
        %3014 = vmatprep.subr.bf16.mxu0 0
        %3015 = vmatpush2.bf16.xpose.msra.mxu0 0
        %3016 = vmatprep.subr.bf16.mxu0 0
        %3017 = vmatpush2.bf16.xpose.msra.mxu0 0
        %3018 = vmatprep.mubr.bf16.mxu0 0
        %3019 = vmatmul.mubr.bf16.gmra.mxu0 %v2981
        %v3020 = vpop.f32.mrf.mxu0
        %v3021 = vadd.f32 0.0, %v3020
        %v3022 = vpop.f32.mrf.mxu0
        %v3023 = vpop.f32.mrf.mxu0
        %v3024 = vpop.f32.mrf.mxu0
        %3025 = vdwg.mxu0
        %v3026 = vmul.f32 %v2883, 0.35355338
        %v3027 = vmul.f32 %v2929, 0.35355338
        %v3028 = vmul.f32 %v2975, 0.35355338
        %v3029 = vmul.f32 %v3021, 0.35355338
        %v3030 = vsel %vm1510, %v3026, -inf
        %3031 = vmax.xlane.f32.xlu0 %v3030
        %v3032 = vpop.xlane.xlu0 %3031
        %v3033 = vsel %vm1510, %v3027, -inf
        %3034 = vmax.xlane.f32.xlu0 %v3033
        %v3035 = vpop.xlane.xlu0 %3034
        %v3036 = vsel %vm1510, %v3028, -inf
        %3037 = vmax.xlane.f32.xlu0 %v3036
        %v3038 = vpop.xlane.xlu0 %3037
        %v3039 = vsel %vm1510, %v3029, -inf
        %3040 = vmax.xlane.f32.xlu0 %v3039
        %v3041 = vpop.xlane.xlu0 %3040
        %v3042 = vsub.f32 %v3026, %v3032
        %v3043 = vsub.f32 %v3027, %v3035
        %v3044 = vsub.f32 %v3028, %v3038
        %v3045 = vsub.f32 %v3029, %v3041
        %v3046 = vmul.f32 %v3042, 1.442695
        %v3047 = vpow.pop %v3046
        %v3048 = vmul.f32 %v3043, 1.442695
        %v3049 = vpow.pop %v3048
        %v3050 = vmul.f32 %v3044, 1.442695
        %v3051 = vpow.pop %v3050
        %v3052 = vmul.f32 %v3045, 1.442695
        %v3053 = vpow.pop %v3052
        %v3054 = vsel %vm1510, %v3047, 0.0
        %3055 = vadd.xlane.f32.xlu0 %v3054
        %v3056 = vpop.xlane.xlu0 %3055
        %v3057 = vsel %vm1510, %v3049, 0.0
        %3058 = vadd.xlane.f32.xlu0 %v3057
        %v3059 = vpop.xlane.xlu0 %3058
        %v3060 = vsel %vm1510, %v3051, 0.0
        %3061 = vadd.xlane.f32.xlu0 %v3060
        %v3062 = vpop.xlane.xlu0 %3061
        %v3063 = vsel %vm1510, %v3053, 0.0
        %3064 = vadd.xlane.f32.xlu0 %v3063
        %v3065 = vpop.xlane.xlu0 %3064
        %v3066 = vrcp.pop %v3056
        %v3067 = vrcp.pop %v3059
        %v3068 = vrcp.pop %v3062
        %v3069 = vrcp.pop %v3065
        %v3070 = vmul.f32 %v3056, %v3066
        %v3071 = vmul.f32 %v3059, %v3067
        %v3072 = vmul.f32 %v3062, %v3068
        %v3073 = vmul.f32 %v3065, %v3069
        %v3074 = vsub.f32 2.0, %v3070
        %v3075 = vsub.f32 2.0, %v3071
        %v3076 = vsub.f32 2.0, %v3072
        %v3077 = vsub.f32 2.0, %v3073
        %v3078 = vmul.f32 %v3066, %v3074
        %v3079 = vmul.f32 %v3067, %v3075
        %v3080 = vmul.f32 %v3068, %v3076
        %v3081 = vmul.f32 %v3069, %v3077
        %v3082 = vmul.f32 %v3047, %v3078
        %v3083 = vmul.f32 %v3049, %v3079
        %v3084 = vmul.f32 %v3051, %v3080
        %v3085 = vmul.f32 %v3053, %v3081
        %v3086 = vpack.c.bf16 %v3082, %v3082
        %v3087 = vpack.c.bf16 %v3083, %v3083
        %v3088 = vpack.c.bf16 %v3084, %v3084
        %v3089 = vpack.c.bf16 %v3085, %v3085
        %v3090 = vpack.c.bf16 %v2709, %v2709
        %v3091 = vpack.c.bf16 %v2749, %v2749
        %v3092 = vpack.c.bf16 %v2789, %v2789
        %v3093 = vpack.c.bf16 %v2829, %v2829
        %v3095 = vsel %vm1510, %v3086, 0
        %v3098 = vsel %vm1766, %v3090, 0
        %3100 = vmatprep.subr.bf16.mxu0 0
        %3101 = vmatpush1.bf16.msra.mxu0 0
        %3102 = vmatprep.subr.bf16.mxu0 0
        %3103 = vmatpush1.bf16.msra.mxu0 0
        %3104 = vmatprep.subr.bf16.mxu0 0
        %3105 = vmatpush1.bf16.msra.mxu0 0
        %3106 = vmatprep.subr.bf16.mxu0 0
        %3107 = vmatpush1.bf16.msra.mxu0 0
        %3108 = vmatprep.subr.bf16.mxu0 0
        %3109 = vmatpush1.bf16.msra.mxu0 0
        %3110 = vmatprep.subr.bf16.mxu0 0
        %3111 = vmatpush1.bf16.msra.mxu0 0
        %3112 = vmatprep.subr.bf16.mxu0 0
        %3113 = vmatpush1.bf16.msra.mxu0 0
        %3114 = vmatprep.subr.bf16.mxu0 0
        %3115 = vmatpush1.bf16.msra.mxu0 %v3098
        %3116 = vmatprep.subr.bf16.mxu0 0
        %3117 = vmatpush2.bf16.msra.mxu0 0
        %3118 = vmatprep.subr.bf16.mxu0 0
        %3119 = vmatpush2.bf16.msra.mxu0 0
        %3120 = vmatprep.subr.bf16.mxu0 0
        %3121 = vmatpush2.bf16.msra.mxu0 0
        %3122 = vmatprep.subr.bf16.mxu0 0
        %3123 = vmatpush2.bf16.msra.mxu0 0
        %3124 = vmatprep.subr.bf16.mxu0 0
        %3125 = vmatpush2.bf16.msra.mxu0 0
        %3126 = vmatprep.subr.bf16.mxu0 0
        %3127 = vmatpush2.bf16.msra.mxu0 0
        %3128 = vmatprep.subr.bf16.mxu0 0
        %3129 = vmatpush2.bf16.msra.mxu0 0
        %3130 = vmatprep.subr.bf16.mxu0 0
        %3131 = vmatpush2.bf16.msra.mxu0 0
        %3132 = vmatprep.mubr.bf16.mxu0 0
        %3133 = vmatmul.mubr.bf16.gmra.mxu0 %v3095
        %v3134 = vpop.f32.mrf.mxu0
        %v3135 = vadd.f32 0.0, %v3134
        %v3136 = vpop.f32.mrf.mxu0
        %v3137 = vpop.f32.mrf.mxu0
        %v3138 = vpop.f32.mrf.mxu0
        %3139 = vdwg.mxu0
        %v3141 = vsel %vm1510, %v3087, 0
        %v3144 = vsel %vm1766, %v3091, 0
        %3146 = vmatprep.subr.bf16.mxu0 0
        %3147 = vmatpush1.bf16.msra.mxu0 0
        %3148 = vmatprep.subr.bf16.mxu0 0
        %3149 = vmatpush1.bf16.msra.mxu0 0
        %3150 = vmatprep.subr.bf16.mxu0 0
        %3151 = vmatpush1.bf16.msra.mxu0 0
        %3152 = vmatprep.subr.bf16.mxu0 0
        %3153 = vmatpush1.bf16.msra.mxu0 0
        %3154 = vmatprep.subr.bf16.mxu0 0
        %3155 = vmatpush1.bf16.msra.mxu0 0
        %3156 = vmatprep.subr.bf16.mxu0 0
        %3157 = vmatpush1.bf16.msra.mxu0 0
        %3158 = vmatprep.subr.bf16.mxu0 0
        %3159 = vmatpush1.bf16.msra.mxu0 0
        %3160 = vmatprep.subr.bf16.mxu0 0
        %3161 = vmatpush1.bf16.msra.mxu0 %v3144
        %3162 = vmatprep.subr.bf16.mxu0 0
        %3163 = vmatpush2.bf16.msra.mxu0 0
        %3164 = vmatprep.subr.bf16.mxu0 0
        %3165 = vmatpush2.bf16.msra.mxu0 0
        %3166 = vmatprep.subr.bf16.mxu0 0
        %3167 = vmatpush2.bf16.msra.mxu0 0
        %3168 = vmatprep.subr.bf16.mxu0 0
        %3169 = vmatpush2.bf16.msra.mxu0 0
        %3170 = vmatprep.subr.bf16.mxu0 0
        %3171 = vmatpush2.bf16.msra.mxu0 0
        %3172 = vmatprep.subr.bf16.mxu0 0
        %3173 = vmatpush2.bf16.msra.mxu0 0
        %3174 = vmatprep.subr.bf16.mxu0 0
        %3175 = vmatpush2.bf16.msra.mxu0 0
        %3176 = vmatprep.subr.bf16.mxu0 0
        %3177 = vmatpush2.bf16.msra.mxu0 0
        %3178 = vmatprep.mubr.bf16.mxu0 0
        %3179 = vmatmul.mubr.bf16.gmra.mxu0 %v3141
        %v3180 = vpop.f32.mrf.mxu0
        %v3181 = vadd.f32 0.0, %v3180
        %v3182 = vpop.f32.mrf.mxu0
        %v3183 = vpop.f32.mrf.mxu0
        %v3184 = vpop.f32.mrf.mxu0
        %3185 = vdwg.mxu0
        %v3187 = vsel %vm1510, %v3088, 0
        %v3190 = vsel %vm1766, %v3092, 0
        %3192 = vmatprep.subr.bf16.mxu0 0
        %3193 = vmatpush1.bf16.msra.mxu0 0
        %3194 = vmatprep.subr.bf16.mxu0 0
        %3195 = vmatpush1.bf16.msra.mxu0 0
        %3196 = vmatprep.subr.bf16.mxu0 0
        %3197 = vmatpush1.bf16.msra.mxu0 0
        %3198 = vmatprep.subr.bf16.mxu0 0
        %3199 = vmatpush1.bf16.msra.mxu0 0
        %3200 = vmatprep.subr.bf16.mxu0 0
        %3201 = vmatpush1.bf16.msra.mxu0 0
        %3202 = vmatprep.subr.bf16.mxu0 0
        %3203 = vmatpush1.bf16.msra.mxu0 0
        %3204 = vmatprep.subr.bf16.mxu0 0
        %3205 = vmatpush1.bf16.msra.mxu0 0
        %3206 = vmatprep.subr.bf16.mxu0 0
        %3207 = vmatpush1.bf16.msra.mxu0 %v3190
        %3208 = vmatprep.subr.bf16.mxu0 0
        %3209 = vmatpush2.bf16.msra.mxu0 0
        %3210 = vmatprep.subr.bf16.mxu0 0
        %3211 = vmatpush2.bf16.msra.mxu0 0
        %3212 = vmatprep.subr.bf16.mxu0 0
        %3213 = vmatpush2.bf16.msra.mxu0 0
        %3214 = vmatprep.subr.bf16.mxu0 0
        %3215 = vmatpush2.bf16.msra.mxu0 0
        %3216 = vmatprep.subr.bf16.mxu0 0
        %3217 = vmatpush2.bf16.msra.mxu0 0
        %3218 = vmatprep.subr.bf16.mxu0 0
        %3219 = vmatpush2.bf16.msra.mxu0 0
        %3220 = vmatprep.subr.bf16.mxu0 0
        %3221 = vmatpush2.bf16.msra.mxu0 0
        %3222 = vmatprep.subr.bf16.mxu0 0
        %3223 = vmatpush2.bf16.msra.mxu0 0
        %3224 = vmatprep.mubr.bf16.mxu0 0
        %3225 = vmatmul.mubr.bf16.gmra.mxu0 %v3187
        %v3226 = vpop.f32.mrf.mxu0
        %v3227 = vadd.f32 0.0, %v3226
        %v3228 = vpop.f32.mrf.mxu0
        %v3229 = vpop.f32.mrf.mxu0
        %v3230 = vpop.f32.mrf.mxu0
        %3231 = vdwg.mxu0
        %v3233 = vsel %vm1510, %v3089, 0
        %v3236 = vsel %vm1766, %v3093, 0
        %3238 = vmatprep.subr.bf16.mxu0 0
        %3239 = vmatpush1.bf16.msra.mxu0 0
        %3240 = vmatprep.subr.bf16.mxu0 0
        %3241 = vmatpush1.bf16.msra.mxu0 0
        %3242 = vmatprep.subr.bf16.mxu0 0
        %3243 = vmatpush1.bf16.msra.mxu0 0
        %3244 = vmatprep.subr.bf16.mxu0 0
        %3245 = vmatpush1.bf16.msra.mxu0 0
        %3246 = vmatprep.subr.bf16.mxu0 0
        %3247 = vmatpush1.bf16.msra.mxu0 0
        %3248 = vmatprep.subr.bf16.mxu0 0
        %3249 = vmatpush1.bf16.msra.mxu0 0
        %3250 = vmatprep.subr.bf16.mxu0 0
        %3251 = vmatpush1.bf16.msra.mxu0 0
        %3252 = vmatprep.subr.bf16.mxu0 0
        %3253 = vmatpush1.bf16.msra.mxu0 %v3236
        %3254 = vmatprep.subr.bf16.mxu0 0
        %3255 = vmatpush2.bf16.msra.mxu0 0
        %3256 = vmatprep.subr.bf16.mxu0 0
        %3257 = vmatpush2.bf16.msra.mxu0 0
        %3258 = vmatprep.subr.bf16.mxu0 0
        %3259 = vmatpush2.bf16.msra.mxu0 0
        %3260 = vmatprep.subr.bf16.mxu0 0
        %3261 = vmatpush2.bf16.msra.mxu0 0
        %3262 = vmatprep.subr.bf16.mxu0 0
        %3263 = vmatpush2.bf16.msra.mxu0 0
        %3264 = vmatprep.subr.bf16.mxu0 0
        %3265 = vmatpush2.bf16.msra.mxu0 0
        %3266 = vmatprep.subr.bf16.mxu0 0
        %3267 = vmatpush2.bf16.msra.mxu0 0
        %3268 = vmatprep.subr.bf16.mxu0 0
        %3269 = vmatpush2.bf16.msra.mxu0 0
        %3270 = vmatprep.mubr.bf16.mxu0 0
        %3271 = vmatmul.mubr.bf16.gmra.mxu0 %v3233
        %v3272 = vpop.f32.mrf.mxu0
        %v3273 = vadd.f32 0.0, %v3272
        %v3274 = vpop.f32.mrf.mxu0
        %v3275 = vpop.f32.mrf.mxu0
        %v3276 = vpop.f32.mrf.mxu0
        %3277 = vdwg.mxu0
        %v3278 = vpack.c.bf16 %v3135, %v3135
        %v3279 = vpack.c.bf16 %v3181, %v3181
        %v3280 = vpack.c.bf16 %v3227, %v3227
        %v3281 = vpack.c.bf16 %v3273, %v3273
        %v3282 = vld [vmem:[%s18] sm:$0xff]
        %v3283 = vld [vmem:[%s18 + $0x8] sm:$0xff]
        %v3284 = vld [vmem:[%s18 + $0x10] sm:$0xff]
        %v3285 = vld [vmem:[%s18 + $0x18] sm:$0xff]
        %v3286 = vpack.c.bf16 %v3282, %v3282
        %v3287 = vpack.c.bf16 %v3283, %v3283
        %v3288 = vpack.c.bf16 %v3284, %v3284
        %v3289 = vpack.c.bf16 %v3285, %v3285
        %v3291 = vsel %vm1510, %v3278, 0
        %v3294 = vsel %vm1766, %v3286, 0
        %3296 = vmatprep.subr.bf16.mxu0 0
        %3297 = vmatpush1.bf16.msra.mxu0 0
        %3298 = vmatprep.subr.bf16.mxu0 0
        %3299 = vmatpush1.bf16.msra.mxu0 0
        %3300 = vmatprep.subr.bf16.mxu0 0
        %3301 = vmatpush1.bf16.msra.mxu0 0
        %3302 = vmatprep.subr.bf16.mxu0 0
        %3303 = vmatpush1.bf16.msra.mxu0 0
        %3304 = vmatprep.subr.bf16.mxu0 0
        %3305 = vmatpush1.bf16.msra.mxu0 0
        %3306 = vmatprep.subr.bf16.mxu0 0
        %3307 = vmatpush1.bf16.msra.mxu0 0
        %3308 = vmatprep.subr.bf16.mxu0 0
        %3309 = vmatpush1.bf16.msra.mxu0 0
        %3310 = vmatprep.subr.bf16.mxu0 0
        %3311 = vmatpush1.bf16.msra.mxu0 %v3294
        %3312 = vmatprep.subr.bf16.mxu0 0
        %3313 = vmatpush2.bf16.msra.mxu0 0
        %3314 = vmatprep.subr.bf16.mxu0 0
        %3315 = vmatpush2.bf16.msra.mxu0 0
        %3316 = vmatprep.subr.bf16.mxu0 0
        %3317 = vmatpush2.bf16.msra.mxu0 0
        %3318 = vmatprep.subr.bf16.mxu0 0
        %3319 = vmatpush2.bf16.msra.mxu0 0
        %3320 = vmatprep.subr.bf16.mxu0 0
        %3321 = vmatpush2.bf16.msra.mxu0 0
        %3322 = vmatprep.subr.bf16.mxu0 0
        %3323 = vmatpush2.bf16.msra.mxu0 0
        %3324 = vmatprep.subr.bf16.mxu0 0
        %3325 = vmatpush2.bf16.msra.mxu0 0
        %3326 = vmatprep.subr.bf16.mxu0 0
        %3327 = vmatpush2.bf16.msra.mxu0 0
        %3328 = vmatprep.mubr.bf16.mxu0 0
        %3329 = vmatmul.mubr.bf16.gmra.mxu0 %v3291
        %v3330 = vpop.f32.mrf.mxu0
        %v3331 = vadd.f32 0.0, %v3330
        %v3332 = vpop.f32.mrf.mxu0
        %v3333 = vpop.f32.mrf.mxu0
        %v3334 = vpop.f32.mrf.mxu0
        %3335 = vdwg.mxu0
        %v3337 = vsel %vm1510, %v3279, 0
        %v3340 = vsel %vm1766, %v3287, 0
        %3342 = vmatprep.subr.bf16.mxu0 0
        %3343 = vmatpush1.bf16.msra.mxu0 0
        %3344 = vmatprep.subr.bf16.mxu0 0
        %3345 = vmatpush1.bf16.msra.mxu0 0
        %3346 = vmatprep.subr.bf16.mxu0 0
        %3347 = vmatpush1.bf16.msra.mxu0 0
        %3348 = vmatprep.subr.bf16.mxu0 0
        %3349 = vmatpush1.bf16.msra.mxu0 0
        %3350 = vmatprep.subr.bf16.mxu0 0
        %3351 = vmatpush1.bf16.msra.mxu0 0
        %3352 = vmatprep.subr.bf16.mxu0 0
        %3353 = vmatpush1.bf16.msra.mxu0 0
        %3354 = vmatprep.subr.bf16.mxu0 0
        %3355 = vmatpush1.bf16.msra.mxu0 0
        %3356 = vmatprep.subr.bf16.mxu0 0
        %3357 = vmatpush1.bf16.msra.mxu0 %v3340
        %3358 = vmatprep.subr.bf16.mxu0 0
        %3359 = vmatpush2.bf16.msra.mxu0 0
        %3360 = vmatprep.subr.bf16.mxu0 0
        %3361 = vmatpush2.bf16.msra.mxu0 0
        %3362 = vmatprep.subr.bf16.mxu0 0
        %3363 = vmatpush2.bf16.msra.mxu0 0
        %3364 = vmatprep.subr.bf16.mxu0 0
        %3365 = vmatpush2.bf16.msra.mxu0 0
        %3366 = vmatprep.subr.bf16.mxu0 0
        %3367 = vmatpush2.bf16.msra.mxu0 0
        %3368 = vmatprep.subr.bf16.mxu0 0
        %3369 = vmatpush2.bf16.msra.mxu0 0
        %3370 = vmatprep.subr.bf16.mxu0 0
        %3371 = vmatpush2.bf16.msra.mxu0 0
        %3372 = vmatprep.subr.bf16.mxu0 0
        %3373 = vmatpush2.bf16.msra.mxu0 0
        %3374 = vmatprep.mubr.bf16.mxu0 0
        %3375 = vmatmul.mubr.bf16.gmra.mxu0 %v3337
        %v3376 = vpop.f32.mrf.mxu0
        %v3377 = vadd.f32 0.0, %v3376
        %v3378 = vpop.f32.mrf.mxu0
        %v3379 = vpop.f32.mrf.mxu0
        %v3380 = vpop.f32.mrf.mxu0
        %3381 = vdwg.mxu0
        %v3383 = vsel %vm1510, %v3280, 0
        %v3386 = vsel %vm1766, %v3288, 0
        %3388 = vmatprep.subr.bf16.mxu0 0
        %3389 = vmatpush1.bf16.msra.mxu0 0
        %3390 = vmatprep.subr.bf16.mxu0 0
        %3391 = vmatpush1.bf16.msra.mxu0 0
        %3392 = vmatprep.subr.bf16.mxu0 0
        %3393 = vmatpush1.bf16.msra.mxu0 0
        %3394 = vmatprep.subr.bf16.mxu0 0
        %3395 = vmatpush1.bf16.msra.mxu0 0
        %3396 = vmatprep.subr.bf16.mxu0 0
        %3397 = vmatpush1.bf16.msra.mxu0 0
        %3398 = vmatprep.subr.bf16.mxu0 0
        %3399 = vmatpush1.bf16.msra.mxu0 0
        %3400 = vmatprep.subr.bf16.mxu0 0
        %3401 = vmatpush1.bf16.msra.mxu0 0
        %3402 = vmatprep.subr.bf16.mxu0 0
        %3403 = vmatpush1.bf16.msra.mxu0 %v3386
        %3404 = vmatprep.subr.bf16.mxu0 0
        %3405 = vmatpush2.bf16.msra.mxu0 0
        %3406 = vmatprep.subr.bf16.mxu0 0
        %3407 = vmatpush2.bf16.msra.mxu0 0
        %3408 = vmatprep.subr.bf16.mxu0 0
        %3409 = vmatpush2.bf16.msra.mxu0 0
        %3410 = vmatprep.subr.bf16.mxu0 0
        %3411 = vmatpush2.bf16.msra.mxu0 0
        %3412 = vmatprep.subr.bf16.mxu0 0
        %3413 = vmatpush2.bf16.msra.mxu0 0
        %3414 = vmatprep.subr.bf16.mxu0 0
        %3415 = vmatpush2.bf16.msra.mxu0 0
        %3416 = vmatprep.subr.bf16.mxu0 0
        %3417 = vmatpush2.bf16.msra.mxu0 0
        %3418 = vmatprep.subr.bf16.mxu0 0
        %3419 = vmatpush2.bf16.msra.mxu0 0
        %3420 = vmatprep.mubr.bf16.mxu0 0
        %3421 = vmatmul.mubr.bf16.gmra.mxu0 %v3383
        %v3422 = vpop.f32.mrf.mxu0
        %v3423 = vadd.f32 0.0, %v3422
        %v3424 = vpop.f32.mrf.mxu0
        %v3425 = vpop.f32.mrf.mxu0
        %v3426 = vpop.f32.mrf.mxu0
        %3427 = vdwg.mxu0
        %v3429 = vsel %vm1510, %v3281, 0
        %v3432 = vsel %vm1766, %v3289, 0
        %3434 = vmatprep.subr.bf16.mxu0 0
        %3435 = vmatpush1.bf16.msra.mxu0 0
        %3436 = vmatprep.subr.bf16.mxu0 0
        %3437 = vmatpush1.bf16.msra.mxu0 0
        %3438 = vmatprep.subr.bf16.mxu0 0
        %3439 = vmatpush1.bf16.msra.mxu0 0
        %3440 = vmatprep.subr.bf16.mxu0 0
        %3441 = vmatpush1.bf16.msra.mxu0 0
        %3442 = vmatprep.subr.bf16.mxu0 0
        %3443 = vmatpush1.bf16.msra.mxu0 0
        %3444 = vmatprep.subr.bf16.mxu0 0
        %3445 = vmatpush1.bf16.msra.mxu0 0
        %3446 = vmatprep.subr.bf16.mxu0 0
        %3447 = vmatpush1.bf16.msra.mxu0 0
        %3448 = vmatprep.subr.bf16.mxu0 0
        %3449 = vmatpush1.bf16.msra.mxu0 %v3432
        %3450 = vmatprep.subr.bf16.mxu0 0
        %3451 = vmatpush2.bf16.msra.mxu0 0
        %3452 = vmatprep.subr.bf16.mxu0 0
        %3453 = vmatpush2.bf16.msra.mxu0 0
        %3454 = vmatprep.subr.bf16.mxu0 0
        %3455 = vmatpush2.bf16.msra.mxu0 0
        %3456 = vmatprep.subr.bf16.mxu0 0
        %3457 = vmatpush2.bf16.msra.mxu0 0
        %3458 = vmatprep.subr.bf16.mxu0 0
        %3459 = vmatpush2.bf16.msra.mxu0 0
        %3460 = vmatprep.subr.bf16.mxu0 0
        %3461 = vmatpush2.bf16.msra.mxu0 0
        %3462 = vmatprep.subr.bf16.mxu0 0
        %3463 = vmatpush2.bf16.msra.mxu0 0
        %3464 = vmatprep.subr.bf16.mxu0 0
        %3465 = vmatpush2.bf16.msra.mxu0 0
        %3466 = vmatprep.mubr.bf16.mxu0 0
        %3467 = vmatmul.mubr.bf16.gmra.mxu0 %v3429
        %v3468 = vpop.f32.mrf.mxu0
        %v3469 = vadd.f32 0.0, %v3468
        %v3470 = vpop.f32.mrf.mxu0
        %v3471 = vpop.f32.mrf.mxu0
        %v3472 = vpop.f32.mrf.mxu0
        %3473 = vdwg.mxu0
        %v3474 = vsel %vm914, %v3331, 0.0
        %v3475 = vsel %vm914, %v3377, 0.0
        %v3476 = vadd.f32 %v3474, %v3475
        %v3477 = vsel %vm914, %v3423, 0.0
        %v3478 = vadd.f32 %v3476, %v3477
        %v3479 = vsel %vm914, %v3469, 0.0
        %v3480 = vadd.f32 %v3478, %v3479
        %v3481 = vld [vmem:[%s19] sm:$0x1]
        %v3483 = vlaneseq
        %v3484 = vshrl.u32 %v3483, 7
        %v3485 = vsub.s32 0, %v3484
        %v3486 = vrot.slane %v3481, %v3485
        %v3488 = vadd.f32 %v3480, %v3486
        %v3489 = vadd.f32 %v2189, %v3488
        %v3490 = vsel %vm914, %v3489, 0.0
        %3491 = vadd.xlane.f32.xlu0 %v3490
        %v3492 = vpop.xlane.xlu0 %3491
        %v3493 = vmul.f32 %v3492, %v2163
        %v3494 = vsub.f32 %v3489, %v3493
        %v3495 = vmul.f32 %v3494, %v3494
        %v3496 = vsel %vm914, %v3495, 0.0
        %3497 = vadd.xlane.f32.xlu0 %v3496
        %v3498 = vpop.xlane.xlu0 %3497
        %v3499 = vmul.f32 %v3498, %v2163
        %v3500 = vadd.f32 %v3499, 1e-05
        %v3501 = vrsqrt.pop %v3500
        %v3502 = vmul.f32 %v3494, %v3501
        %v3503 = vld [vmem:[%s20] sm:$0x1]
        %v3505 = vlaneseq
        %v3506 = vshrl.u32 %v3505, 7
        %v3507 = vsub.s32 0, %v3506
        %v3508 = vrot.slane %v3503, %v3507
        %v3510 = vmul.f32 %v3502, %v3508
        %v3511 = vld [vmem:[%s21] sm:$0x1]
        %v3513 = vlaneseq
        %v3514 = vshrl.u32 %v3513, 7
        %v3515 = vsub.s32 0, %v3514
        %v3516 = vrot.slane %v3511, %v3515
        %v3518 = vadd.f32 %v3510, %v3516
        %v3519 = vpack.c.bf16 %v3518, %v3518
        %v3520 = vld [vmem:[%s22] sm:$0xff]
        %v3521 = vld [vmem:[%s22 + $0x8] sm:$0xff]
        %v3522 = vld [vmem:[%s22 + $0x10] sm:$0xff]
        %v3523 = vld [vmem:[%s22 + $0x18] sm:$0xff]
        %v3524 = vpack.c.bf16 %v3521, %v3520
        %v3525 = vpack.c.bf16 %v3523, %v3522
        %v3526 = vld [vmem:[%s23] sm:$0x1]
        %v3528 = vlaneseq
        %v3529 = vshrl.u32 %v3528, 7
        %v3530 = vsub.s32 0, %v3529
        %v3531 = vrot.slane %v3526, %v3530
        %v3534 = vsel %vm914, %v3519, 0
        %3536 = vmatprep.subr.bf16.mxu0 0
        %3537 = vmatpush1.bf16.msra.mxu0 0
        %3538 = vmatprep.subr.bf16.mxu0 0
        %3539 = vmatpush1.bf16.msra.mxu0 0
        %3540 = vmatprep.subr.bf16.mxu0 0
        %3541 = vmatpush1.bf16.msra.mxu0 0
        %3542 = vmatprep.subr.bf16.mxu0 0
        %3543 = vmatpush1.bf16.msra.mxu0 0
        %3544 = vmatprep.subr.bf16.mxu0 0
        %3545 = vmatpush1.bf16.msra.mxu0 0
        %3546 = vmatprep.subr.bf16.mxu0 0
        %3547 = vmatpush1.bf16.msra.mxu0 0
        %3548 = vmatprep.subr.bf16.mxu0 0
        %3549 = vmatpush1.bf16.msra.mxu0 %v3525
        %3550 = vmatprep.subr.bf16.mxu0 0
        %3551 = vmatpush1.bf16.msra.mxu0 %v3524
        %3552 = vmatprep.subr.bf16.mxu0 0
        %3553 = vmatpush2.bf16.msra.mxu0 0
        %3554 = vmatprep.subr.bf16.mxu0 0
        %3555 = vmatpush2.bf16.msra.mxu0 0
        %3556 = vmatprep.subr.bf16.mxu0 0
        %3557 = vmatpush2.bf16.msra.mxu0 0
        %3558 = vmatprep.subr.bf16.mxu0 0
        %3559 = vmatpush2.bf16.msra.mxu0 0
        %3560 = vmatprep.subr.bf16.mxu0 0
        %3561 = vmatpush2.bf16.msra.mxu0 0
        %3562 = vmatprep.subr.bf16.mxu0 0
        %3563 = vmatpush2.bf16.msra.mxu0 0
        %3564 = vmatprep.subr.bf16.mxu0 0
        %3565 = vmatpush2.bf16.msra.mxu0 0
        %3566 = vmatprep.subr.bf16.mxu0 0
        %3567 = vmatpush2.bf16.msra.mxu0 0
        %3568 = vmatprep.mubr.bf16.mxu0 0
        %3569 = vmatmul.mubr.bf16.gmra.mxu0 %v3534
        %v3570 = vpop.f32.mrf.mxu0
        %v3571 = vadd.f32 %v3531, %v3570
        %v3572 = vpop.f32.mrf.mxu0
        %v3573 = vpop.f32.mrf.mxu0
        %v3574 = vpop.f32.mrf.mxu0
        %3575 = vdwg.mxu0
        %v3576 = vmax.f32 %v3571, 0.0
        %v3577 = vpack.c.bf16 %v3576, %v3576
        %v3578 = vld [vmem:[%s24] sm:$0xff]
        %v3579 = vld [vmem:[%s24 + $0x8] sm:$0xff]
        %v3580 = vld [vmem:[%s24 + $0x10] sm:$0xff]
        %v3581 = vld [vmem:[%s24 + $0x18] sm:$0xff]
        %v3582 = vld [vmem:[%s24 + $0x20] sm:$0xff]
        %v3583 = vld [vmem:[%s24 + $0x28] sm:$0xff]
        %v3584 = vld [vmem:[%s24 + $0x30] sm:$0xff]
        %v3585 = vld [vmem:[%s24 + $0x38] sm:$0xff]
        %v3586 = vpack.c.bf16 %v3579, %v3578
        %v3587 = vpack.c.bf16 %v3581, %v3580
        %v3588 = vpack.c.bf16 %v3583, %v3582
        %v3589 = vpack.c.bf16 %v3585, %v3584
        %v3590 = vld [vmem:[%s25] sm:$0x1]
        %v3592 = vlaneseq
        %v3593 = vshrl.u32 %v3592, 7
        %v3594 = vsub.s32 0, %v3593
        %v3595 = vrot.slane %v3590, %v3594
        %vm3597 = vcmask 523264
        %v3599 = vsel %vm3597, %v3577, 0
        %3601 = vmatprep.subr.bf16.mxu0 0
        %3602 = vmatpush1.bf16.msra.mxu0 0
        %3603 = vmatprep.subr.bf16.mxu0 0
        %3604 = vmatpush1.bf16.msra.mxu0 0
        %3605 = vmatprep.subr.bf16.mxu0 0
        %3606 = vmatpush1.bf16.msra.mxu0 0
        %3607 = vmatprep.subr.bf16.mxu0 0
        %3608 = vmatpush1.bf16.msra.mxu0 0
        %3609 = vmatprep.subr.bf16.mxu0 0
        %3610 = vmatpush1.bf16.msra.mxu0 %v3589
        %3611 = vmatprep.subr.bf16.mxu0 0
        %3612 = vmatpush1.bf16.msra.mxu0 %v3588
        %3613 = vmatprep.subr.bf16.mxu0 0
        %3614 = vmatpush1.bf16.msra.mxu0 %v3587
        %3615 = vmatprep.subr.bf16.mxu0 0
        %3616 = vmatpush1.bf16.msra.mxu0 %v3586
        %3617 = vmatprep.subr.bf16.mxu0 0
        %3618 = vmatpush2.bf16.msra.mxu0 0
        %3619 = vmatprep.subr.bf16.mxu0 0
        %3620 = vmatpush2.bf16.msra.mxu0 0
        %3621 = vmatprep.subr.bf16.mxu0 0
        %3622 = vmatpush2.bf16.msra.mxu0 0
        %3623 = vmatprep.subr.bf16.mxu0 0
        %3624 = vmatpush2.bf16.msra.mxu0 0
        %3625 = vmatprep.subr.bf16.mxu0 0
        %3626 = vmatpush2.bf16.msra.mxu0 0
        %3627 = vmatprep.subr.bf16.mxu0 0
        %3628 = vmatpush2.bf16.msra.mxu0 0
        %3629 = vmatprep.subr.bf16.mxu0 0
        %3630 = vmatpush2.bf16.msra.mxu0 0
        %3631 = vmatprep.subr.bf16.mxu0 0
        %3632 = vmatpush2.bf16.msra.mxu0 0
        %3633 = vmatprep.mubr.bf16.mxu0 0
        %3634 = vmatmul.mubr.bf16.gmra.mxu0 %v3599
        %v3635 = vpop.f32.mrf.mxu0
        %v3636 = vadd.f32 %v3595, %v3635
        %v3637 = vpop.f32.mrf.mxu0
        %v3638 = vpop.f32.mrf.mxu0
        %v3639 = vpop.f32.mrf.mxu0
        %3640 = vdwg.mxu0
        %v3641 = vadd.f32 %v3518, %v3636
        %v3642 = vsel %vm914, %v3641, 0.0
        %3643 = vadd.xlane.f32.xlu0 %v3642
        %v3644 = vpop.xlane.xlu0 %3643
        %v3645 = vmul.f32 %v3644, %v2163
        %v3646 = vsub.f32 %v3641, %v3645
        %v3647 = vmul.f32 %v3646, %v3646
        %v3648 = vsel %vm914, %v3647, 0.0
        %3649 = vadd.xlane.f32.xlu0 %v3648
        %v3650 = vpop.xlane.xlu0 %3649
        %v3651 = vmul.f32 %v3650, %v2163
        %v3652 = vadd.f32 %v3651, 1e-05
        %v3653 = vrsqrt.pop %v3652
        %v3654 = vmul.f32 %v3646, %v3653
        %v3655 = vld [vmem:[%s26] sm:$0x1]
        %v3657 = vlaneseq
        %v3658 = vshrl.u32 %v3657, 7
        %v3659 = vsub.s32 0, %v3658
        %v3660 = vrot.slane %v3655, %v3659
        %v3662 = vmul.f32 %v3654, %v3660
        %v3663 = vld [vmem:[%s27] sm:$0x1]
        %v3665 = vlaneseq
        %v3666 = vshrl.u32 %v3665, 7
        %v3667 = vsub.s32 0, %v3666
        %v3668 = vrot.slane %v3663, %v3667
        %v3670 = vadd.f32 %v3662, %v3668
        %3671 = vst.msk [vmem:[%s849] sm:$0xff] %vm914, %v3670
        %s3672 = sand.u32 %s648, 1
        %s3673 = scalar_lea.sflag [#allocation3], %s3672
        %s3674 = sand.u32 %s648, 1
        %s3675 = smul.addr %s3674, 8
        %s3676 = scalar_lea.vmem [#allocation2], %s3675
        // Predicated region
        $region133: #{tpu_custom_call.1} parent=131 // pred_check
          %p3677 = pneg %p658
        $region134: #{tpu_custom_call.1} parent=131 // pred_check_branch
          %3679 = sbr.rel (%p3677) target = $region136
        $region135: #{tpu_custom_call.1} parent=131 // pred_region
          %s3681 = ssub.s32 128, 128
          %3682 = vsyncadd %s3673, %s3681
          %s3683 = smul.addr %s42, 128
          %s3684 = scalar_lea.hbm %s28, %s3683
          %s3686 = sshll.u32 %s3676, 4
          %s3687 = int_to_ptr.vmem [resolvable:$true] %s3686
          %3689 = dma.vmem_to_hbm [thread:$0]  %s3687, 128, %s3684, %s3673
        $region136: #{tpu_custom_call.1} parent=131 // pred_fallthru
          _
      $region132: #{tpu_custom_call.1} parent=5 // pred_fallthru
        _
      %p3690 = scmp.le.s32.totalorder 2, %s37
      // Predicated region
      $region137: #{tpu_custom_call.1} parent=5 // pred_check
        %p3691 = pneg %p3690
      $region138: #{tpu_custom_call.1} parent=5 // pred_check_branch
        %3693 = sbr.rel (%p3691) target = $region140
      $region139: #{tpu_custom_call.1} parent=5 // pred_region
        %s3694 = ssub.s32 %s37, 2
        // Predicated region
        $region141: #{tpu_custom_call.1} parent=139 // pred_check
          %p3695 = pneg %p664
        $region142: #{tpu_custom_call.1} parent=139 // pred_check_branch
          %3697 = sbr.rel (%p3695) target = $region144
        $region143: #{tpu_custom_call.1} parent=139 // pred_region
          %s3698 = sand.u32 %s649, 1
          %s3699 = scalar_lea.sflag [#allocation3], %s3698
          %s3700 = sand.u32 %s649, 1
          %s3701 = smul.addr %s3700, 8
          %s3702 = scalar_lea.vmem [#allocation2], %s3701
          %3703 = dma.done %s3699, 128
        $region144: #{tpu_custom_call.1} parent=139 // pred_fallthru
          _
      $region140: #{tpu_custom_call.1} parent=5 // pred_fallthru
        _
    $region6: #{tpu_custom_call.1} parent=1 // loop_footer
      %s41 = sadd.s32 1, %s37
    $region7: #{tpu_custom_call.1} parent=1 // loop_footer_branch
      %36 = sbr.rel target = $region3
    $region8: #{tpu_custom_call.1} parent=1 // loop_exit
      _
    %3704 = vsyncpa [#allocation3], 1
    %s3705 = scalar_lea.sflag [#allocation3], 1
    %3706 = vsyncpa %s3705, 1

</llo_original>
